<compile_context>
chip_gen: v6e
topology: v6e:2x2x1
jax: 0.10.0
libtpu: 0.0.40
codegen_flags: <defaults>
</compile_context>

<pallas_src>
import functools

import jax
import jax.numpy as jnp
from jax.experimental import pallas as pl

PATCH_DIM = 16


# ----------------------------------------------------------------------------
# Shared math helpers (used both inside the kernel and by the pure-JAX reference)
# ----------------------------------------------------------------------------
def _layer_norm(z, gamma, beta, eps=1e-5):
    mu = jnp.mean(z, axis=-1, keepdims=True)
    var = jnp.mean(jnp.square(z - mu), axis=-1, keepdims=True)
    return (z - mu) * jax.lax.rsqrt(var + eps) * gamma + beta


def _gelu_exact(x):
    # nn.GELU() default: exact erf formulation.
    return 0.5 * x * (1.0 + jax.lax.erf(x * 0.7071067811865476))


# ----------------------------------------------------------------------------
# Fused Pallas kernel: projection -> masking -> pos add -> L encoder layers -> decoder
# ----------------------------------------------------------------------------
def _fused_vit_kernel(
    num_heads, num_layers, batch, seq,
    # inputs
    patches_ref, fullmask_ref, pflag_ref, pvals_ref,
    mask_tok_ref, pind_ref, projw_ref, projb_ref, pos_ref,
    n1g_ref, n1b_ref, wqkv_ref, bqkv_ref, wo_ref, bo_ref,
    n2g_ref, n2b_ref, w1_ref, b1_ref, w2_ref, b2_ref,
    decw_ref, decb_ref,
    # outputs
    logits_ref, emb_ref,
):
    E = projw_ref.shape[1]
    H = num_heads
    D = E // H
    M = batch * seq

    projw = projw_ref[...]
    projb = projb_ref[...]

    # ---- patch projection ----
    emb = jnp.dot(patches_ref[...], projw, preferred_element_type=jnp.float32) + projb

    # ---- full-mask token replacement (applied before pos embedding, as in PyTorch) ----
    fm = fullmask_ref[...]                       # (M, 1) in {0, 1}
    emb = emb + fm * (mask_tok_ref[...] - emb)

    # ---- partial-mask replacement: proj(partial value) + indicator ----
    ppro = (jnp.dot(pvals_ref[...], projw, preferred_element_type=jnp.float32)
            + projb + pind_ref[...])
    pf = pflag_ref[...]                          # (M, 1) in {0, 1}
    emb = emb + pf * (ppro - emb)

    # ---- positional embedding: pos is (N, E), broadcast over batch in VMEM ----
    x = (emb.reshape(batch, seq, E) + pos_ref[...]).reshape(M, E)

    # ---- transformer encoder stack (pre-norm, matching the reference module) ----
    for layer in range(num_layers):              # static unroll over layers (toy dims)
        # --- multi-head self-attention ---
        zn = _layer_norm(x, n1g_ref[layer], n1b_ref[layer])
        qkv = (jnp.dot(zn, wqkv_ref[layer], preferred_element_type=jnp.float32)
               + bqkv_ref[layer])                # (M, 3E); Q columns pre-scaled 1/sqrt(D)
        qkv3 = qkv.reshape(batch, seq, 3 * E)    # leading-dim split only

        ctx_heads = []
        for h in range(H):                       # static unroll over heads
            qh = qkv3[:, :, h * D:(h + 1) * D]
            kh = qkv3[:, :, E + h * D:E + (h + 1) * D]
            vh = qkv3[:, :, 2 * E + h * D:2 * E + (h + 1) * D]
            s = jnp.einsum("bqd,bkd->bqk", qh, kh,
                           preferred_element_type=jnp.float32)        # batched over B
            s = s - jnp.max(s, axis=-1, keepdims=True)
            p = jnp.exp(s)
            p = p * pl.reciprocal(jnp.sum(p, axis=-1, keepdims=True), approx=True)
            ctx_heads.append(jnp.einsum("bqk,bkd->bqd", p, vh,
                                        preferred_element_type=jnp.float32))
        # Heads are already in lane order -> concat along lanes gives contiguous (M, E);
        # then a SINGLE full-K output projection matmul (no per-head K=D MXU pushes).
        ctx = jnp.concatenate(ctx_heads, axis=-1).reshape(M, E)
        x = (x + jnp.dot(ctx, wo_ref[layer], preferred_element_type=jnp.float32)
             + bo_ref[layer])                    # dropout = identity (eval mode)

        # --- feed-forward ---
        zn = _layer_norm(x, n2g_ref[layer], n2b_ref[layer])
        h1 = _gelu_exact(
            jnp.dot(zn, w1_ref[layer], preferred_element_type=jnp.float32)
            + b1_ref[layer])
        x = (x + jnp.dot(h1, w2_ref[layer], preferred_element_type=jnp.float32)
             + b2_ref[layer])

    # ---- decoder (lane-dense epilogue: only logits + embeddings leave the kernel) ----
    emb_ref[...] = x
    logits_ref[...] = (jnp.dot(x, decw_ref[...], preferred_element_type=jnp.float32)
                       + decb_ref[...])


# ----------------------------------------------------------------------------
# One-time parameter preparation: fold 1/sqrt(D) into the Q columns of fused QKV
# ----------------------------------------------------------------------------
def prepare_params(params, num_heads):
    E = params["proj_w"].shape[1]
    D = E // num_heads
    scale = 1.0 / float(D) ** 0.5
    prepared = dict(params)
    prepared["wqkv"] = params["wqkv"].at[:, :, :E].multiply(scale)
    prepared["bqkv"] = params["bqkv"].at[:, :, :E].multiply(scale)
    return prepared


# ----------------------------------------------------------------------------
# Forward pass wrapper (mask preprocessing in plain JAX, everything else in Pallas)
# ----------------------------------------------------------------------------
def continuous_vit_forward(params, patches, mask_indices=None,
                           partial_mask_indices=None, partial_mask_values=None,
                           num_heads=4):
    """`params` must be the output of prepare_params (Q scale folded into wqkv)."""
    B, N, P = patches.shape
    E = params["proj_w"].shape[1]
    L = params["wqkv"].shape[0]
    M = B * N

    patches2 = patches.reshape(M, P).astype(jnp.float32)

    # Full-mask flag per token.
    if mask_indices is not None:
        fullm = mask_indices.reshape(M, 1).astype(jnp.float32)
    else:
        fullm = jnp.zeros((M, 1), jnp.float32)

    # Partial-mask path: vectorized equivalent of the PyTorch per-row loop.
    # For the i-th True position of partial_mask_indices[b] (i < num_partial),
    # the token is replaced by proj(partial_mask_values[b, i]) + indicator.
    if partial_mask_indices is not None and partial_mask_values is not None:
        npart = partial_mask_values.shape[1]
        rank = jnp.cumsum(partial_mask_indices.astype(jnp.int32), axis=1) - 1
        valid = partial_mask_indices & (rank < npart)
        idx = jnp.clip(rank, 0, npart - 1)
        gathered = jnp.take_along_axis(partial_mask_values.astype(jnp.float32),
                                       idx[:, :, None], axis=1)       # (B, N, P)
        pflag = valid.reshape(M, 1).astype(jnp.float32)
        pvals = gathered.reshape(M, P)
    else:
        pflag = jnp.zeros((M, 1), jnp.float32)
        pvals = jnp.zeros((M, P), jnp.float32)

    # Pass pos as (N, E); broadcast over batch happens inside the kernel.
    pos = params["pos_embedding"][0, :N, :]

    kernel = functools.partial(_fused_vit_kernel, num_heads, L, B, N)
    out_shapes = (
        jax.ShapeDtypeStruct((M, P), jnp.float32),   # logits
        jax.ShapeDtypeStruct((M, E), jnp.float32),   # embeddings
    )
    # No grid / no BlockSpecs: every operand is a whole-array VMEM-resident block
    # (total < 1 MiB at these dims), so there is a single pipeline step and zero
    # inter-layer HBM I/O.
    logits, emb = pl.pallas_call(
        kernel,
        out_shape=out_shapes,
    )(
        patches2, fullm, pflag, pvals,
        params["mask_token"], params["partial_mask_indicator"],
        params["proj_w"], params["proj_b"], pos,
        params["n1g"], params["n1b"],
        params["wqkv"], params["bqkv"], params["wo"], params["bo"],
        params["n2g"], params["n2b"],
        params["w1"], params["b1"], params["w2"], params["b2"],
        params["dec_w"], params["dec_b"],
    )
    # Tiny elementwise epilogue kept outside the kernel (lane-dense kernel outputs).
    probs = jax.nn.sigmoid(logits)
    binary = (logits > 0.0).astype(jnp.float32)      # == (sigmoid(logits) > 0.5)
    return {
        "logits": logits.reshape(B, N, P),
        "probabilities": probs.reshape(B, N, P),
        "binary_prediction": binary.reshape(B, N, P),
        "embeddings": emb.reshape(B, N, E),
    }


# ----------------------------------------------------------------------------
# Pure-JAX reference (same math, no Pallas, uses UNprepared params) for checking
# ----------------------------------------------------------------------------
def _reference_forward(params, patches, mask_indices=None,
                       partial_mask_indices=None, partial_mask_values=None,
                       num_heads=4):
    hi = jax.lax.Precision.HIGHEST
    B, N, P = patches.shape
    E = params["proj_w"].shape[1]
    L = params["wqkv"].shape[0]
    H, D = num_heads, E // num_heads

    emb = (jnp.dot(patches.reshape(B * N, P), params["proj_w"], precision=hi)
           + params["proj_b"]).reshape(B, N, E)
    if mask_indices is not None:
        emb = jnp.where(mask_indices[..., None], params["mask_token"][None], emb)
    if partial_mask_indices is not None and partial_mask_values is not None:
        npart = partial_mask_values.shape[1]
        rank = jnp.cumsum(partial_mask_indices.astype(jnp.int32), axis=1) - 1
        valid = partial_mask_indices & (rank < npart)
        idx = jnp.clip(rank, 0, npart - 1)
        gathered = jnp.take_along_axis(partial_mask_values.astype(jnp.float32),
                                       idx[:, :, None], axis=1)
        ppro = (jnp.dot(gathered.reshape(B * N, P), params["proj_w"], precision=hi)
                + params["proj_b"] + params["partial_mask_indicator"]).reshape(B, N, E)
        emb = jnp.where(valid[..., None], ppro, emb)
    x = (emb + params["pos_embedding"][:, :N]).reshape(B * N, E)

    for layer in range(L):
        zn = _layer_norm(x, params["n1g"][layer], params["n1b"][layer])
        qkv = jnp.dot(zn, params["wqkv"][layer], precision=hi) + params["bqkv"][layer]
        q = qkv[:, :E].reshape(B, N, H, D)
        k = qkv[:, E:2 * E].reshape(B, N, H, D)
        v = qkv[:, 2 * E:].reshape(B, N, H, D)
        s = jnp.einsum("bqhd,bkhd->bhqk", q, k, precision=hi) / (float(D) ** 0.5)
        p = jax.nn.softmax(s, axis=-1)
        ctx = jnp.einsum("bhqk,bkhd->bqhd", p, v, precision=hi).reshape(B * N, E)
        x = x + jnp.dot(ctx, params["wo"][layer], precision=hi) + params["bo"][layer]
        zn = _layer_norm(x, params["n2g"][layer], params["n2b"][layer])
        h1 = _gelu_exact(jnp.dot(zn, params["w1"][layer], precision=hi)
                         + params["b1"][layer])
        x = x + jnp.dot(h1, params["w2"][layer], precision=hi) + params["b2"][layer]

    logits = jnp.dot(x, params["dec_w"], precision=hi) + params["dec_b"]
    probs = jax.nn.sigmoid(logits)
    return {
        "logits": logits.reshape(B, N, P),
        "probabilities": probs.reshape(B, N, P),
        "binary_prediction": (probs > 0.5).astype(jnp.float32).reshape(B, N, P),
        "embeddings": x.reshape(B, N, E),
    }


# ----------------------------------------------------------------------------
# Parameter init (deterministic, synthetic weights — shapes from __init__)
# ----------------------------------------------------------------------------
def init_params(key, embed_dim, num_heads, feedforward_dim, num_layers, max_patches):
    E, F, L = embed_dim, feedforward_dim, num_layers
    keys = jax.random.split(key, 12)

    def nrm(k, shape, scale=0.02):
        return scale * jax.random.normal(k, shape, dtype=jnp.float32)

    return {
        "proj_w": nrm(keys[0], (PATCH_DIM, E)),
        "proj_b": nrm(keys[1], (1, E)),
        "mask_token": jax.random.normal(keys[2], (1, E), dtype=jnp.float32),
        "partial_mask_indicator": jax.random.normal(keys[3], (1, E), dtype=jnp.float32),
        "pos_embedding": jax.random.normal(keys[4], (1, max_patches, E),
                                           dtype=jnp.float32),
        "dec_w": nrm(keys[5], (E, PATCH_DIM)),
        "dec_b": jnp.zeros((1, PATCH_DIM), jnp.float32),
        # Per-layer weights stacked along a leading num_layers axis.
        "n1g": jnp.ones((L, 1, E), jnp.float32),
        "n1b": jnp.zeros((L, 1, E), jnp.float32),
        "wqkv": nrm(keys[6], (L, E, 3 * E)),         # fused Wq|Wk|Wv
        "bqkv": jnp.zeros((L, 1, 3 * E), jnp.float32),
        "wo": nrm(keys[7], (L, E, E)),
        "bo": jnp.zeros((L, 1, E), jnp.float32),
        "n2g": jnp.ones((L, 1, E), jnp.float32),
        "n2b": jnp.zeros((L, 1, E), jnp.float32),
        "w1": nrm(keys[8], (L, E, F)),
        "b1": nrm(keys[9], (L, 1, F)),
        "w2": nrm(keys[10], (L, F, E)),
        "b2": nrm(keys[11], (L, 1, E)),
    }


if __name__ == "__main__":
    embed_dim, num_heads, feedforward_dim, num_layers, max_patches = 32, 4, 64, 2, 16
    B, N = 2, 8

    key = jax.random.PRNGKey(0)
    pkey, xkey, vkey = jax.random.split(key, 3)
    params = init_params(pkey, embed_dim, num_heads, feedforward_dim,
                         num_layers, max_patches)
    # One-time weight transform: fold 1/sqrt(D) into the Q columns of the fused QKV.
    kparams = prepare_params(params, num_heads)
    patches = jax.random.uniform(xkey, (B, N, PATCH_DIM), dtype=jnp.float32)

    # --- unmasked forward ---
    out = continuous_vit_forward(kparams, patches, num_heads=num_heads)
    out = jax.block_until_ready(out)
    assert out["logits"].shape == (B, N, PATCH_DIM)
    assert out["probabilities"].shape == (B, N, PATCH_DIM)
    assert out["binary_prediction"].shape == (B, N, PATCH_DIM)
    assert out["embeddings"].shape == (B, N, embed_dim)
    ref = _reference_forward(params, patches, num_heads=num_heads)
    for name in ("logits", "probabilities", "embeddings"):
        assert bool(jnp.allclose(out[name], ref[name], atol=2e-2, rtol=2e-2)), name

    # --- masked forward (exercise full-mask and partial-mask paths) ---
    mask_indices = jnp.zeros((B, N), dtype=bool).at[:, 0].set(True)
    partial_mask_indices = (jnp.zeros((B, N), dtype=bool)
                            .at[:, 2].set(True).at[:, 5].set(True).at[:, 6].set(True))
    partial_mask_values = jax.random.uniform(vkey, (B, 2, PATCH_DIM), dtype=jnp.float32)
    out_m = continuous_vit_forward(kparams, patches, mask_indices,
                                   partial_mask_indices, partial_mask_values,
                                   num_heads=num_heads)
    out_m = jax.block_until_ready(out_m)
    ref_m = _reference_forward(params, patches, mask_indices,
                               partial_mask_indices, partial_mask_values,
                               num_heads=num_heads)
    for name in ("logits", "probabilities", "embeddings"):
        assert bool(jnp.allclose(out_m[name], ref_m[name], atol=2e-2, rtol=2e-2)), name

    print("KERNEL_OK")
</pallas_src>

<mosaic_0001>
module attributes {stable_mosaic.version = 11 : i64} {
  func.func @_fused_vit_kernel(%arg0: memref<16x16xf32, #tpu.memory_space<vmem>>, %arg1: memref<16x1xf32, #tpu.memory_space<vmem>>, %arg2: memref<16x1xf32, #tpu.memory_space<vmem>>, %arg3: memref<16x16xf32, #tpu.memory_space<vmem>>, %arg4: memref<1x32xf32, #tpu.memory_space<vmem>>, %arg5: memref<1x32xf32, #tpu.memory_space<vmem>>, %arg6: memref<16x32xf32, #tpu.memory_space<vmem>>, %arg7: memref<1x32xf32, #tpu.memory_space<vmem>>, %arg8: memref<8x32xf32, #tpu.memory_space<vmem>>, %arg9: memref<2x1x32xf32, #tpu.memory_space<vmem>>, %arg10: memref<2x1x32xf32, #tpu.memory_space<vmem>>, %arg11: memref<2x32x96xf32, #tpu.memory_space<vmem>>, %arg12: memref<2x1x96xf32, #tpu.memory_space<vmem>>, %arg13: memref<2x32x32xf32, #tpu.memory_space<vmem>>, %arg14: memref<2x1x32xf32, #tpu.memory_space<vmem>>, %arg15: memref<2x1x32xf32, #tpu.memory_space<vmem>>, %arg16: memref<2x1x32xf32, #tpu.memory_space<vmem>>, %arg17: memref<2x32x64xf32, #tpu.memory_space<vmem>>, %arg18: memref<2x1x64xf32, #tpu.memory_space<vmem>>, %arg19: memref<2x64x32xf32, #tpu.memory_space<vmem>>, %arg20: memref<2x1x32xf32, #tpu.memory_space<vmem>>, %arg21: memref<32x16xf32, #tpu.memory_space<vmem>>, %arg22: memref<1x16xf32, #tpu.memory_space<vmem>>, %arg23: memref<16x16xf32, #tpu.memory_space<vmem>>, %arg24: memref<16x32xf32, #tpu.memory_space<vmem>>) attributes {dimension_semantics = [], scalar_prefetch = 0 : i64, scratch_operands = 0 : i64, tpu.core_type = #tpu.core_type<tc>} {
    %c0 = arith.constant 0 : index
    %c0_0 = arith.constant 0 : index
    %0 = vector.load %arg6[%c0, %c0_0] : memref<16x32xf32, #tpu.memory_space<vmem>>, vector<16x32xf32>
    %c0_1 = arith.constant 0 : index
    %c0_2 = arith.constant 0 : index
    %1 = vector.load %arg7[%c0_1, %c0_2] : memref<1x32xf32, #tpu.memory_space<vmem>>, vector<1x32xf32>
    %c0_3 = arith.constant 0 : index
    %c0_4 = arith.constant 0 : index
    %2 = vector.load %arg0[%c0_3, %c0_4] : memref<16x16xf32, #tpu.memory_space<vmem>>, vector<16x16xf32>
    %cst = arith.constant dense<0.000000e+00> : vector<16x32xf32>
    %3 = tpu.matmul %2, %0, %cst {dimension_numbers = #tpu.dot_dimension_numbers<[1], [0], [0], [1], [0, 0, 1, 1], [], []>} : vector<16x16xf32>, vector<16x32xf32>, vector<16x32xf32> -> vector<16x32xf32>
    %4 = vector.broadcast %1 : vector<1x32xf32> to vector<16x32xf32>
    %5 = arith.addf %3, %4 : vector<16x32xf32>
    %c0_5 = arith.constant 0 : index
    %c0_6 = arith.constant 0 : index
    %6 = vector.load %arg1[%c0_5, %c0_6] : memref<16x1xf32, #tpu.memory_space<vmem>>, vector<16x1xf32>
    %c0_7 = arith.constant 0 : index
    %c0_8 = arith.constant 0 : index
    %7 = vector.load %arg4[%c0_7, %c0_8] : memref<1x32xf32, #tpu.memory_space<vmem>>, vector<1x32xf32>
    %8 = vector.broadcast %7 : vector<1x32xf32> to vector<16x32xf32>
    %9 = arith.subf %8, %5 : vector<16x32xf32>
    %10 = vector.broadcast %6 : vector<16x1xf32> to vector<16x32xf32>
    %11 = arith.mulf %10, %9 : vector<16x32xf32>
    %12 = arith.addf %5, %11 : vector<16x32xf32>
    %c0_9 = arith.constant 0 : index
    %c0_10 = arith.constant 0 : index
    %13 = vector.load %arg3[%c0_9, %c0_10] : memref<16x16xf32, #tpu.memory_space<vmem>>, vector<16x16xf32>
    %cst_11 = arith.constant dense<0.000000e+00> : vector<16x32xf32>
    %14 = tpu.matmul %13, %0, %cst_11 {dimension_numbers = #tpu.dot_dimension_numbers<[1], [0], [0], [1], [0, 0, 1, 1], [], []>} : vector<16x16xf32>, vector<16x32xf32>, vector<16x32xf32> -> vector<16x32xf32>
    %15 = vector.broadcast %1 : vector<1x32xf32> to vector<16x32xf32>
    %16 = arith.addf %14, %15 : vector<16x32xf32>
    %c0_12 = arith.constant 0 : index
    %c0_13 = arith.constant 0 : index
    %17 = vector.load %arg5[%c0_12, %c0_13] : memref<1x32xf32, #tpu.memory_space<vmem>>, vector<1x32xf32>
    %18 = vector.broadcast %17 : vector<1x32xf32> to vector<16x32xf32>
    %19 = arith.addf %16, %18 : vector<16x32xf32>
    %c0_14 = arith.constant 0 : index
    %c0_15 = arith.constant 0 : index
    %20 = vector.load %arg2[%c0_14, %c0_15] : memref<16x1xf32, #tpu.memory_space<vmem>>, vector<16x1xf32>
    %21 = arith.subf %19, %12 : vector<16x32xf32>
    %22 = vector.broadcast %20 : vector<16x1xf32> to vector<16x32xf32>
    %23 = arith.mulf %22, %21 : vector<16x32xf32>
    %24 = arith.addf %12, %23 : vector<16x32xf32>
    %25 = vector.shape_cast %24 : vector<16x32xf32> to vector<2x8x32xf32>
    %c0_16 = arith.constant 0 : index
    %c0_17 = arith.constant 0 : index
    %26 = vector.load %arg8[%c0_16, %c0_17] : memref<8x32xf32, #tpu.memory_space<vmem>>, vector<8x32xf32>
    %27 = vector.shape_cast %26 : vector<8x32xf32> to vector<1x8x32xf32>
    %28 = vector.broadcast %27 : vector<1x8x32xf32> to vector<2x8x32xf32>
    %29 = arith.addf %25, %28 : vector<2x8x32xf32>
    %30 = vector.shape_cast %29 : vector<2x8x32xf32> to vector<16x32xf32>
    %c0_18 = arith.constant 0 : index
    %c0_19 = arith.constant 0 : index
    %c0_20 = arith.constant 0 : index
    %31 = vector.load %arg9[%c0_18, %c0_19, %c0_20] : memref<2x1x32xf32, #tpu.memory_space<vmem>>, vector<1x1x32xf32>
    %32 = vector.shape_cast %31 : vector<1x1x32xf32> to vector<1x32xf32>
    %c0_21 = arith.constant 0 : index
    %c0_22 = arith.constant 0 : index
    %c0_23 = arith.constant 0 : index
    %33 = vector.load %arg10[%c0_21, %c0_22, %c0_23] : memref<2x1x32xf32, #tpu.memory_space<vmem>>, vector<1x1x32xf32>
    %34 = vector.shape_cast %33 : vector<1x1x32xf32> to vector<1x32xf32>
    %cst_24 = arith.constant dense<0.000000e+00> : vector<16xf32>
    %35 = vector.multi_reduction <add>, %30, %cst_24 [1] : vector<16x32xf32> to vector<16xf32>
    %36 = vector.shape_cast %35 : vector<16xf32> to vector<16x1xf32>
    %cst_25 = arith.constant 3.200000e+01 : f32
    %37 = vector.broadcast %cst_25 : f32 to vector<16x1xf32>
    %38 = arith.divf %36, %37 : vector<16x1xf32>
    %39 = vector.broadcast %38 : vector<16x1xf32> to vector<16x32xf32>
    %40 = arith.subf %30, %39 : vector<16x32xf32>
    %41 = arith.mulf %40, %40 : vector<16x32xf32>
    %cst_26 = arith.constant dense<0.000000e+00> : vector<16xf32>
    %42 = vector.multi_reduction <add>, %41, %cst_26 [1] : vector<16x32xf32> to vector<16xf32>
    %43 = vector.shape_cast %42 : vector<16xf32> to vector<16x1xf32>
    %cst_27 = arith.constant 3.200000e+01 : f32
    %44 = vector.broadcast %cst_27 : f32 to vector<16x1xf32>
    %45 = arith.divf %43, %44 : vector<16x1xf32>
    %46 = vector.broadcast %38 : vector<16x1xf32> to vector<16x32xf32>
    %47 = arith.subf %30, %46 : vector<16x32xf32>
    %cst_28 = arith.constant 9.99999974E-6 : f32
    %48 = vector.broadcast %cst_28 : f32 to vector<16x1xf32>
    %49 = arith.addf %45, %48 : vector<16x1xf32>
    %50 = math.rsqrt %49 : vector<16x1xf32>
    %51 = vector.broadcast %50 : vector<16x1xf32> to vector<16x32xf32>
    %52 = arith.mulf %47, %51 : vector<16x32xf32>
    %53 = vector.broadcast %32 : vector<1x32xf32> to vector<16x32xf32>
    %54 = arith.mulf %52, %53 : vector<16x32xf32>
    %55 = vector.broadcast %34 : vector<1x32xf32> to vector<16x32xf32>
    %56 = arith.addf %54, %55 : vector<16x32xf32>
    %c0_29 = arith.constant 0 : index
    %c0_30 = arith.constant 0 : index
    %c0_31 = arith.constant 0 : index
    %57 = vector.load %arg11[%c0_29, %c0_30, %c0_31] : memref<2x32x96xf32, #tpu.memory_space<vmem>>, vector<1x32x96xf32>
    %58 = vector.shape_cast %57 : vector<1x32x96xf32> to vector<32x96xf32>
    %cst_32 = arith.constant dense<0.000000e+00> : vector<16x96xf32>
    %59 = tpu.matmul %56, %58, %cst_32 {dimension_numbers = #tpu.dot_dimension_numbers<[1], [0], [0], [1], [0, 0, 1, 1], [], []>} : vector<16x32xf32>, vector<32x96xf32>, vector<16x96xf32> -> vector<16x96xf32>
    %c0_33 = arith.constant 0 : index
    %c0_34 = arith.constant 0 : index
    %c0_35 = arith.constant 0 : index
    %60 = vector.load %arg12[%c0_33, %c0_34, %c0_35] : memref<2x1x96xf32, #tpu.memory_space<vmem>>, vector<1x1x96xf32>
    %61 = vector.shape_cast %60 : vector<1x1x96xf32> to vector<1x96xf32>
    %62 = vector.broadcast %61 : vector<1x96xf32> to vector<16x96xf32>
    %63 = arith.addf %59, %62 : vector<16x96xf32>
    %64 = vector.shape_cast %63 : vector<16x96xf32> to vector<2x8x96xf32>
    %65 = vector.extract_strided_slice %64 {offsets = [0, 0, 0], sizes = [2, 8, 8], strides = [1, 1, 1]} : vector<2x8x96xf32> to vector<2x8x8xf32>
    %66 = vector.extract_strided_slice %64 {offsets = [0, 0, 32], sizes = [2, 8, 8], strides = [1, 1, 1]} : vector<2x8x96xf32> to vector<2x8x8xf32>
    %67 = vector.extract_strided_slice %64 {offsets = [0, 0, 64], sizes = [2, 8, 8], strides = [1, 1, 1]} : vector<2x8x96xf32> to vector<2x8x8xf32>
    "tpu.trace_start"() <{level = 10 : i32, message = "bqd,bkd->bqk"}> : () -> ()
    %cst_36 = arith.constant dense<0.000000e+00> : vector<2x8x8xf32>
    %68 = tpu.matmul %65, %66, %cst_36 {dimension_numbers = #tpu.dot_dimension_numbers<[2], [2], [1], [1], [0, 0, 0, 1, 1, 1], [0], [0]>} : vector<2x8x8xf32>, vector<2x8x8xf32>, vector<2x8x8xf32> -> vector<2x8x8xf32>
    "tpu.trace_stop"() : () -> ()
    %cst_37 = arith.constant dense<0xFF800000> : vector<2x8xf32>
    %69 = vector.multi_reduction <maximumf>, %68, %cst_37 [2] : vector<2x8x8xf32> to vector<2x8xf32>
    %70 = vector.shape_cast %69 : vector<2x8xf32> to vector<2x8x1xf32>
    %71 = vector.broadcast %70 : vector<2x8x1xf32> to vector<2x8x8xf32>
    %72 = arith.subf %68, %71 : vector<2x8x8xf32>
    %73 = math.exp %72 : vector<2x8x8xf32>
    %cst_38 = arith.constant dense<0.000000e+00> : vector<2x8xf32>
    %74 = vector.multi_reduction <add>, %73, %cst_38 [2] : vector<2x8x8xf32> to vector<2x8xf32>
    %75 = vector.shape_cast %74 : vector<2x8xf32> to vector<2x8x1xf32>
    %76 = tpu.reciprocal %75 {approx = true} : vector<2x8x1xf32> -> vector<2x8x1xf32>
    %77 = vector.broadcast %76 : vector<2x8x1xf32> to vector<2x8x8xf32>
    %78 = arith.mulf %73, %77 : vector<2x8x8xf32>
    "tpu.trace_start"() <{level = 10 : i32, message = "bqk,bkd->bqd"}> : () -> ()
    %cst_39 = arith.constant dense<0.000000e+00> : vector<2x8x8xf32>
    %79 = tpu.matmul %78, %67, %cst_39 {dimension_numbers = #tpu.dot_dimension_numbers<[2], [1], [1], [2], [0, 0, 0, 1, 1, 2], [0], [0]>} : vector<2x8x8xf32>, vector<2x8x8xf32>, vector<2x8x8xf32> -> vector<2x8x8xf32>
    "tpu.trace_stop"() : () -> ()
    %80 = vector.extract_strided_slice %64 {offsets = [0, 0, 8], sizes = [2, 8, 8], strides = [1, 1, 1]} : vector<2x8x96xf32> to vector<2x8x8xf32>
    %81 = vector.extract_strided_slice %64 {offsets = [0, 0, 40], sizes = [2, 8, 8], strides = [1, 1, 1]} : vector<2x8x96xf32> to vector<2x8x8xf32>
    %82 = vector.extract_strided_slice %64 {offsets = [0, 0, 72], sizes = [2, 8, 8], strides = [1, 1, 1]} : vector<2x8x96xf32> to vector<2x8x8xf32>
    "tpu.trace_start"() <{level = 10 : i32, message = "bqd,bkd->bqk"}> : () -> ()
    %cst_40 = arith.constant dense<0.000000e+00> : vector<2x8x8xf32>
    %83 = tpu.matmul %80, %81, %cst_40 {dimension_numbers = #tpu.dot_dimension_numbers<[2], [2], [1], [1], [0, 0, 0, 1, 1, 1], [0], [0]>} : vector<2x8x8xf32>, vector<2x8x8xf32>, vector<2x8x8xf32> -> vector<2x8x8xf32>
    "tpu.trace_stop"() : () -> ()
    %cst_41 = arith.constant dense<0xFF800000> : vector<2x8xf32>
    %84 = vector.multi_reduction <maximumf>, %83, %cst_41 [2] : vector<2x8x8xf32> to vector<2x8xf32>
    %85 = vector.shape_cast %84 : vector<2x8xf32> to vector<2x8x1xf32>
    %86 = vector.broadcast %85 : vector<2x8x1xf32> to vector<2x8x8xf32>
    %87 = arith.subf %83, %86 : vector<2x8x8xf32>
    %88 = math.exp %87 : vector<2x8x8xf32>
    %cst_42 = arith.constant dense<0.000000e+00> : vector<2x8xf32>
    %89 = vector.multi_reduction <add>, %88, %cst_42 [2] : vector<2x8x8xf32> to vector<2x8xf32>
    %90 = vector.shape_cast %89 : vector<2x8xf32> to vector<2x8x1xf32>
    %91 = tpu.reciprocal %90 {approx = true} : vector<2x8x1xf32> -> vector<2x8x1xf32>
    %92 = vector.broadcast %91 : vector<2x8x1xf32> to vector<2x8x8xf32>
    %93 = arith.mulf %88, %92 : vector<2x8x8xf32>
    "tpu.trace_start"() <{level = 10 : i32, message = "bqk,bkd->bqd"}> : () -> ()
    %cst_43 = arith.constant dense<0.000000e+00> : vector<2x8x8xf32>
    %94 = tpu.matmul %93, %82, %cst_43 {dimension_numbers = #tpu.dot_dimension_numbers<[2], [1], [1], [2], [0, 0, 0, 1, 1, 2], [0], [0]>} : vector<2x8x8xf32>, vector<2x8x8xf32>, vector<2x8x8xf32> -> vector<2x8x8xf32>
    "tpu.trace_stop"() : () -> ()
    %95 = vector.extract_strided_slice %64 {offsets = [0, 0, 16], sizes = [2, 8, 8], strides = [1, 1, 1]} : vector<2x8x96xf32> to vector<2x8x8xf32>
    %96 = vector.extract_strided_slice %64 {offsets = [0, 0, 48], sizes = [2, 8, 8], strides = [1, 1, 1]} : vector<2x8x96xf32> to vector<2x8x8xf32>
    %97 = vector.extract_strided_slice %64 {offsets = [0, 0, 80], sizes = [2, 8, 8], strides = [1, 1, 1]} : vector<2x8x96xf32> to vector<2x8x8xf32>
    "tpu.trace_start"() <{level = 10 : i32, message = "bqd,bkd->bqk"}> : () -> ()
    %cst_44 = arith.constant dense<0.000000e+00> : vector<2x8x8xf32>
    %98 = tpu.matmul %95, %96, %cst_44 {dimension_numbers = #tpu.dot_dimension_numbers<[2], [2], [1], [1], [0, 0, 0, 1, 1, 1], [0], [0]>} : vector<2x8x8xf32>, vector<2x8x8xf32>, vector<2x8x8xf32> -> vector<2x8x8xf32>
    "tpu.trace_stop"() : () -> ()
    %cst_45 = arith.constant dense<0xFF800000> : vector<2x8xf32>
    %99 = vector.multi_reduction <maximumf>, %98, %cst_45 [2] : vector<2x8x8xf32> to vector<2x8xf32>
    %100 = vector.shape_cast %99 : vector<2x8xf32> to vector<2x8x1xf32>
    %101 = vector.broadcast %100 : vector<2x8x1xf32> to vector<2x8x8xf32>
    %102 = arith.subf %98, %101 : vector<2x8x8xf32>
    %103 = math.exp %102 : vector<2x8x8xf32>
    %cst_46 = arith.constant dense<0.000000e+00> : vector<2x8xf32>
    %104 = vector.multi_reduction <add>, %103, %cst_46 [2] : vector<2x8x8xf32> to vector<2x8xf32>
    %105 = vector.shape_cast %104 : vector<2x8xf32> to vector<2x8x1xf32>
    %106 = tpu.reciprocal %105 {approx = true} : vector<2x8x1xf32> -> vector<2x8x1xf32>
    %107 = vector.broadcast %106 : vector<2x8x1xf32> to vector<2x8x8xf32>
    %108 = arith.mulf %103, %107 : vector<2x8x8xf32>
    "tpu.trace_start"() <{level = 10 : i32, message = "bqk,bkd->bqd"}> : () -> ()
    %cst_47 = arith.constant dense<0.000000e+00> : vector<2x8x8xf32>
    %109 = tpu.matmul %108, %97, %cst_47 {dimension_numbers = #tpu.dot_dimension_numbers<[2], [1], [1], [2], [0, 0, 0, 1, 1, 2], [0], [0]>} : vector<2x8x8xf32>, vector<2x8x8xf32>, vector<2x8x8xf32> -> vector<2x8x8xf32>
    "tpu.trace_stop"() : () -> ()
    %110 = vector.extract_strided_slice %64 {offsets = [0, 0, 24], sizes = [2, 8, 8], strides = [1, 1, 1]} : vector<2x8x96xf32> to vector<2x8x8xf32>
    %111 = vector.extract_strided_slice %64 {offsets = [0, 0, 56], sizes = [2, 8, 8], strides = [1, 1, 1]} : vector<2x8x96xf32> to vector<2x8x8xf32>
    %112 = vector.extract_strided_slice %64 {offsets = [0, 0, 88], sizes = [2, 8, 8], strides = [1, 1, 1]} : vector<2x8x96xf32> to vector<2x8x8xf32>
    "tpu.trace_start"() <{level = 10 : i32, message = "bqd,bkd->bqk"}> : () -> ()
    %cst_48 = arith.constant dense<0.000000e+00> : vector<2x8x8xf32>
    %113 = tpu.matmul %110, %111, %cst_48 {dimension_numbers = #tpu.dot_dimension_numbers<[2], [2], [1], [1], [0, 0, 0, 1, 1, 1], [0], [0]>} : vector<2x8x8xf32>, vector<2x8x8xf32>, vector<2x8x8xf32> -> vector<2x8x8xf32>
    "tpu.trace_stop"() : () -> ()
    %cst_49 = arith.constant dense<0xFF800000> : vector<2x8xf32>
    %114 = vector.multi_reduction <maximumf>, %113, %cst_49 [2] : vector<2x8x8xf32> to vector<2x8xf32>
    %115 = vector.shape_cast %114 : vector<2x8xf32> to vector<2x8x1xf32>
    %116 = vector.broadcast %115 : vector<2x8x1xf32> to vector<2x8x8xf32>
    %117 = arith.subf %113, %116 : vector<2x8x8xf32>
    %118 = math.exp %117 : vector<2x8x8xf32>
    %cst_50 = arith.constant dense<0.000000e+00> : vector<2x8xf32>
    %119 = vector.multi_reduction <add>, %118, %cst_50 [2] : vector<2x8x8xf32> to vector<2x8xf32>
    %120 = vector.shape_cast %119 : vector<2x8xf32> to vector<2x8x1xf32>
    %121 = tpu.reciprocal %120 {approx = true} : vector<2x8x1xf32> -> vector<2x8x1xf32>
    %122 = vector.broadcast %121 : vector<2x8x1xf32> to vector<2x8x8xf32>
    %123 = arith.mulf %118, %122 : vector<2x8x8xf32>
    "tpu.trace_start"() <{level = 10 : i32, message = "bqk,bkd->bqd"}> : () -> ()
    %cst_51 = arith.constant dense<0.000000e+00> : vector<2x8x8xf32>
    %124 = tpu.matmul %123, %112, %cst_51 {dimension_numbers = #tpu.dot_dimension_numbers<[2], [1], [1], [2], [0, 0, 0, 1, 1, 2], [0], [0]>} : vector<2x8x8xf32>, vector<2x8x8xf32>, vector<2x8x8xf32> -> vector<2x8x8xf32>
    "tpu.trace_stop"() : () -> ()
    %125 = tpu.concatenate %79, %94, %109, %124 in 2 : vector<2x8x8xf32>, vector<2x8x8xf32>, vector<2x8x8xf32>, vector<2x8x8xf32> -> vector<2x8x32xf32>
    %126 = vector.shape_cast %125 : vector<2x8x32xf32> to vector<16x32xf32>
    %c0_52 = arith.constant 0 : index
    %c0_53 = arith.constant 0 : index
    %c0_54 = arith.constant 0 : index
    %127 = vector.load %arg13[%c0_52, %c0_53, %c0_54] : memref<2x32x32xf32, #tpu.memory_space<vmem>>, vector<1x32x32xf32>
    %128 = vector.shape_cast %127 : vector<1x32x32xf32> to vector<32x32xf32>
    %cst_55 = arith.constant dense<0.000000e+00> : vector<16x32xf32>
    %129 = tpu.matmul %126, %128, %cst_55 {dimension_numbers = #tpu.dot_dimension_numbers<[1], [0], [0], [1], [0, 0, 1, 1], [], []>} : vector<16x32xf32>, vector<32x32xf32>, vector<16x32xf32> -> vector<16x32xf32>
    %130 = arith.addf %30, %129 : vector<16x32xf32>
    %c0_56 = arith.constant 0 : index
    %c0_57 = arith.constant 0 : index
    %c0_58 = arith.constant 0 : index
    %131 = vector.load %arg14[%c0_56, %c0_57, %c0_58] : memref<2x1x32xf32, #tpu.memory_space<vmem>>, vector<1x1x32xf32>
    %132 = vector.shape_cast %131 : vector<1x1x32xf32> to vector<1x32xf32>
    %133 = vector.broadcast %132 : vector<1x32xf32> to vector<16x32xf32>
    %134 = arith.addf %130, %133 : vector<16x32xf32>
    %c0_59 = arith.constant 0 : index
    %c0_60 = arith.constant 0 : index
    %c0_61 = arith.constant 0 : index
    %135 = vector.load %arg15[%c0_59, %c0_60, %c0_61] : memref<2x1x32xf32, #tpu.memory_space<vmem>>, vector<1x1x32xf32>
    %136 = vector.shape_cast %135 : vector<1x1x32xf32> to vector<1x32xf32>
    %c0_62 = arith.constant 0 : index
    %c0_63 = arith.constant 0 : index
    %c0_64 = arith.constant 0 : index
    %137 = vector.load %arg16[%c0_62, %c0_63, %c0_64] : memref<2x1x32xf32, #tpu.memory_space<vmem>>, vector<1x1x32xf32>
    %138 = vector.shape_cast %137 : vector<1x1x32xf32> to vector<1x32xf32>
    %cst_65 = arith.constant dense<0.000000e+00> : vector<16xf32>
    %139 = vector.multi_reduction <add>, %134, %cst_65 [1] : vector<16x32xf32> to vector<16xf32>
    %140 = vector.shape_cast %139 : vector<16xf32> to vector<16x1xf32>
    %cst_66 = arith.constant 3.200000e+01 : f32
    %141 = vector.broadcast %cst_66 : f32 to vector<16x1xf32>
    %142 = arith.divf %140, %141 : vector<16x1xf32>
    %143 = vector.broadcast %142 : vector<16x1xf32> to vector<16x32xf32>
    %144 = arith.subf %134, %143 : vector<16x32xf32>
    %145 = arith.mulf %144, %144 : vector<16x32xf32>
    %cst_67 = arith.constant dense<0.000000e+00> : vector<16xf32>
    %146 = vector.multi_reduction <add>, %145, %cst_67 [1] : vector<16x32xf32> to vector<16xf32>
    %147 = vector.shape_cast %146 : vector<16xf32> to vector<16x1xf32>
    %cst_68 = arith.constant 3.200000e+01 : f32
    %148 = vector.broadcast %cst_68 : f32 to vector<16x1xf32>
    %149 = arith.divf %147, %148 : vector<16x1xf32>
    %150 = vector.broadcast %142 : vector<16x1xf32> to vector<16x32xf32>
    %151 = arith.subf %134, %150 : vector<16x32xf32>
    %cst_69 = arith.constant 9.99999974E-6 : f32
    %152 = vector.broadcast %cst_69 : f32 to vector<16x1xf32>
    %153 = arith.addf %149, %152 : vector<16x1xf32>
    %154 = math.rsqrt %153 : vector<16x1xf32>
    %155 = vector.broadcast %154 : vector<16x1xf32> to vector<16x32xf32>
    %156 = arith.mulf %151, %155 : vector<16x32xf32>
    %157 = vector.broadcast %136 : vector<1x32xf32> to vector<16x32xf32>
    %158 = arith.mulf %156, %157 : vector<16x32xf32>
    %159 = vector.broadcast %138 : vector<1x32xf32> to vector<16x32xf32>
    %160 = arith.addf %158, %159 : vector<16x32xf32>
    %c0_70 = arith.constant 0 : index
    %c0_71 = arith.constant 0 : index
    %c0_72 = arith.constant 0 : index
    %161 = vector.load %arg17[%c0_70, %c0_71, %c0_72] : memref<2x32x64xf32, #tpu.memory_space<vmem>>, vector<1x32x64xf32>
    %162 = vector.shape_cast %161 : vector<1x32x64xf32> to vector<32x64xf32>
    %cst_73 = arith.constant dense<0.000000e+00> : vector<16x64xf32>
    %163 = tpu.matmul %160, %162, %cst_73 {dimension_numbers = #tpu.dot_dimension_numbers<[1], [0], [0], [1], [0, 0, 1, 1], [], []>} : vector<16x32xf32>, vector<32x64xf32>, vector<16x64xf32> -> vector<16x64xf32>
    %c0_74 = arith.constant 0 : index
    %c0_75 = arith.constant 0 : index
    %c0_76 = arith.constant 0 : index
    %164 = vector.load %arg18[%c0_74, %c0_75, %c0_76] : memref<2x1x64xf32, #tpu.memory_space<vmem>>, vector<1x1x64xf32>
    %165 = vector.shape_cast %164 : vector<1x1x64xf32> to vector<1x64xf32>
    %166 = vector.broadcast %165 : vector<1x64xf32> to vector<16x64xf32>
    %167 = arith.addf %163, %166 : vector<16x64xf32>
    %cst_77 = arith.constant 5.000000e-01 : f32
    %168 = vector.broadcast %cst_77 : f32 to vector<16x64xf32>
    %169 = arith.mulf %168, %167 : vector<16x64xf32>
    %cst_78 = arith.constant 0.707106769 : f32
    %170 = vector.broadcast %cst_78 : f32 to vector<16x64xf32>
    %171 = arith.mulf %167, %170 : vector<16x64xf32>
    %172 = math.erf %171 : vector<16x64xf32>
    %cst_79 = arith.constant 1.000000e+00 : f32
    %173 = vector.broadcast %cst_79 : f32 to vector<16x64xf32>
    %174 = arith.addf %173, %172 : vector<16x64xf32>
    %175 = arith.mulf %169, %174 : vector<16x64xf32>
    %c0_80 = arith.constant 0 : index
    %c0_81 = arith.constant 0 : index
    %c0_82 = arith.constant 0 : index
    %176 = vector.load %arg19[%c0_80, %c0_81, %c0_82] : memref<2x64x32xf32, #tpu.memory_space<vmem>>, vector<1x64x32xf32>
    %177 = vector.shape_cast %176 : vector<1x64x32xf32> to vector<64x32xf32>
    %cst_83 = arith.constant dense<0.000000e+00> : vector<16x32xf32>
    %178 = tpu.matmul %175, %177, %cst_83 {dimension_numbers = #tpu.dot_dimension_numbers<[1], [0], [0], [1], [0, 0, 1, 1], [], []>} : vector<16x64xf32>, vector<64x32xf32>, vector<16x32xf32> -> vector<16x32xf32>
    %179 = arith.addf %134, %178 : vector<16x32xf32>
    %c0_84 = arith.constant 0 : index
    %c0_85 = arith.constant 0 : index
    %c0_86 = arith.constant 0 : index
    %180 = vector.load %arg20[%c0_84, %c0_85, %c0_86] : memref<2x1x32xf32, #tpu.memory_space<vmem>>, vector<1x1x32xf32>
    %181 = vector.shape_cast %180 : vector<1x1x32xf32> to vector<1x32xf32>
    %182 = vector.broadcast %181 : vector<1x32xf32> to vector<16x32xf32>
    %183 = arith.addf %179, %182 : vector<16x32xf32>
    %c1 = arith.constant 1 : index
    %c0_87 = arith.constant 0 : index
    %c0_88 = arith.constant 0 : index
    %184 = vector.load %arg9[%c1, %c0_87, %c0_88] : memref<2x1x32xf32, #tpu.memory_space<vmem>>, vector<1x1x32xf32>
    %185 = vector.shape_cast %184 : vector<1x1x32xf32> to vector<1x32xf32>
    %c1_89 = arith.constant 1 : index
    %c0_90 = arith.constant 0 : index
    %c0_91 = arith.constant 0 : index
    %186 = vector.load %arg10[%c1_89, %c0_90, %c0_91] : memref<2x1x32xf32, #tpu.memory_space<vmem>>, vector<1x1x32xf32>
    %187 = vector.shape_cast %186 : vector<1x1x32xf32> to vector<1x32xf32>
    %cst_92 = arith.constant dense<0.000000e+00> : vector<16xf32>
    %188 = vector.multi_reduction <add>, %183, %cst_92 [1] : vector<16x32xf32> to vector<16xf32>
    %189 = vector.shape_cast %188 : vector<16xf32> to vector<16x1xf32>
    %cst_93 = arith.constant 3.200000e+01 : f32
    %190 = vector.broadcast %cst_93 : f32 to vector<16x1xf32>
    %191 = arith.divf %189, %190 : vector<16x1xf32>
    %192 = vector.broadcast %191 : vector<16x1xf32> to vector<16x32xf32>
    %193 = arith.subf %183, %192 : vector<16x32xf32>
    %194 = arith.mulf %193, %193 : vector<16x32xf32>
    %cst_94 = arith.constant dense<0.000000e+00> : vector<16xf32>
    %195 = vector.multi_reduction <add>, %194, %cst_94 [1] : vector<16x32xf32> to vector<16xf32>
    %196 = vector.shape_cast %195 : vector<16xf32> to vector<16x1xf32>
    %cst_95 = arith.constant 3.200000e+01 : f32
    %197 = vector.broadcast %cst_95 : f32 to vector<16x1xf32>
    %198 = arith.divf %196, %197 : vector<16x1xf32>
    %199 = vector.broadcast %191 : vector<16x1xf32> to vector<16x32xf32>
    %200 = arith.subf %183, %199 : vector<16x32xf32>
    %cst_96 = arith.constant 9.99999974E-6 : f32
    %201 = vector.broadcast %cst_96 : f32 to vector<16x1xf32>
    %202 = arith.addf %198, %201 : vector<16x1xf32>
    %203 = math.rsqrt %202 : vector<16x1xf32>
    %204 = vector.broadcast %203 : vector<16x1xf32> to vector<16x32xf32>
    %205 = arith.mulf %200, %204 : vector<16x32xf32>
    %206 = vector.broadcast %185 : vector<1x32xf32> to vector<16x32xf32>
    %207 = arith.mulf %205, %206 : vector<16x32xf32>
    %208 = vector.broadcast %187 : vector<1x32xf32> to vector<16x32xf32>
    %209 = arith.addf %207, %208 : vector<16x32xf32>
    %c1_97 = arith.constant 1 : index
    %c0_98 = arith.constant 0 : index
    %c0_99 = arith.constant 0 : index
    %210 = vector.load %arg11[%c1_97, %c0_98, %c0_99] : memref<2x32x96xf32, #tpu.memory_space<vmem>>, vector<1x32x96xf32>
    %211 = vector.shape_cast %210 : vector<1x32x96xf32> to vector<32x96xf32>
    %cst_100 = arith.constant dense<0.000000e+00> : vector<16x96xf32>
    %212 = tpu.matmul %209, %211, %cst_100 {dimension_numbers = #tpu.dot_dimension_numbers<[1], [0], [0], [1], [0, 0, 1, 1], [], []>} : vector<16x32xf32>, vector<32x96xf32>, vector<16x96xf32> -> vector<16x96xf32>
    %c1_101 = arith.constant 1 : index
    %c0_102 = arith.constant 0 : index
    %c0_103 = arith.constant 0 : index
    %213 = vector.load %arg12[%c1_101, %c0_102, %c0_103] : memref<2x1x96xf32, #tpu.memory_space<vmem>>, vector<1x1x96xf32>
    %214 = vector.shape_cast %213 : vector<1x1x96xf32> to vector<1x96xf32>
    %215 = vector.broadcast %214 : vector<1x96xf32> to vector<16x96xf32>
    %216 = arith.addf %212, %215 : vector<16x96xf32>
    %217 = vector.shape_cast %216 : vector<16x96xf32> to vector<2x8x96xf32>
    %218 = vector.extract_strided_slice %217 {offsets = [0, 0, 0], sizes = [2, 8, 8], strides = [1, 1, 1]} : vector<2x8x96xf32> to vector<2x8x8xf32>
    %219 = vector.extract_strided_slice %217 {offsets = [0, 0, 32], sizes = [2, 8, 8], strides = [1, 1, 1]} : vector<2x8x96xf32> to vector<2x8x8xf32>
    %220 = vector.extract_strided_slice %217 {offsets = [0, 0, 64], sizes = [2, 8, 8], strides = [1, 1, 1]} : vector<2x8x96xf32> to vector<2x8x8xf32>
    "tpu.trace_start"() <{level = 10 : i32, message = "bqd,bkd->bqk"}> : () -> ()
    %cst_104 = arith.constant dense<0.000000e+00> : vector<2x8x8xf32>
    %221 = tpu.matmul %218, %219, %cst_104 {dimension_numbers = #tpu.dot_dimension_numbers<[2], [2], [1], [1], [0, 0, 0, 1, 1, 1], [0], [0]>} : vector<2x8x8xf32>, vector<2x8x8xf32>, vector<2x8x8xf32> -> vector<2x8x8xf32>
    "tpu.trace_stop"() : () -> ()
    %cst_105 = arith.constant dense<0xFF800000> : vector<2x8xf32>
    %222 = vector.multi_reduction <maximumf>, %221, %cst_105 [2] : vector<2x8x8xf32> to vector<2x8xf32>
    %223 = vector.shape_cast %222 : vector<2x8xf32> to vector<2x8x1xf32>
    %224 = vector.broadcast %223 : vector<2x8x1xf32> to vector<2x8x8xf32>
    %225 = arith.subf %221, %224 : vector<2x8x8xf32>
    %226 = math.exp %225 : vector<2x8x8xf32>
    %cst_106 = arith.constant dense<0.000000e+00> : vector<2x8xf32>
    %227 = vector.multi_reduction <add>, %226, %cst_106 [2] : vector<2x8x8xf32> to vector<2x8xf32>
    %228 = vector.shape_cast %227 : vector<2x8xf32> to vector<2x8x1xf32>
    %229 = tpu.reciprocal %228 {approx = true} : vector<2x8x1xf32> -> vector<2x8x1xf32>
    %230 = vector.broadcast %229 : vector<2x8x1xf32> to vector<2x8x8xf32>
    %231 = arith.mulf %226, %230 : vector<2x8x8xf32>
    "tpu.trace_start"() <{level = 10 : i32, message = "bqk,bkd->bqd"}> : () -> ()
    %cst_107 = arith.constant dense<0.000000e+00> : vector<2x8x8xf32>
    %232 = tpu.matmul %231, %220, %cst_107 {dimension_numbers = #tpu.dot_dimension_numbers<[2], [1], [1], [2], [0, 0, 0, 1, 1, 2], [0], [0]>} : vector<2x8x8xf32>, vector<2x8x8xf32>, vector<2x8x8xf32> -> vector<2x8x8xf32>
    "tpu.trace_stop"() : () -> ()
    %233 = vector.extract_strided_slice %217 {offsets = [0, 0, 8], sizes = [2, 8, 8], strides = [1, 1, 1]} : vector<2x8x96xf32> to vector<2x8x8xf32>
    %234 = vector.extract_strided_slice %217 {offsets = [0, 0, 40], sizes = [2, 8, 8], strides = [1, 1, 1]} : vector<2x8x96xf32> to vector<2x8x8xf32>
    %235 = vector.extract_strided_slice %217 {offsets = [0, 0, 72], sizes = [2, 8, 8], strides = [1, 1, 1]} : vector<2x8x96xf32> to vector<2x8x8xf32>
    "tpu.trace_start"() <{level = 10 : i32, message = "bqd,bkd->bqk"}> : () -> ()
    %cst_108 = arith.constant dense<0.000000e+00> : vector<2x8x8xf32>
    %236 = tpu.matmul %233, %234, %cst_108 {dimension_numbers = #tpu.dot_dimension_numbers<[2], [2], [1], [1], [0, 0, 0, 1, 1, 1], [0], [0]>} : vector<2x8x8xf32>, vector<2x8x8xf32>, vector<2x8x8xf32> -> vector<2x8x8xf32>
    "tpu.trace_stop"() : () -> ()
    %cst_109 = arith.constant dense<0xFF800000> : vector<2x8xf32>
    %237 = vector.multi_reduction <maximumf>, %236, %cst_109 [2] : vector<2x8x8xf32> to vector<2x8xf32>
    %238 = vector.shape_cast %237 : vector<2x8xf32> to vector<2x8x1xf32>
    %239 = vector.broadcast %238 : vector<2x8x1xf32> to vector<2x8x8xf32>
    %240 = arith.subf %236, %239 : vector<2x8x8xf32>
    %241 = math.exp %240 : vector<2x8x8xf32>
    %cst_110 = arith.constant dense<0.000000e+00> : vector<2x8xf32>
    %242 = vector.multi_reduction <add>, %241, %cst_110 [2] : vector<2x8x8xf32> to vector<2x8xf32>
    %243 = vector.shape_cast %242 : vector<2x8xf32> to vector<2x8x1xf32>
    %244 = tpu.reciprocal %243 {approx = true} : vector<2x8x1xf32> -> vector<2x8x1xf32>
    %245 = vector.broadcast %244 : vector<2x8x1xf32> to vector<2x8x8xf32>
    %246 = arith.mulf %241, %245 : vector<2x8x8xf32>
    "tpu.trace_start"() <{level = 10 : i32, message = "bqk,bkd->bqd"}> : () -> ()
    %cst_111 = arith.constant dense<0.000000e+00> : vector<2x8x8xf32>
    %247 = tpu.matmul %246, %235, %cst_111 {dimension_numbers = #tpu.dot_dimension_numbers<[2], [1], [1], [2], [0, 0, 0, 1, 1, 2], [0], [0]>} : vector<2x8x8xf32>, vector<2x8x8xf32>, vector<2x8x8xf32> -> vector<2x8x8xf32>
    "tpu.trace_stop"() : () -> ()
    %248 = vector.extract_strided_slice %217 {offsets = [0, 0, 16], sizes = [2, 8, 8], strides = [1, 1, 1]} : vector<2x8x96xf32> to vector<2x8x8xf32>
    %249 = vector.extract_strided_slice %217 {offsets = [0, 0, 48], sizes = [2, 8, 8], strides = [1, 1, 1]} : vector<2x8x96xf32> to vector<2x8x8xf32>
    %250 = vector.extract_strided_slice %217 {offsets = [0, 0, 80], sizes = [2, 8, 8], strides = [1, 1, 1]} : vector<2x8x96xf32> to vector<2x8x8xf32>
    "tpu.trace_start"() <{level = 10 : i32, message = "bqd,bkd->bqk"}> : () -> ()
    %cst_112 = arith.constant dense<0.000000e+00> : vector<2x8x8xf32>
    %251 = tpu.matmul %248, %249, %cst_112 {dimension_numbers = #tpu.dot_dimension_numbers<[2], [2], [1], [1], [0, 0, 0, 1, 1, 1], [0], [0]>} : vector<2x8x8xf32>, vector<2x8x8xf32>, vector<2x8x8xf32> -> vector<2x8x8xf32>
    "tpu.trace_stop"() : () -> ()
    %cst_113 = arith.constant dense<0xFF800000> : vector<2x8xf32>
    %252 = vector.multi_reduction <maximumf>, %251, %cst_113 [2] : vector<2x8x8xf32> to vector<2x8xf32>
    %253 = vector.shape_cast %252 : vector<2x8xf32> to vector<2x8x1xf32>
    %254 = vector.broadcast %253 : vector<2x8x1xf32> to vector<2x8x8xf32>
    %255 = arith.subf %251, %254 : vector<2x8x8xf32>
    %256 = math.exp %255 : vector<2x8x8xf32>
    %cst_114 = arith.constant dense<0.000000e+00> : vector<2x8xf32>
    %257 = vector.multi_reduction <add>, %256, %cst_114 [2] : vector<2x8x8xf32> to vector<2x8xf32>
    %258 = vector.shape_cast %257 : vector<2x8xf32> to vector<2x8x1xf32>
    %259 = tpu.reciprocal %258 {approx = true} : vector<2x8x1xf32> -> vector<2x8x1xf32>
    %260 = vector.broadcast %259 : vector<2x8x1xf32> to vector<2x8x8xf32>
    %261 = arith.mulf %256, %260 : vector<2x8x8xf32>
    "tpu.trace_start"() <{level = 10 : i32, message = "bqk,bkd->bqd"}> : () -> ()
    %cst_115 = arith.constant dense<0.000000e+00> : vector<2x8x8xf32>
    %262 = tpu.matmul %261, %250, %cst_115 {dimension_numbers = #tpu.dot_dimension_numbers<[2], [1], [1], [2], [0, 0, 0, 1, 1, 2], [0], [0]>} : vector<2x8x8xf32>, vector<2x8x8xf32>, vector<2x8x8xf32> -> vector<2x8x8xf32>
    "tpu.trace_stop"() : () -> ()
    %263 = vector.extract_strided_slice %217 {offsets = [0, 0, 24], sizes = [2, 8, 8], strides = [1, 1, 1]} : vector<2x8x96xf32> to vector<2x8x8xf32>
    %264 = vector.extract_strided_slice %217 {offsets = [0, 0, 56], sizes = [2, 8, 8], strides = [1, 1, 1]} : vector<2x8x96xf32> to vector<2x8x8xf32>
    %265 = vector.extract_strided_slice %217 {offsets = [0, 0, 88], sizes = [2, 8, 8], strides = [1, 1, 1]} : vector<2x8x96xf32> to vector<2x8x8xf32>
    "tpu.trace_start"() <{level = 10 : i32, message = "bqd,bkd->bqk"}> : () -> ()
    %cst_116 = arith.constant dense<0.000000e+00> : vector<2x8x8xf32>
    %266 = tpu.matmul %263, %264, %cst_116 {dimension_numbers = #tpu.dot_dimension_numbers<[2], [2], [1], [1], [0, 0, 0, 1, 1, 1], [0], [0]>} : vector<2x8x8xf32>, vector<2x8x8xf32>, vector<2x8x8xf32> -> vector<2x8x8xf32>
    "tpu.trace_stop"() : () -> ()
    %cst_117 = arith.constant dense<0xFF800000> : vector<2x8xf32>
    %267 = vector.multi_reduction <maximumf>, %266, %cst_117 [2] : vector<2x8x8xf32> to vector<2x8xf32>
    %268 = vector.shape_cast %267 : vector<2x8xf32> to vector<2x8x1xf32>
    %269 = vector.broadcast %268 : vector<2x8x1xf32> to vector<2x8x8xf32>
    %270 = arith.subf %266, %269 : vector<2x8x8xf32>
    %271 = math.exp %270 : vector<2x8x8xf32>
    %cst_118 = arith.constant dense<0.000000e+00> : vector<2x8xf32>
    %272 = vector.multi_reduction <add>, %271, %cst_118 [2] : vector<2x8x8xf32> to vector<2x8xf32>
    %273 = vector.shape_cast %272 : vector<2x8xf32> to vector<2x8x1xf32>
    %274 = tpu.reciprocal %273 {approx = true} : vector<2x8x1xf32> -> vector<2x8x1xf32>
    %275 = vector.broadcast %274 : vector<2x8x1xf32> to vector<2x8x8xf32>
    %276 = arith.mulf %271, %275 : vector<2x8x8xf32>
    "tpu.trace_start"() <{level = 10 : i32, message = "bqk,bkd->bqd"}> : () -> ()
    %cst_119 = arith.constant dense<0.000000e+00> : vector<2x8x8xf32>
    %277 = tpu.matmul %276, %265, %cst_119 {dimension_numbers = #tpu.dot_dimension_numbers<[2], [1], [1], [2], [0, 0, 0, 1, 1, 2], [0], [0]>} : vector<2x8x8xf32>, vector<2x8x8xf32>, vector<2x8x8xf32> -> vector<2x8x8xf32>
    "tpu.trace_stop"() : () -> ()
    %278 = tpu.concatenate %232, %247, %262, %277 in 2 : vector<2x8x8xf32>, vector<2x8x8xf32>, vector<2x8x8xf32>, vector<2x8x8xf32> -> vector<2x8x32xf32>
    %279 = vector.shape_cast %278 : vector<2x8x32xf32> to vector<16x32xf32>
    %c1_120 = arith.constant 1 : index
    %c0_121 = arith.constant 0 : index
    %c0_122 = arith.constant 0 : index
    %280 = vector.load %arg13[%c1_120, %c0_121, %c0_122] : memref<2x32x32xf32, #tpu.memory_space<vmem>>, vector<1x32x32xf32>
    %281 = vector.shape_cast %280 : vector<1x32x32xf32> to vector<32x32xf32>
    %cst_123 = arith.constant dense<0.000000e+00> : vector<16x32xf32>
    %282 = tpu.matmul %279, %281, %cst_123 {dimension_numbers = #tpu.dot_dimension_numbers<[1], [0], [0], [1], [0, 0, 1, 1], [], []>} : vector<16x32xf32>, vector<32x32xf32>, vector<16x32xf32> -> vector<16x32xf32>
    %283 = arith.addf %183, %282 : vector<16x32xf32>
    %c1_124 = arith.constant 1 : index
    %c0_125 = arith.constant 0 : index
    %c0_126 = arith.constant 0 : index
    %284 = vector.load %arg14[%c1_124, %c0_125, %c0_126] : memref<2x1x32xf32, #tpu.memory_space<vmem>>, vector<1x1x32xf32>
    %285 = vector.shape_cast %284 : vector<1x1x32xf32> to vector<1x32xf32>
    %286 = vector.broadcast %285 : vector<1x32xf32> to vector<16x32xf32>
    %287 = arith.addf %283, %286 : vector<16x32xf32>
    %c1_127 = arith.constant 1 : index
    %c0_128 = arith.constant 0 : index
    %c0_129 = arith.constant 0 : index
    %288 = vector.load %arg15[%c1_127, %c0_128, %c0_129] : memref<2x1x32xf32, #tpu.memory_space<vmem>>, vector<1x1x32xf32>
    %289 = vector.shape_cast %288 : vector<1x1x32xf32> to vector<1x32xf32>
    %c1_130 = arith.constant 1 : index
    %c0_131 = arith.constant 0 : index
    %c0_132 = arith.constant 0 : index
    %290 = vector.load %arg16[%c1_130, %c0_131, %c0_132] : memref<2x1x32xf32, #tpu.memory_space<vmem>>, vector<1x1x32xf32>
    %291 = vector.shape_cast %290 : vector<1x1x32xf32> to vector<1x32xf32>
    %cst_133 = arith.constant dense<0.000000e+00> : vector<16xf32>
    %292 = vector.multi_reduction <add>, %287, %cst_133 [1] : vector<16x32xf32> to vector<16xf32>
    %293 = vector.shape_cast %292 : vector<16xf32> to vector<16x1xf32>
    %cst_134 = arith.constant 3.200000e+01 : f32
    %294 = vector.broadcast %cst_134 : f32 to vector<16x1xf32>
    %295 = arith.divf %293, %294 : vector<16x1xf32>
    %296 = vector.broadcast %295 : vector<16x1xf32> to vector<16x32xf32>
    %297 = arith.subf %287, %296 : vector<16x32xf32>
    %298 = arith.mulf %297, %297 : vector<16x32xf32>
    %cst_135 = arith.constant dense<0.000000e+00> : vector<16xf32>
    %299 = vector.multi_reduction <add>, %298, %cst_135 [1] : vector<16x32xf32> to vector<16xf32>
    %300 = vector.shape_cast %299 : vector<16xf32> to vector<16x1xf32>
    %cst_136 = arith.constant 3.200000e+01 : f32
    %301 = vector.broadcast %cst_136 : f32 to vector<16x1xf32>
    %302 = arith.divf %300, %301 : vector<16x1xf32>
    %303 = vector.broadcast %295 : vector<16x1xf32> to vector<16x32xf32>
    %304 = arith.subf %287, %303 : vector<16x32xf32>
    %cst_137 = arith.constant 9.99999974E-6 : f32
    %305 = vector.broadcast %cst_137 : f32 to vector<16x1xf32>
    %306 = arith.addf %302, %305 : vector<16x1xf32>
    %307 = math.rsqrt %306 : vector<16x1xf32>
    %308 = vector.broadcast %307 : vector<16x1xf32> to vector<16x32xf32>
    %309 = arith.mulf %304, %308 : vector<16x32xf32>
    %310 = vector.broadcast %289 : vector<1x32xf32> to vector<16x32xf32>
    %311 = arith.mulf %309, %310 : vector<16x32xf32>
    %312 = vector.broadcast %291 : vector<1x32xf32> to vector<16x32xf32>
    %313 = arith.addf %311, %312 : vector<16x32xf32>
    %c1_138 = arith.constant 1 : index
    %c0_139 = arith.constant 0 : index
    %c0_140 = arith.constant 0 : index
    %314 = vector.load %arg17[%c1_138, %c0_139, %c0_140] : memref<2x32x64xf32, #tpu.memory_space<vmem>>, vector<1x32x64xf32>
    %315 = vector.shape_cast %314 : vector<1x32x64xf32> to vector<32x64xf32>
    %cst_141 = arith.constant dense<0.000000e+00> : vector<16x64xf32>
    %316 = tpu.matmul %313, %315, %cst_141 {dimension_numbers = #tpu.dot_dimension_numbers<[1], [0], [0], [1], [0, 0, 1, 1], [], []>} : vector<16x32xf32>, vector<32x64xf32>, vector<16x64xf32> -> vector<16x64xf32>
    %c1_142 = arith.constant 1 : index
    %c0_143 = arith.constant 0 : index
    %c0_144 = arith.constant 0 : index
    %317 = vector.load %arg18[%c1_142, %c0_143, %c0_144] : memref<2x1x64xf32, #tpu.memory_space<vmem>>, vector<1x1x64xf32>
    %318 = vector.shape_cast %317 : vector<1x1x64xf32> to vector<1x64xf32>
    %319 = vector.broadcast %318 : vector<1x64xf32> to vector<16x64xf32>
    %320 = arith.addf %316, %319 : vector<16x64xf32>
    %cst_145 = arith.constant 5.000000e-01 : f32
    %321 = vector.broadcast %cst_145 : f32 to vector<16x64xf32>
    %322 = arith.mulf %321, %320 : vector<16x64xf32>
    %cst_146 = arith.constant 0.707106769 : f32
    %323 = vector.broadcast %cst_146 : f32 to vector<16x64xf32>
    %324 = arith.mulf %320, %323 : vector<16x64xf32>
    %325 = math.erf %324 : vector<16x64xf32>
    %cst_147 = arith.constant 1.000000e+00 : f32
    %326 = vector.broadcast %cst_147 : f32 to vector<16x64xf32>
    %327 = arith.addf %326, %325 : vector<16x64xf32>
    %328 = arith.mulf %322, %327 : vector<16x64xf32>
    %c1_148 = arith.constant 1 : index
    %c0_149 = arith.constant 0 : index
    %c0_150 = arith.constant 0 : index
    %329 = vector.load %arg19[%c1_148, %c0_149, %c0_150] : memref<2x64x32xf32, #tpu.memory_space<vmem>>, vector<1x64x32xf32>
    %330 = vector.shape_cast %329 : vector<1x64x32xf32> to vector<64x32xf32>
    %cst_151 = arith.constant dense<0.000000e+00> : vector<16x32xf32>
    %331 = tpu.matmul %328, %330, %cst_151 {dimension_numbers = #tpu.dot_dimension_numbers<[1], [0], [0], [1], [0, 0, 1, 1], [], []>} : vector<16x64xf32>, vector<64x32xf32>, vector<16x32xf32> -> vector<16x32xf32>
    %332 = arith.addf %287, %331 : vector<16x32xf32>
    %c1_152 = arith.constant 1 : index
    %c0_153 = arith.constant 0 : index
    %c0_154 = arith.constant 0 : index
    %333 = vector.load %arg20[%c1_152, %c0_153, %c0_154] : memref<2x1x32xf32, #tpu.memory_space<vmem>>, vector<1x1x32xf32>
    %334 = vector.shape_cast %333 : vector<1x1x32xf32> to vector<1x32xf32>
    %335 = vector.broadcast %334 : vector<1x32xf32> to vector<16x32xf32>
    %336 = arith.addf %332, %335 : vector<16x32xf32>
    %c0_155 = arith.constant 0 : index
    %c0_156 = arith.constant 0 : index
    %337 = vector.load %arg24[%c0_155, %c0_156] : memref<16x32xf32, #tpu.memory_space<vmem>>, vector<16x32xf32>
    tpu.vector_store %arg24[%c0_155, %c0_156], %336 {strides = array<i32>} : memref<16x32xf32, #tpu.memory_space<vmem>>, vector<16x32xf32>,
    %c0_157 = arith.constant 0 : index
    %c0_158 = arith.constant 0 : index
    %338 = vector.load %arg21[%c0_157, %c0_158] : memref<32x16xf32, #tpu.memory_space<vmem>>, vector<32x16xf32>
    %cst_159 = arith.constant dense<0.000000e+00> : vector<16x16xf32>
    %339 = tpu.matmul %336, %338, %cst_159 {dimension_numbers = #tpu.dot_dimension_numbers<[1], [0], [0], [1], [0, 0, 1, 1], [], []>} : vector<16x32xf32>, vector<32x16xf32>, vector<16x16xf32> -> vector<16x16xf32>
    %c0_160 = arith.constant 0 : index
    %c0_161 = arith.constant 0 : index
    %340 = vector.load %arg22[%c0_160, %c0_161] : memref<1x16xf32, #tpu.memory_space<vmem>>, vector<1x16xf32>
    %341 = vector.broadcast %340 : vector<1x16xf32> to vector<16x16xf32>
    %342 = arith.addf %339, %341 : vector<16x16xf32>
    %c0_162 = arith.constant 0 : index
    %c0_163 = arith.constant 0 : index
    %343 = vector.load %arg23[%c0_162, %c0_163] : memref<16x16xf32, #tpu.memory_space<vmem>>, vector<16x16xf32>
    tpu.vector_store %arg23[%c0_162, %c0_163], %342 {strides = array<i32>} : memref<16x16xf32, #tpu.memory_space<vmem>>, vector<16x16xf32>,
    return
  }
}

</mosaic_0001>

<llo_original>
// kernel: tpu_custom_call.1
$region0: #{tpu_custom_call.1}
  #allocation0 [shape = 'u32[]', space=smem, size = 0x4, offset = 0x4, fixed_abs, tag = 'smem constant byte address 0x4 - core index']
  #allocation1 [shape = 'u32[144,128]{1,0:T(1,128)}', space=vmem, size = 0x12000, scoped, tag = 'internal scratch']
  %s0 = inlined_call_operand.vmem [shape: f32[16,16], index: 0, kind: input, shape index: {}]
  %s1 = inlined_call_operand.vmem [shape: f32[16,1], index: 1, kind: input, shape index: {}]
  %s2 = inlined_call_operand.vmem [shape: f32[16,1], index: 2, kind: input, shape index: {}]
  %s3 = inlined_call_operand.vmem [shape: f32[16,16], index: 3, kind: input, shape index: {}]
  %s4 = inlined_call_operand.hbm [shape: f32[1,32], index: 4, kind: input, shape index: {}]
  %s5 = inlined_call_operand.hbm [shape: f32[1,32], index: 5, kind: input, shape index: {}]
  %s6 = inlined_call_operand.hbm [shape: f32[16,32], index: 6, kind: input, shape index: {}]
  %s7 = inlined_call_operand.hbm [shape: f32[1,32], index: 7, kind: input, shape index: {}]
  %s8 = inlined_call_operand.hbm [shape: f32[8,32], index: 8, kind: input, shape index: {}]
  %s9 = inlined_call_operand.vmem [shape: f32[2,1,32], index: 9, kind: input, shape index: {}]
  %s10 = inlined_call_operand.vmem [shape: f32[2,1,32], index: 10, kind: input, shape index: {}]
  %s11 = inlined_call_operand.vmem [shape: f32[2,32,96], index: 11, kind: input, shape index: {}]
  %s12 = inlined_call_operand.vmem [shape: f32[2,1,96], index: 12, kind: input, shape index: {}]
  %s13 = inlined_call_operand.vmem [shape: f32[2,32,32], index: 13, kind: input, shape index: {}]
  %s14 = inlined_call_operand.hbm [shape: f32[2,1,32], index: 14, kind: input, shape index: {}]
  %s15 = inlined_call_operand.hbm [shape: f32[2,1,32], index: 15, kind: input, shape index: {}]
  %s16 = inlined_call_operand.hbm [shape: f32[2,1,32], index: 16, kind: input, shape index: {}]
  %s17 = inlined_call_operand.vmem [shape: f32[2,32,64], index: 17, kind: input, shape index: {}]
  %s18 = inlined_call_operand.hbm [shape: f32[2,1,64], index: 18, kind: input, shape index: {}]
  %s19 = inlined_call_operand.vmem [shape: f32[2,64,32], index: 19, kind: input, shape index: {}]
  %s20 = inlined_call_operand.hbm [shape: f32[2,1,32], index: 20, kind: input, shape index: {}]
  %s21 = inlined_call_operand.vmem [shape: f32[32,16], index: 21, kind: input, shape index: {}]
  %s22 = inlined_call_operand.vmem [shape: f32[1,16], index: 22, kind: input, shape index: {}]
  %s23 = inlined_call_operand.hbm [shape: f32[16,16], index: 23, kind: output, shape index: {0}]
  %s24 = inlined_call_operand.hbm [shape: f32[16,32], index: 24, kind: output, shape index: {1}]
  %25 = xla_tuple %s23, %s24
  %s26 = sld [smem:[#allocation0]]
  $region150: #{tpu_custom_call.1} parent=0
    _
  %s28 = ssub.s32 1, %s26
  %s29 = scalar_select 0, %s28, %s26
  $region1: #{tpu_custom_call.1} parent=0
    #allocation2 [shape = 'u8[512]{0}', space=vmem, size = 0x400, scoped, tag = 'input window, operand 4, single buffered']
    #allocation3 [shape = 's32[1]{0}', space=sflag, size = 0x4, scoped, tag = 'scoped memory for tpu_custom_call.1']
    #allocation4 [shape = 's32[1]{0}', space=sflag, size = 0x4, scoped, tag = 'scoped memory for tpu_custom_call.1']
    #allocation5 [shape = 'u8[512]{0}', space=vmem, size = 0x400, scoped, tag = 'input window, operand 5, single buffered']
    #allocation6 [shape = 's32[1]{0}', space=sflag, size = 0x4, scoped, tag = 'scoped memory for tpu_custom_call.1']
    #allocation7 [shape = 'u8[8192]{0}', space=vmem, size = 0x2000, scoped, tag = 'input window, operand 6, single buffered']
    #allocation8 [shape = 'u8[512]{0}', space=vmem, size = 0x400, scoped, tag = 'input window, operand 7, single buffered']
    #allocation9 [shape = 's32[1]{0}', space=sflag, size = 0x4, scoped, tag = 'scoped memory for tpu_custom_call.1']
    #allocation10 [shape = 'u8[4096]{0}', space=vmem, size = 0x1000, scoped, tag = 'input window, operand 8, single buffered']
    #allocation11 [shape = 'u8[1024]{0}', space=vmem, size = 0x400, scoped, tag = 'input window, operand 14, single buffered']
    #allocation12 [shape = 's32[1]{0}', space=sflag, size = 0x4, scoped, tag = 'scoped memory for tpu_custom_call.1']
    #allocation13 [shape = 'u8[1024]{0}', space=vmem, size = 0x400, scoped, tag = 'input window, operand 15, single buffered']
    #allocation14 [shape = 'u8[1024]{0}', space=vmem, size = 0x400, scoped, tag = 'input window, operand 16, single buffered']
    #allocation15 [shape = 's32[1]{0}', space=sflag, size = 0x4, scoped, tag = 'scoped memory for tpu_custom_call.1']
    #allocation16 [shape = 'u8[1024]{0}', space=vmem, size = 0x400, scoped, tag = 'input window, operand 18, single buffered']
    #allocation17 [shape = 'u8[1024]{0}', space=vmem, size = 0x400, scoped, tag = 'input window, operand 20, single buffered']
    #allocation18 [shape = 's32[1]{0}', space=sflag, size = 0x4, scoped, tag = 'scoped memory for tpu_custom_call.1']
    #allocation19 [shape = 'u8[8192]{0}', space=vmem, size = 0x2000, scoped, tag = 'output window, operand 0, single buffered']
    #allocation20 [shape = 'u8[8192]{0}', space=vmem, size = 0x2000, scoped, tag = 'output window, operand 1, single buffered']
    #allocation21 [shape = 's32[1]{0}', space=sflag, size = 0x4, scoped, tag = 'scoped memory for tpu_custom_call.1']
    %30 = vsyncpa [#allocation3], 0
    %31 = vsyncpa [#allocation6], 0
    %32 = vsyncpa [#allocation9], 0
    %33 = vsyncpa [#allocation12], 0
    %34 = vsyncpa [#allocation15], 0
    %35 = vsyncpa [#allocation18], 0
    %36 = vsyncpa [#allocation4], 0
    %37 = vsyncpa [#allocation21], 0
    // Predicated region
    $region2: #{tpu_custom_call.1} parent=1 // pred_check
      _
    $region3: #{tpu_custom_call.1} parent=1 // pred_check_branch
      %39 = sbr.rel (0) target = $region5
    $region4: #{tpu_custom_call.1} parent=1 // pred_region
      _
    $region5: #{tpu_custom_call.1} parent=1 // pred_fallthru
      _
    // Predicated region
    $region6: #{tpu_custom_call.1} parent=1 // pred_check
      _
    $region7: #{tpu_custom_call.1} parent=1 // pred_check_branch
      %41 = sbr.rel (0) target = $region9
    $region8: #{tpu_custom_call.1} parent=1 // pred_region
      _
    $region9: #{tpu_custom_call.1} parent=1 // pred_fallthru
      _
    // Predicated region
    $region10: #{tpu_custom_call.1} parent=1 // pred_check
      _
    $region11: #{tpu_custom_call.1} parent=1 // pred_check_branch
      %43 = sbr.rel (0) target = $region13
    $region12: #{tpu_custom_call.1} parent=1 // pred_region
      _
    $region13: #{tpu_custom_call.1} parent=1 // pred_fallthru
      _
    // Predicated region
    $region14: #{tpu_custom_call.1} parent=1 // pred_check
      _
    $region15: #{tpu_custom_call.1} parent=1 // pred_check_branch
      %45 = sbr.rel (0) target = $region17
    $region16: #{tpu_custom_call.1} parent=1 // pred_region
      _
    $region17: #{tpu_custom_call.1} parent=1 // pred_fallthru
      _
    // Predicated region
    $region18: #{tpu_custom_call.1} parent=1 // pred_check
      _
    $region19: #{tpu_custom_call.1} parent=1 // pred_check_branch
      %47 = sbr.rel (0) target = $region21
    $region20: #{tpu_custom_call.1} parent=1 // pred_region
      %s49 = ssub.s32 16, 16
      %50 = vsyncadd [#allocation3], %s49
      %s52 = sshll.u32 [#allocation2], 4
      %s53 = int_to_ptr.vmem [resolvable:$true] %s52
      %55 = dma.hbm_to_vmem [thread:$0]  %s4, 16, %s53, [#allocation3]
    $region21: #{tpu_custom_call.1} parent=1 // pred_fallthru
      _
    // Predicated region
    $region22: #{tpu_custom_call.1} parent=1 // pred_check
      _
    $region23: #{tpu_custom_call.1} parent=1 // pred_check_branch
      %57 = sbr.rel (0) target = $region25
    $region24: #{tpu_custom_call.1} parent=1 // pred_region
      %s59 = ssub.s32 16, 16
      %60 = vsyncadd [#allocation6], %s59
      %s62 = sshll.u32 [#allocation5], 4
      %s63 = int_to_ptr.vmem [resolvable:$true] %s62
      %65 = dma.hbm_to_vmem [thread:$0]  %s5, 16, %s63, [#allocation6]
    $region25: #{tpu_custom_call.1} parent=1 // pred_fallthru
      _
    // Predicated region
    $region26: #{tpu_custom_call.1} parent=1 // pred_check
      _
    $region27: #{tpu_custom_call.1} parent=1 // pred_check_branch
      %67 = sbr.rel (0) target = $region29
    $region28: #{tpu_custom_call.1} parent=1 // pred_region
      %s69 = ssub.s32 256, 256
      %70 = vsyncadd [#allocation6], %s69
      %s71 = sshll.u32 [#allocation7], 4
      %s72 = int_to_ptr.vmem [resolvable:$true] %s71
      %77 = dma.hbm_to_vmem [thread:$0]  %s6, 256, %s72, [#allocation6], 128, 128, 8
    $region29: #{tpu_custom_call.1} parent=1 // pred_fallthru
      _
    // Predicated region
    $region30: #{tpu_custom_call.1} parent=1 // pred_check
      _
    $region31: #{tpu_custom_call.1} parent=1 // pred_check_branch
      %79 = sbr.rel (0) target = $region33
    $region32: #{tpu_custom_call.1} parent=1 // pred_region
      %s81 = ssub.s32 16, 16
      %82 = vsyncadd [#allocation9], %s81
      %s84 = sshll.u32 [#allocation8], 4
      %s85 = int_to_ptr.vmem [resolvable:$true] %s84
      %87 = dma.hbm_to_vmem [thread:$0]  %s7, 16, %s85, [#allocation9]
    $region33: #{tpu_custom_call.1} parent=1 // pred_fallthru
      _
    // Predicated region
    $region34: #{tpu_custom_call.1} parent=1 // pred_check
      _
    $region35: #{tpu_custom_call.1} parent=1 // pred_check_branch
      %89 = sbr.rel (0) target = $region37
    $region36: #{tpu_custom_call.1} parent=1 // pred_region
      %s91 = ssub.s32 128, 128
      %92 = vsyncadd [#allocation9], %s91
      %s94 = sshll.u32 [#allocation10], 4
      %s95 = int_to_ptr.vmem [resolvable:$true] %s94
      %97 = dma.hbm_to_vmem [thread:$0]  %s8, 128, %s95, [#allocation9]
    $region37: #{tpu_custom_call.1} parent=1 // pred_fallthru
      _
    // Predicated region
    $region38: #{tpu_custom_call.1} parent=1 // pred_check
      _
    $region39: #{tpu_custom_call.1} parent=1 // pred_check_branch
      %99 = sbr.rel (0) target = $region41
    $region40: #{tpu_custom_call.1} parent=1 // pred_region
      _
    $region41: #{tpu_custom_call.1} parent=1 // pred_fallthru
      _
    // Predicated region
    $region42: #{tpu_custom_call.1} parent=1 // pred_check
      _
    $region43: #{tpu_custom_call.1} parent=1 // pred_check_branch
      %101 = sbr.rel (0) target = $region45
    $region44: #{tpu_custom_call.1} parent=1 // pred_region
      _
    $region45: #{tpu_custom_call.1} parent=1 // pred_fallthru
      _
    // Predicated region
    $region46: #{tpu_custom_call.1} parent=1 // pred_check
      _
    $region47: #{tpu_custom_call.1} parent=1 // pred_check_branch
      %103 = sbr.rel (0) target = $region49
    $region48: #{tpu_custom_call.1} parent=1 // pred_region
      _
    $region49: #{tpu_custom_call.1} parent=1 // pred_fallthru
      _
    // Predicated region
    $region50: #{tpu_custom_call.1} parent=1 // pred_check
      _
    $region51: #{tpu_custom_call.1} parent=1 // pred_check_branch
      %105 = sbr.rel (0) target = $region53
    $region52: #{tpu_custom_call.1} parent=1 // pred_region
      _
    $region53: #{tpu_custom_call.1} parent=1 // pred_fallthru
      _
    // Predicated region
    $region54: #{tpu_custom_call.1} parent=1 // pred_check
      _
    $region55: #{tpu_custom_call.1} parent=1 // pred_check_branch
      %107 = sbr.rel (0) target = $region57
    $region56: #{tpu_custom_call.1} parent=1 // pred_region
      _
    $region57: #{tpu_custom_call.1} parent=1 // pred_fallthru
      _
    // Predicated region
    $region58: #{tpu_custom_call.1} parent=1 // pred_check
      _
    $region59: #{tpu_custom_call.1} parent=1 // pred_check_branch
      %109 = sbr.rel (0) target = $region61
    $region60: #{tpu_custom_call.1} parent=1 // pred_region
      %s111 = ssub.s32 32, 32
      %112 = vsyncadd [#allocation12], %s111
      %s113 = sshll.u32 [#allocation11], 4
      %s114 = int_to_ptr.vmem [resolvable:$true] %s113
      %119 = dma.hbm_to_vmem [thread:$0]  %s14, 32, %s114, [#allocation12], 16, 16, 1
    $region61: #{tpu_custom_call.1} parent=1 // pred_fallthru
      _
    // Predicated region
    $region62: #{tpu_custom_call.1} parent=1 // pred_check
      _
    $region63: #{tpu_custom_call.1} parent=1 // pred_check_branch
      %121 = sbr.rel (0) target = $region65
    $region64: #{tpu_custom_call.1} parent=1 // pred_region
      %s123 = ssub.s32 32, 32
      %124 = vsyncadd [#allocation12], %s123
      %s125 = sshll.u32 [#allocation13], 4
      %s126 = int_to_ptr.vmem [resolvable:$true] %s125
      %131 = dma.hbm_to_vmem [thread:$0]  %s15, 32, %s126, [#allocation12], 16, 16, 1
    $region65: #{tpu_custom_call.1} parent=1 // pred_fallthru
      _
    // Predicated region
    $region66: #{tpu_custom_call.1} parent=1 // pred_check
      _
    $region67: #{tpu_custom_call.1} parent=1 // pred_check_branch
      %133 = sbr.rel (0) target = $region69
    $region68: #{tpu_custom_call.1} parent=1 // pred_region
      %s135 = ssub.s32 32, 32
      %136 = vsyncadd [#allocation15], %s135
      %s137 = sshll.u32 [#allocation14], 4
      %s138 = int_to_ptr.vmem [resolvable:$true] %s137
      %143 = dma.hbm_to_vmem [thread:$0]  %s16, 32, %s138, [#allocation15], 16, 16, 1
    $region69: #{tpu_custom_call.1} parent=1 // pred_fallthru
      _
    // Predicated region
    $region70: #{tpu_custom_call.1} parent=1 // pred_check
      _
    $region71: #{tpu_custom_call.1} parent=1 // pred_check_branch
      %145 = sbr.rel (0) target = $region73
    $region72: #{tpu_custom_call.1} parent=1 // pred_region
      _
    $region73: #{tpu_custom_call.1} parent=1 // pred_fallthru
      _
    // Predicated region
    $region74: #{tpu_custom_call.1} parent=1 // pred_check
      _
    $region75: #{tpu_custom_call.1} parent=1 // pred_check_branch
      %147 = sbr.rel (0) target = $region77
    $region76: #{tpu_custom_call.1} parent=1 // pred_region
      %s149 = ssub.s32 32, 32
      %150 = vsyncadd [#allocation15], %s149
      %s151 = sshll.u32 [#allocation16], 4
      %s152 = int_to_ptr.vmem [resolvable:$true] %s151
      %157 = dma.hbm_to_vmem [thread:$0]  %s18, 32, %s152, [#allocation15], 16, 16, 1
    $region77: #{tpu_custom_call.1} parent=1 // pred_fallthru
      _
    // Predicated region
    $region78: #{tpu_custom_call.1} parent=1 // pred_check
      _
    $region79: #{tpu_custom_call.1} parent=1 // pred_check_branch
      %159 = sbr.rel (0) target = $region81
    $region80: #{tpu_custom_call.1} parent=1 // pred_region
      _
    $region81: #{tpu_custom_call.1} parent=1 // pred_fallthru
      _
    // Predicated region
    $region82: #{tpu_custom_call.1} parent=1 // pred_check
      _
    $region83: #{tpu_custom_call.1} parent=1 // pred_check_branch
      %161 = sbr.rel (0) target = $region85
    $region84: #{tpu_custom_call.1} parent=1 // pred_region
      %s163 = ssub.s32 32, 32
      %164 = vsyncadd [#allocation18], %s163
      %s165 = sshll.u32 [#allocation17], 4
      %s166 = int_to_ptr.vmem [resolvable:$true] %s165
      %171 = dma.hbm_to_vmem [thread:$0]  %s20, 32, %s166, [#allocation18], 16, 16, 1
    $region85: #{tpu_custom_call.1} parent=1 // pred_fallthru
      _
    // Predicated region
    $region86: #{tpu_custom_call.1} parent=1 // pred_check
      _
    $region87: #{tpu_custom_call.1} parent=1 // pred_check_branch
      %173 = sbr.rel (0) target = $region89
    $region88: #{tpu_custom_call.1} parent=1 // pred_region
      _
    $region89: #{tpu_custom_call.1} parent=1 // pred_fallthru
      _
    // Predicated region
    $region90: #{tpu_custom_call.1} parent=1 // pred_check
      _
    $region91: #{tpu_custom_call.1} parent=1 // pred_check_branch
      %175 = sbr.rel (0) target = $region93
    $region92: #{tpu_custom_call.1} parent=1 // pred_region
      _
    $region93: #{tpu_custom_call.1} parent=1 // pred_fallthru
      _
    // Predicated region
    $region94: #{tpu_custom_call.1} parent=1 // pred_check
      _
    $region95: #{tpu_custom_call.1} parent=1 // pred_check_branch
      %177 = sbr.rel (0) target = $region97
    $region96: #{tpu_custom_call.1} parent=1 // pred_region
      %178 = dma.done [#allocation3], 16
    $region97: #{tpu_custom_call.1} parent=1 // pred_fallthru
      _
    // Predicated region
    $region98: #{tpu_custom_call.1} parent=1 // pred_check
      _
    $region99: #{tpu_custom_call.1} parent=1 // pred_check_branch
      %180 = sbr.rel (0) target = $region101
    $region100: #{tpu_custom_call.1} parent=1 // pred_region
      %181 = dma.done [#allocation6], 16
    $region101: #{tpu_custom_call.1} parent=1 // pred_fallthru
      _
    // Predicated region
    $region102: #{tpu_custom_call.1} parent=1 // pred_check
      _
    $region103: #{tpu_custom_call.1} parent=1 // pred_check_branch
      %183 = sbr.rel (0) target = $region105
    $region104: #{tpu_custom_call.1} parent=1 // pred_region
      %184 = dma.done [#allocation6], 256
    $region105: #{tpu_custom_call.1} parent=1 // pred_fallthru
      _
    // Predicated region
    $region106: #{tpu_custom_call.1} parent=1 // pred_check
      _
    $region107: #{tpu_custom_call.1} parent=1 // pred_check_branch
      %186 = sbr.rel (0) target = $region109
    $region108: #{tpu_custom_call.1} parent=1 // pred_region
      %187 = dma.done [#allocation9], 16
    $region109: #{tpu_custom_call.1} parent=1 // pred_fallthru
      _
    // Predicated region
    $region110: #{tpu_custom_call.1} parent=1 // pred_check
      _
    $region111: #{tpu_custom_call.1} parent=1 // pred_check_branch
      %189 = sbr.rel (0) target = $region113
    $region112: #{tpu_custom_call.1} parent=1 // pred_region
      %190 = dma.done [#allocation9], 128
    $region113: #{tpu_custom_call.1} parent=1 // pred_fallthru
      _
    // Predicated region
    $region114: #{tpu_custom_call.1} parent=1 // pred_check
      _
    $region115: #{tpu_custom_call.1} parent=1 // pred_check_branch
      %192 = sbr.rel (0) target = $region117
    $region116: #{tpu_custom_call.1} parent=1 // pred_region
      %193 = dma.done [#allocation12], 32
    $region117: #{tpu_custom_call.1} parent=1 // pred_fallthru
      _
    // Predicated region
    $region118: #{tpu_custom_call.1} parent=1 // pred_check
      _
    $region119: #{tpu_custom_call.1} parent=1 // pred_check_branch
      %195 = sbr.rel (0) target = $region121
    $region120: #{tpu_custom_call.1} parent=1 // pred_region
      %196 = dma.done [#allocation12], 32
    $region121: #{tpu_custom_call.1} parent=1 // pred_fallthru
      _
    // Predicated region
    $region122: #{tpu_custom_call.1} parent=1 // pred_check
      _
    $region123: #{tpu_custom_call.1} parent=1 // pred_check_branch
      %198 = sbr.rel (0) target = $region125
    $region124: #{tpu_custom_call.1} parent=1 // pred_region
      %199 = dma.done [#allocation15], 32
    $region125: #{tpu_custom_call.1} parent=1 // pred_fallthru
      _
    // Predicated region
    $region126: #{tpu_custom_call.1} parent=1 // pred_check
      _
    $region127: #{tpu_custom_call.1} parent=1 // pred_check_branch
      %201 = sbr.rel (0) target = $region129
    $region128: #{tpu_custom_call.1} parent=1 // pred_region
      %202 = dma.done [#allocation15], 32
    $region129: #{tpu_custom_call.1} parent=1 // pred_fallthru
      _
    // Predicated region
    $region130: #{tpu_custom_call.1} parent=1 // pred_check
      _
    $region131: #{tpu_custom_call.1} parent=1 // pred_check_branch
      %204 = sbr.rel (0) target = $region133
    $region132: #{tpu_custom_call.1} parent=1 // pred_region
      %205 = dma.done [#allocation18], 32
    $region133: #{tpu_custom_call.1} parent=1 // pred_fallthru
      _
    %v206 = vld [vmem:[#allocation7] sm:$0xff]
    %v207 = vld [vmem:[#allocation7 + $0x8] sm:$0xff]
    %v208 = vld [vmem:[#allocation8] sm:$0x1]
    %v209 = vld [vmem:[%s0] sm:$0xff]
    %v210 = vld [vmem:[%s0 + $0x8] sm:$0xff]
    %v212 = vlaneseq
    %v213 = vshrl.u32 %v212, 7
    %v214 = vsub.s32 0, %v213
    %v215 = vrot.slane %v208, %v214
    %vm217 = vcmask 130048
    %v219 = vsel %vm217, %v209, 0
    %v222 = vsel %vm217, %v210, 0
    %224 = vmatprep.subr.mxu0 0.0
    %225 = vmatpush1.msra.mxu0 0.0
    %226 = vmatprep.subr.mxu0 0.0
    %227 = vmatpush1.msra.mxu0 0.0
    %228 = vmatprep.subr.mxu0 0.0
    %229 = vmatpush1.msra.mxu0 0.0
    %230 = vmatprep.subr.mxu0 0.0
    %231 = vmatpush1.msra.mxu0 0.0
    %232 = vmatprep.subr.mxu0 0.0
    %233 = vmatpush1.msra.mxu0 0.0
    %234 = vmatprep.subr.mxu0 0.0
    %235 = vmatpush1.msra.mxu0 0.0
    %236 = vmatprep.subr.mxu0 0.0
    %237 = vmatpush1.msra.mxu0 0.0
    %238 = vmatprep.subr.mxu0 0.0
    %239 = vmatpush1.msra.mxu0 0.0
    %240 = vmatprep.subr.mxu0 0.0
    %241 = vmatpush1.msra.mxu0 0.0
    %242 = vmatprep.subr.mxu0 0.0
    %243 = vmatpush1.msra.mxu0 0.0
    %244 = vmatprep.subr.mxu0 0.0
    %245 = vmatpush1.msra.mxu0 0.0
    %246 = vmatprep.subr.mxu0 0.0
    %247 = vmatpush1.msra.mxu0 0.0
    %248 = vmatprep.subr.mxu0 0.0
    %249 = vmatpush1.msra.mxu0 0.0
    %250 = vmatprep.subr.mxu0 0.0
    %251 = vmatpush1.msra.mxu0 0.0
    %252 = vmatprep.subr.mxu0 0.0
    %253 = vmatpush1.msra.mxu0 %v207
    %254 = vmatprep.subr.mxu0 0.0
    %255 = vmatpush1.msra.mxu0 %v206
    %256 = vmatprep.subr.mxu0 0.0
    %257 = vmatpush2.msra.mxu0 0.0
    %258 = vmatprep.subr.mxu0 0.0
    %259 = vmatpush2.msra.mxu0 0.0
    %260 = vmatprep.subr.mxu0 0.0
    %261 = vmatpush2.msra.mxu0 0.0
    %262 = vmatprep.subr.mxu0 0.0
    %263 = vmatpush2.msra.mxu0 0.0
    %264 = vmatprep.subr.mxu0 0.0
    %265 = vmatpush2.msra.mxu0 0.0
    %266 = vmatprep.subr.mxu0 0.0
    %267 = vmatpush2.msra.mxu0 0.0
    %268 = vmatprep.subr.mxu0 0.0
    %269 = vmatpush2.msra.mxu0 0.0
    %270 = vmatprep.subr.mxu0 0.0
    %271 = vmatpush2.msra.mxu0 0.0
    %272 = vmatprep.subr.mxu0 0.0
    %273 = vmatpush2.msra.mxu0 0.0
    %274 = vmatprep.subr.mxu0 0.0
    %275 = vmatpush2.msra.mxu0 0.0
    %276 = vmatprep.subr.mxu0 0.0
    %277 = vmatpush2.msra.mxu0 0.0
    %278 = vmatprep.subr.mxu0 0.0
    %279 = vmatpush2.msra.mxu0 0.0
    %280 = vmatprep.subr.mxu0 0.0
    %281 = vmatpush2.msra.mxu0 0.0
    %282 = vmatprep.subr.mxu0 0.0
    %283 = vmatpush2.msra.mxu0 0.0
    %284 = vmatprep.subr.mxu0 0.0
    %285 = vmatpush2.msra.mxu0 0.0
    %286 = vmatprep.subr.mxu0 0.0
    %287 = vmatpush2.msra.mxu0 0.0
    %288 = vmatprep.mubr.f32.mxu0 0.0
    %289 = vmatmul.mubr.f32.gmra.mxu0 %v219
    %v290 = vpop.f32.mrf.mxu0
    %v291 = vadd.f32 %v215, %v290
    %v292 = vpop.f32.mrf.mxu0
    %293 = vmatprep.mubr.f32.mxu0 0.0
    %294 = vmatmul.mubr.f32.gmra.mxu0 %v222
    %v295 = vpop.f32.mrf.mxu0
    %v296 = vadd.f32 %v215, %v295
    %v297 = vpop.f32.mrf.mxu0
    %298 = vdwg.mxu0
    %v299 = vld [vmem:[%s1] sm:$0xff]
    %v300 = vld [vmem:[%s1 + $0x8] sm:$0xff]
    %v301 = vld [vmem:[#allocation2] sm:$0x1]
    %v303 = vlaneseq
    %v304 = vshrl.u32 %v303, 7
    %v305 = vsub.s32 0, %v304
    %v306 = vrot.slane %v301, %v305
    %v308 = vsub.f32 %v306, %v291
    %v309 = vsub.f32 %v306, %v296
    %311 = vset.pattern.permute.xlu0 0
    %312 = vperm.xlu0 %311, %v299
    %v313 = vpop.permute.xlu0 %312
    %316 = vset.pattern.permute.xlu0 0
    %317 = vperm.xlu0 %316, %v300
    %v318 = vpop.permute.xlu0 %317
    %v320 = vmul.f32 %v313, %v308
    %v321 = vmul.f32 %v318, %v309
    %v322 = vadd.f32 %v291, %v320
    %v323 = vadd.f32 %v296, %v321
    %v324 = vld [vmem:[%s3] sm:$0xff]
    %v325 = vld [vmem:[%s3 + $0x8] sm:$0xff]
    %v327 = vsel %vm217, %v324, 0
    %v330 = vsel %vm217, %v325, 0
    %332 = vmatprep.subr.mxu0 0.0
    %333 = vmatpush1.msra.mxu0 0.0
    %334 = vmatprep.subr.mxu0 0.0
    %335 = vmatpush1.msra.mxu0 0.0
    %336 = vmatprep.subr.mxu0 0.0
    %337 = vmatpush1.msra.mxu0 0.0
    %338 = vmatprep.subr.mxu0 0.0
    %339 = vmatpush1.msra.mxu0 0.0
    %340 = vmatprep.subr.mxu0 0.0
    %341 = vmatpush1.msra.mxu0 0.0
    %342 = vmatprep.subr.mxu0 0.0
    %343 = vmatpush1.msra.mxu0 0.0
    %344 = vmatprep.subr.mxu0 0.0
    %345 = vmatpush1.msra.mxu0 0.0
    %346 = vmatprep.subr.mxu0 0.0
    %347 = vmatpush1.msra.mxu0 0.0
    %348 = vmatprep.subr.mxu0 0.0
    %349 = vmatpush1.msra.mxu0 0.0
    %350 = vmatprep.subr.mxu0 0.0
    %351 = vmatpush1.msra.mxu0 0.0
    %352 = vmatprep.subr.mxu0 0.0
    %353 = vmatpush1.msra.mxu0 0.0
    %354 = vmatprep.subr.mxu0 0.0
    %355 = vmatpush1.msra.mxu0 0.0
    %356 = vmatprep.subr.mxu0 0.0
    %357 = vmatpush1.msra.mxu0 0.0
    %358 = vmatprep.subr.mxu0 0.0
    %359 = vmatpush1.msra.mxu0 0.0
    %360 = vmatprep.subr.mxu0 0.0
    %361 = vmatpush1.msra.mxu0 %v207
    %362 = vmatprep.subr.mxu0 0.0
    %363 = vmatpush1.msra.mxu0 %v206
    %364 = vmatprep.subr.mxu0 0.0
    %365 = vmatpush2.msra.mxu0 0.0
    %366 = vmatprep.subr.mxu0 0.0
    %367 = vmatpush2.msra.mxu0 0.0
    %368 = vmatprep.subr.mxu0 0.0
    %369 = vmatpush2.msra.mxu0 0.0
    %370 = vmatprep.subr.mxu0 0.0
    %371 = vmatpush2.msra.mxu0 0.0
    %372 = vmatprep.subr.mxu0 0.0
    %373 = vmatpush2.msra.mxu0 0.0
    %374 = vmatprep.subr.mxu0 0.0
    %375 = vmatpush2.msra.mxu0 0.0
    %376 = vmatprep.subr.mxu0 0.0
    %377 = vmatpush2.msra.mxu0 0.0
    %378 = vmatprep.subr.mxu0 0.0
    %379 = vmatpush2.msra.mxu0 0.0
    %380 = vmatprep.subr.mxu0 0.0
    %381 = vmatpush2.msra.mxu0 0.0
    %382 = vmatprep.subr.mxu0 0.0
    %383 = vmatpush2.msra.mxu0 0.0
    %384 = vmatprep.subr.mxu0 0.0
    %385 = vmatpush2.msra.mxu0 0.0
    %386 = vmatprep.subr.mxu0 0.0
    %387 = vmatpush2.msra.mxu0 0.0
    %388 = vmatprep.subr.mxu0 0.0
    %389 = vmatpush2.msra.mxu0 0.0
    %390 = vmatprep.subr.mxu0 0.0
    %391 = vmatpush2.msra.mxu0 0.0
    %392 = vmatprep.subr.mxu0 0.0
    %393 = vmatpush2.msra.mxu0 0.0
    %394 = vmatprep.subr.mxu0 0.0
    %395 = vmatpush2.msra.mxu0 0.0
    %396 = vmatprep.mubr.f32.mxu0 0.0
    %397 = vmatmul.mubr.f32.gmra.mxu0 %v327
    %v398 = vpop.f32.mrf.mxu0
    %v399 = vadd.f32 %v215, %v398
    %v400 = vpop.f32.mrf.mxu0
    %401 = vmatprep.mubr.f32.mxu0 0.0
    %402 = vmatmul.mubr.f32.gmra.mxu0 %v330
    %v403 = vpop.f32.mrf.mxu0
    %v404 = vadd.f32 %v215, %v403
    %v405 = vpop.f32.mrf.mxu0
    %406 = vdwg.mxu0
    %v407 = vld [vmem:[#allocation5] sm:$0x1]
    %v409 = vlaneseq
    %v410 = vshrl.u32 %v409, 7
    %v411 = vsub.s32 0, %v410
    %v412 = vrot.slane %v407, %v411
    %v414 = vadd.f32 %v399, %v412
    %v415 = vadd.f32 %v404, %v412
    %v416 = vld [vmem:[%s2] sm:$0xff]
    %v417 = vld [vmem:[%s2 + $0x8] sm:$0xff]
    %v418 = vsub.f32 %v414, %v322
    %v419 = vsub.f32 %v415, %v323
    %421 = vset.pattern.permute.xlu0 0
    %422 = vperm.xlu0 %421, %v416
    %v423 = vpop.permute.xlu0 %422
    %426 = vset.pattern.permute.xlu0 0
    %427 = vperm.xlu0 %426, %v417
    %v428 = vpop.permute.xlu0 %427
    %v430 = vmul.f32 %v423, %v418
    %v431 = vmul.f32 %v428, %v419
    %v432 = vadd.f32 %v322, %v430
    %v433 = vadd.f32 %v323, %v431
    %v434 = vld [vmem:[#allocation10] sm:$0xff]
    %v435 = vadd.f32 %v432, %v434
    %v436 = vadd.f32 %v433, %v434
    %v437 = vld [vmem:[%s9] sm:$0x1]
    %v438 = vld [vmem:[%s10] sm:$0x1]
    %vm439 = vcmask 261120
    %v440 = vsel %vm439, %v435, 0.0
    %441 = vadd.xlane.f32.xlu0 %v440
    %v442 = vpop.xlane.xlu0 %441
    %v443 = vsel %vm439, %v436, 0.0
    %444 = vadd.xlane.f32.xlu0 %v443
    %v445 = vpop.xlane.xlu0 %444
    %v446 = vrcp.pop 32.0
    %v447 = vmul.f32 %v442, %v446
    %v448 = vmul.f32 %v445, %v446
    %v449 = vsub.f32 %v435, %v447
    %v450 = vsub.f32 %v436, %v448
    %v451 = vmul.f32 %v449, %v449
    %v452 = vmul.f32 %v450, %v450
    %v453 = vsel %vm439, %v451, 0.0
    %454 = vadd.xlane.f32.xlu0 %v453
    %v455 = vpop.xlane.xlu0 %454
    %v456 = vsel %vm439, %v452, 0.0
    %457 = vadd.xlane.f32.xlu0 %v456
    %v458 = vpop.xlane.xlu0 %457
    %v459 = vmul.f32 %v455, %v446
    %v460 = vmul.f32 %v458, %v446
    %v461 = vadd.f32 %v459, 1e-05
    %v462 = vadd.f32 %v460, 1e-05
    %v463 = vrsqrt.pop %v461
    %v464 = vrsqrt.pop %v462
    %v465 = vmul.f32 %v449, %v463
    %v466 = vmul.f32 %v450, %v464
    %v468 = vlaneseq
    %v469 = vshrl.u32 %v468, 7
    %v470 = vsub.s32 0, %v469
    %v471 = vrot.slane %v437, %v470
    %v473 = vmul.f32 %v465, %v471
    %v474 = vmul.f32 %v466, %v471
    %v476 = vlaneseq
    %v477 = vshrl.u32 %v476, 7
    %v478 = vsub.s32 0, %v477
    %v479 = vrot.slane %v438, %v478
    %v481 = vadd.f32 %v473, %v479
    %v482 = vadd.f32 %v474, %v479
    %v483 = vld [vmem:[%s11] sm:$0xff]
    %v484 = vld [vmem:[%s11 + $0x8] sm:$0xff]
    %v485 = vld [vmem:[%s11 + $0x10] sm:$0xff]
    %v486 = vld [vmem:[%s11 + $0x18] sm:$0xff]
    %v487 = vld [vmem:[%s12] sm:$0x1]
    %v489 = vlaneseq
    %v490 = vshrl.u32 %v489, 7
    %v491 = vsub.s32 0, %v490
    %v492 = vrot.slane %v487, %v491
    %v495 = vsel %vm439, %v481, 0
    %v498 = vsel %vm439, %v482, 0
    %500 = vmatprep.subr.mxu0 0.0
    %501 = vmatpush1.msra.mxu0 0.0
    %502 = vmatprep.subr.mxu0 0.0
    %503 = vmatpush1.msra.mxu0 0.0
    %504 = vmatprep.subr.mxu0 0.0
    %505 = vmatpush1.msra.mxu0 0.0
    %506 = vmatprep.subr.mxu0 0.0
    %507 = vmatpush1.msra.mxu0 0.0
    %508 = vmatprep.subr.mxu0 0.0
    %509 = vmatpush1.msra.mxu0 0.0
    %510 = vmatprep.subr.mxu0 0.0
    %511 = vmatpush1.msra.mxu0 0.0
    %512 = vmatprep.subr.mxu0 0.0
    %513 = vmatpush1.msra.mxu0 0.0
    %514 = vmatprep.subr.mxu0 0.0
    %515 = vmatpush1.msra.mxu0 0.0
    %516 = vmatprep.subr.mxu0 0.0
    %517 = vmatpush1.msra.mxu0 0.0
    %518 = vmatprep.subr.mxu0 0.0
    %519 = vmatpush1.msra.mxu0 0.0
    %520 = vmatprep.subr.mxu0 0.0
    %521 = vmatpush1.msra.mxu0 0.0
    %522 = vmatprep.subr.mxu0 0.0
    %523 = vmatpush1.msra.mxu0 0.0
    %524 = vmatprep.subr.mxu0 0.0
    %525 = vmatpush1.msra.mxu0 %v486
    %526 = vmatprep.subr.mxu0 0.0
    %527 = vmatpush1.msra.mxu0 %v485
    %528 = vmatprep.subr.mxu0 0.0
    %529 = vmatpush1.msra.mxu0 %v484
    %530 = vmatprep.subr.mxu0 0.0
    %531 = vmatpush1.msra.mxu0 %v483
    %532 = vmatprep.subr.mxu0 0.0
    %533 = vmatpush2.msra.mxu0 0.0
    %534 = vmatprep.subr.mxu0 0.0
    %535 = vmatpush2.msra.mxu0 0.0
    %536 = vmatprep.subr.mxu0 0.0
    %537 = vmatpush2.msra.mxu0 0.0
    %538 = vmatprep.subr.mxu0 0.0
    %539 = vmatpush2.msra.mxu0 0.0
    %540 = vmatprep.subr.mxu0 0.0
    %541 = vmatpush2.msra.mxu0 0.0
    %542 = vmatprep.subr.mxu0 0.0
    %543 = vmatpush2.msra.mxu0 0.0
    %544 = vmatprep.subr.mxu0 0.0
    %545 = vmatpush2.msra.mxu0 0.0
    %546 = vmatprep.subr.mxu0 0.0
    %547 = vmatpush2.msra.mxu0 0.0
    %548 = vmatprep.subr.mxu0 0.0
    %549 = vmatpush2.msra.mxu0 0.0
    %550 = vmatprep.subr.mxu0 0.0
    %551 = vmatpush2.msra.mxu0 0.0
    %552 = vmatprep.subr.mxu0 0.0
    %553 = vmatpush2.msra.mxu0 0.0
    %554 = vmatprep.subr.mxu0 0.0
    %555 = vmatpush2.msra.mxu0 0.0
    %556 = vmatprep.subr.mxu0 0.0
    %557 = vmatpush2.msra.mxu0 0.0
    %558 = vmatprep.subr.mxu0 0.0
    %559 = vmatpush2.msra.mxu0 0.0
    %560 = vmatprep.subr.mxu0 0.0
    %561 = vmatpush2.msra.mxu0 0.0
    %562 = vmatprep.subr.mxu0 0.0
    %563 = vmatpush2.msra.mxu0 0.0
    %564 = vmatprep.mubr.f32.mxu0 0.0
    %565 = vmatmul.mubr.f32.gmra.mxu0 %v495
    %v566 = vpop.f32.mrf.mxu0
    %v567 = vadd.f32 %v492, %v566
    %v568 = vpop.f32.mrf.mxu0
    %569 = vmatprep.mubr.f32.mxu0 0.0
    %570 = vmatmul.mubr.f32.gmra.mxu0 %v498
    %v571 = vpop.f32.mrf.mxu0
    %v572 = vadd.f32 %v492, %v571
    %v573 = vpop.f32.mrf.mxu0
    %574 = vdwg.mxu0
    %576 = vrot.lane.b32.xlu0 %v567, 96
    %v577 = vpop.permute.xlu0 %576
    %vm578 = vcmask 64512
    %v579 = vsel %vm578, %v567, 0
    %v581 = vsel %vm578, %v577, 0
    %583 = vmatprep.subr.mxu0 0.0
    %584 = vmatpush1.xpose.msra.mxu0 0.0
    %585 = vmatprep.subr.mxu0 0.0
    %586 = vmatpush1.xpose.msra.mxu0 0.0
    %587 = vmatprep.subr.mxu0 0.0
    %588 = vmatpush1.xpose.msra.mxu0 0.0
    %589 = vmatprep.subr.mxu0 0.0
    %590 = vmatpush1.xpose.msra.mxu0 0.0
    %591 = vmatprep.subr.mxu0 0.0
    %592 = vmatpush1.xpose.msra.mxu0 0.0
    %593 = vmatprep.subr.mxu0 0.0
    %594 = vmatpush1.xpose.msra.mxu0 0.0
    %595 = vmatprep.subr.mxu0 0.0
    %596 = vmatpush1.xpose.msra.mxu0 0.0
    %597 = vmatprep.subr.mxu0 0.0
    %598 = vmatpush1.xpose.msra.mxu0 0.0
    %599 = vmatprep.subr.mxu0 0.0
    %600 = vmatpush1.xpose.msra.mxu0 0.0
    %601 = vmatprep.subr.mxu0 0.0
    %602 = vmatpush1.xpose.msra.mxu0 0.0
    %603 = vmatprep.subr.mxu0 0.0
    %604 = vmatpush1.xpose.msra.mxu0 0.0
    %605 = vmatprep.subr.mxu0 0.0
    %606 = vmatpush1.xpose.msra.mxu0 0.0
    %607 = vmatprep.subr.mxu0 0.0
    %608 = vmatpush1.xpose.msra.mxu0 0.0
    %609 = vmatprep.subr.mxu0 0.0
    %610 = vmatpush1.xpose.msra.mxu0 0.0
    %611 = vmatprep.subr.mxu0 0.0
    %612 = vmatpush1.xpose.msra.mxu0 0.0
    %613 = vmatprep.subr.mxu0 0.0
    %614 = vmatpush1.xpose.msra.mxu0 %v581
    %615 = vmatprep.subr.mxu0 0.0
    %616 = vmatpush2.xpose.msra.mxu0 0.0
    %617 = vmatprep.subr.mxu0 0.0
    %618 = vmatpush2.xpose.msra.mxu0 0.0
    %619 = vmatprep.subr.mxu0 0.0
    %620 = vmatpush2.xpose.msra.mxu0 0.0
    %621 = vmatprep.subr.mxu0 0.0
    %622 = vmatpush2.xpose.msra.mxu0 0.0
    %623 = vmatprep.subr.mxu0 0.0
    %624 = vmatpush2.xpose.msra.mxu0 0.0
    %625 = vmatprep.subr.mxu0 0.0
    %626 = vmatpush2.xpose.msra.mxu0 0.0
    %627 = vmatprep.subr.mxu0 0.0
    %628 = vmatpush2.xpose.msra.mxu0 0.0
    %629 = vmatprep.subr.mxu0 0.0
    %630 = vmatpush2.xpose.msra.mxu0 0.0
    %631 = vmatprep.subr.mxu0 0.0
    %632 = vmatpush2.xpose.msra.mxu0 0.0
    %633 = vmatprep.subr.mxu0 0.0
    %634 = vmatpush2.xpose.msra.mxu0 0.0
    %635 = vmatprep.subr.mxu0 0.0
    %636 = vmatpush2.xpose.msra.mxu0 0.0
    %637 = vmatprep.subr.mxu0 0.0
    %638 = vmatpush2.xpose.msra.mxu0 0.0
    %639 = vmatprep.subr.mxu0 0.0
    %640 = vmatpush2.xpose.msra.mxu0 0.0
    %641 = vmatprep.subr.mxu0 0.0
    %642 = vmatpush2.xpose.msra.mxu0 0.0
    %643 = vmatprep.subr.mxu0 0.0
    %644 = vmatpush2.xpose.msra.mxu0 0.0
    %645 = vmatprep.subr.mxu0 0.0
    %646 = vmatpush2.xpose.msra.mxu0 0.0
    %647 = vmatprep.mubr.f32.mxu0 0.0
    %648 = vmatmul.mubr.f32.gmra.mxu0 %v579
    %v649 = vpop.f32.mrf.mxu0
    %v650 = vadd.f32 0.0, %v649
    %v651 = vpop.f32.mrf.mxu0
    %652 = vdwg.mxu0
    %654 = vrot.lane.b32.xlu0 %v572, 96
    %v655 = vpop.permute.xlu0 %654
    %v656 = vsel %vm578, %v572, 0
    %v658 = vsel %vm578, %v655, 0
    %660 = vmatprep.subr.mxu0 0.0
    %661 = vmatpush1.xpose.msra.mxu0 0.0
    %662 = vmatprep.subr.mxu0 0.0
    %663 = vmatpush1.xpose.msra.mxu0 0.0
    %664 = vmatprep.subr.mxu0 0.0
    %665 = vmatpush1.xpose.msra.mxu0 0.0
    %666 = vmatprep.subr.mxu0 0.0
    %667 = vmatpush1.xpose.msra.mxu0 0.0
    %668 = vmatprep.subr.mxu0 0.0
    %669 = vmatpush1.xpose.msra.mxu0 0.0
    %670 = vmatprep.subr.mxu0 0.0
    %671 = vmatpush1.xpose.msra.mxu0 0.0
    %672 = vmatprep.subr.mxu0 0.0
    %673 = vmatpush1.xpose.msra.mxu0 0.0
    %674 = vmatprep.subr.mxu0 0.0
    %675 = vmatpush1.xpose.msra.mxu0 0.0
    %676 = vmatprep.subr.mxu0 0.0
    %677 = vmatpush1.xpose.msra.mxu0 0.0
    %678 = vmatprep.subr.mxu0 0.0
    %679 = vmatpush1.xpose.msra.mxu0 0.0
    %680 = vmatprep.subr.mxu0 0.0
    %681 = vmatpush1.xpose.msra.mxu0 0.0
    %682 = vmatprep.subr.mxu0 0.0
    %683 = vmatpush1.xpose.msra.mxu0 0.0
    %684 = vmatprep.subr.mxu0 0.0
    %685 = vmatpush1.xpose.msra.mxu0 0.0
    %686 = vmatprep.subr.mxu0 0.0
    %687 = vmatpush1.xpose.msra.mxu0 0.0
    %688 = vmatprep.subr.mxu0 0.0
    %689 = vmatpush1.xpose.msra.mxu0 0.0
    %690 = vmatprep.subr.mxu0 0.0
    %691 = vmatpush1.xpose.msra.mxu0 %v658
    %692 = vmatprep.subr.mxu0 0.0
    %693 = vmatpush2.xpose.msra.mxu0 0.0
    %694 = vmatprep.subr.mxu0 0.0
    %695 = vmatpush2.xpose.msra.mxu0 0.0
    %696 = vmatprep.subr.mxu0 0.0
    %697 = vmatpush2.xpose.msra.mxu0 0.0
    %698 = vmatprep.subr.mxu0 0.0
    %699 = vmatpush2.xpose.msra.mxu0 0.0
    %700 = vmatprep.subr.mxu0 0.0
    %701 = vmatpush2.xpose.msra.mxu0 0.0
    %702 = vmatprep.subr.mxu0 0.0
    %703 = vmatpush2.xpose.msra.mxu0 0.0
    %704 = vmatprep.subr.mxu0 0.0
    %705 = vmatpush2.xpose.msra.mxu0 0.0
    %706 = vmatprep.subr.mxu0 0.0
    %707 = vmatpush2.xpose.msra.mxu0 0.0
    %708 = vmatprep.subr.mxu0 0.0
    %709 = vmatpush2.xpose.msra.mxu0 0.0
    %710 = vmatprep.subr.mxu0 0.0
    %711 = vmatpush2.xpose.msra.mxu0 0.0
    %712 = vmatprep.subr.mxu0 0.0
    %713 = vmatpush2.xpose.msra.mxu0 0.0
    %714 = vmatprep.subr.mxu0 0.0
    %715 = vmatpush2.xpose.msra.mxu0 0.0
    %716 = vmatprep.subr.mxu0 0.0
    %717 = vmatpush2.xpose.msra.mxu0 0.0
    %718 = vmatprep.subr.mxu0 0.0
    %719 = vmatpush2.xpose.msra.mxu0 0.0
    %720 = vmatprep.subr.mxu0 0.0
    %721 = vmatpush2.xpose.msra.mxu0 0.0
    %722 = vmatprep.subr.mxu0 0.0
    %723 = vmatpush2.xpose.msra.mxu0 0.0
    %724 = vmatprep.mubr.f32.mxu0 0.0
    %725 = vmatmul.mubr.f32.gmra.mxu0 %v656
    %v726 = vpop.f32.mrf.mxu0
    %v727 = vadd.f32 0.0, %v726
    %v728 = vpop.f32.mrf.mxu0
    %729 = vdwg.mxu0
    %v730 = vsel %vm578, %v650, -inf
    %731 = vmax.xlane.f32.xlu0 %v730
    %v732 = vpop.xlane.xlu0 %731
    %v733 = vsel %vm578, %v727, -inf
    %734 = vmax.xlane.f32.xlu0 %v733
    %v735 = vpop.xlane.xlu0 %734
    %v736 = vsub.f32 %v650, %v732
    %v737 = vsub.f32 %v727, %v735
    %v738 = vmul.f32 %v736, 1.442695
    %v739 = vpow.pop %v738
    %v740 = vmul.f32 %v737, 1.442695
    %v741 = vpow.pop %v740
    %v742 = vsel %vm578, %v739, 0.0
    %743 = vadd.xlane.f32.xlu0 %v742
    %v744 = vpop.xlane.xlu0 %743
    %v745 = vsel %vm578, %v741, 0.0
    %746 = vadd.xlane.f32.xlu0 %v745
    %v747 = vpop.xlane.xlu0 %746
    %v748 = vrcp.pop %v744
    %v749 = vrcp.pop %v747
    %v750 = vmul.f32 %v739, %v748
    %v751 = vmul.f32 %v741, %v749
    %752 = vrot.lane.b32.xlu0 %v567, 64
    %v753 = vpop.permute.xlu0 %752
    %v756 = vsel %vm578, %v750, 0
    %758 = vmatprep.subr.mxu0 0.0
    %759 = vmatpush1.msra.mxu0 0.0
    %760 = vmatprep.subr.mxu0 0.0
    %761 = vmatpush1.msra.mxu0 0.0
    %762 = vmatprep.subr.mxu0 0.0
    %763 = vmatpush1.msra.mxu0 0.0
    %764 = vmatprep.subr.mxu0 0.0
    %765 = vmatpush1.msra.mxu0 0.0
    %766 = vmatprep.subr.mxu0 0.0
    %767 = vmatpush1.msra.mxu0 0.0
    %768 = vmatprep.subr.mxu0 0.0
    %769 = vmatpush1.msra.mxu0 0.0
    %770 = vmatprep.subr.mxu0 0.0
    %771 = vmatpush1.msra.mxu0 0.0
    %772 = vmatprep.subr.mxu0 0.0
    %773 = vmatpush1.msra.mxu0 0.0
    %774 = vmatprep.subr.mxu0 0.0
    %775 = vmatpush1.msra.mxu0 0.0
    %776 = vmatprep.subr.mxu0 0.0
    %777 = vmatpush1.msra.mxu0 0.0
    %778 = vmatprep.subr.mxu0 0.0
    %779 = vmatpush1.msra.mxu0 0.0
    %780 = vmatprep.subr.mxu0 0.0
    %781 = vmatpush1.msra.mxu0 0.0
    %782 = vmatprep.subr.mxu0 0.0
    %783 = vmatpush1.msra.mxu0 0.0
    %784 = vmatprep.subr.mxu0 0.0
    %785 = vmatpush1.msra.mxu0 0.0
    %786 = vmatprep.subr.mxu0 0.0
    %787 = vmatpush1.msra.mxu0 0.0
    %788 = vmatprep.subr.mxu0 0.0
    %789 = vmatpush1.msra.mxu0 %v753
    %790 = vmatprep.subr.mxu0 0.0
    %791 = vmatpush2.msra.mxu0 0.0
    %792 = vmatprep.subr.mxu0 0.0
    %793 = vmatpush2.msra.mxu0 0.0
    %794 = vmatprep.subr.mxu0 0.0
    %795 = vmatpush2.msra.mxu0 0.0
    %796 = vmatprep.subr.mxu0 0.0
    %797 = vmatpush2.msra.mxu0 0.0
    %798 = vmatprep.subr.mxu0 0.0
    %799 = vmatpush2.msra.mxu0 0.0
    %800 = vmatprep.subr.mxu0 0.0
    %801 = vmatpush2.msra.mxu0 0.0
    %802 = vmatprep.subr.mxu0 0.0
    %803 = vmatpush2.msra.mxu0 0.0
    %804 = vmatprep.subr.mxu0 0.0
    %805 = vmatpush2.msra.mxu0 0.0
    %806 = vmatprep.subr.mxu0 0.0
    %807 = vmatpush2.msra.mxu0 0.0
    %808 = vmatprep.subr.mxu0 0.0
    %809 = vmatpush2.msra.mxu0 0.0
    %810 = vmatprep.subr.mxu0 0.0
    %811 = vmatpush2.msra.mxu0 0.0
    %812 = vmatprep.subr.mxu0 0.0
    %813 = vmatpush2.msra.mxu0 0.0
    %814 = vmatprep.subr.mxu0 0.0
    %815 = vmatpush2.msra.mxu0 0.0
    %816 = vmatprep.subr.mxu0 0.0
    %817 = vmatpush2.msra.mxu0 0.0
    %818 = vmatprep.subr.mxu0 0.0
    %819 = vmatpush2.msra.mxu0 0.0
    %820 = vmatprep.subr.mxu0 0.0
    %821 = vmatpush2.msra.mxu0 0.0
    %822 = vmatprep.mubr.f32.mxu0 0.0
    %823 = vmatmul.mubr.f32.gmra.mxu0 %v756
    %v824 = vpop.f32.mrf.mxu0
    %v825 = vadd.f32 0.0, %v824
    %v826 = vpop.f32.mrf.mxu0
    %827 = vdwg.mxu0
    %828 = vrot.lane.b32.xlu0 %v572, 64
    %v829 = vpop.permute.xlu0 %828
    %v832 = vsel %vm578, %v751, 0
    %834 = vmatprep.subr.mxu0 0.0
    %835 = vmatpush1.msra.mxu0 0.0
    %836 = vmatprep.subr.mxu0 0.0
    %837 = vmatpush1.msra.mxu0 0.0
    %838 = vmatprep.subr.mxu0 0.0
    %839 = vmatpush1.msra.mxu0 0.0
    %840 = vmatprep.subr.mxu0 0.0
    %841 = vmatpush1.msra.mxu0 0.0
    %842 = vmatprep.subr.mxu0 0.0
    %843 = vmatpush1.msra.mxu0 0.0
    %844 = vmatprep.subr.mxu0 0.0
    %845 = vmatpush1.msra.mxu0 0.0
    %846 = vmatprep.subr.mxu0 0.0
    %847 = vmatpush1.msra.mxu0 0.0
    %848 = vmatprep.subr.mxu0 0.0
    %849 = vmatpush1.msra.mxu0 0.0
    %850 = vmatprep.subr.mxu0 0.0
    %851 = vmatpush1.msra.mxu0 0.0
    %852 = vmatprep.subr.mxu0 0.0
    %853 = vmatpush1.msra.mxu0 0.0
    %854 = vmatprep.subr.mxu0 0.0
    %855 = vmatpush1.msra.mxu0 0.0
    %856 = vmatprep.subr.mxu0 0.0
    %857 = vmatpush1.msra.mxu0 0.0
    %858 = vmatprep.subr.mxu0 0.0
    %859 = vmatpush1.msra.mxu0 0.0
    %860 = vmatprep.subr.mxu0 0.0
    %861 = vmatpush1.msra.mxu0 0.0
    %862 = vmatprep.subr.mxu0 0.0
    %863 = vmatpush1.msra.mxu0 0.0
    %864 = vmatprep.subr.mxu0 0.0
    %865 = vmatpush1.msra.mxu0 %v829
    %866 = vmatprep.subr.mxu0 0.0
    %867 = vmatpush2.msra.mxu0 0.0
    %868 = vmatprep.subr.mxu0 0.0
    %869 = vmatpush2.msra.mxu0 0.0
    %870 = vmatprep.subr.mxu0 0.0
    %871 = vmatpush2.msra.mxu0 0.0
    %872 = vmatprep.subr.mxu0 0.0
    %873 = vmatpush2.msra.mxu0 0.0
    %874 = vmatprep.subr.mxu0 0.0
    %875 = vmatpush2.msra.mxu0 0.0
    %876 = vmatprep.subr.mxu0 0.0
    %877 = vmatpush2.msra.mxu0 0.0
    %878 = vmatprep.subr.mxu0 0.0
    %879 = vmatpush2.msra.mxu0 0.0
    %880 = vmatprep.subr.mxu0 0.0
    %881 = vmatpush2.msra.mxu0 0.0
    %882 = vmatprep.subr.mxu0 0.0
    %883 = vmatpush2.msra.mxu0 0.0
    %884 = vmatprep.subr.mxu0 0.0
    %885 = vmatpush2.msra.mxu0 0.0
    %886 = vmatprep.subr.mxu0 0.0
    %887 = vmatpush2.msra.mxu0 0.0
    %888 = vmatprep.subr.mxu0 0.0
    %889 = vmatpush2.msra.mxu0 0.0
    %890 = vmatprep.subr.mxu0 0.0
    %891 = vmatpush2.msra.mxu0 0.0
    %892 = vmatprep.subr.mxu0 0.0
    %893 = vmatpush2.msra.mxu0 0.0
    %894 = vmatprep.subr.mxu0 0.0
    %895 = vmatpush2.msra.mxu0 0.0
    %896 = vmatprep.subr.mxu0 0.0
    %897 = vmatpush2.msra.mxu0 0.0
    %898 = vmatprep.mubr.f32.mxu0 0.0
    %899 = vmatmul.mubr.f32.gmra.mxu0 %v832
    %v900 = vpop.f32.mrf.mxu0
    %v901 = vadd.f32 0.0, %v900
    %v902 = vpop.f32.mrf.mxu0
    %903 = vdwg.mxu0
    %904 = vrot.lane.b32.xlu0 %v567, 120
    %v905 = vpop.permute.xlu0 %904
    %906 = vrot.lane.b32.xlu0 %v567, 88
    %v907 = vpop.permute.xlu0 %906
    %v908 = vsel %vm578, %v905, 0
    %v910 = vsel %vm578, %v907, 0
    %912 = vmatprep.subr.mxu0 0.0
    %913 = vmatpush1.xpose.msra.mxu0 0.0
    %914 = vmatprep.subr.mxu0 0.0
    %915 = vmatpush1.xpose.msra.mxu0 0.0
    %916 = vmatprep.subr.mxu0 0.0
    %917 = vmatpush1.xpose.msra.mxu0 0.0
    %918 = vmatprep.subr.mxu0 0.0
    %919 = vmatpush1.xpose.msra.mxu0 0.0
    %920 = vmatprep.subr.mxu0 0.0
    %921 = vmatpush1.xpose.msra.mxu0 0.0
    %922 = vmatprep.subr.mxu0 0.0
    %923 = vmatpush1.xpose.msra.mxu0 0.0
    %924 = vmatprep.subr.mxu0 0.0
    %925 = vmatpush1.xpose.msra.mxu0 0.0
    %926 = vmatprep.subr.mxu0 0.0
    %927 = vmatpush1.xpose.msra.mxu0 0.0
    %928 = vmatprep.subr.mxu0 0.0
    %929 = vmatpush1.xpose.msra.mxu0 0.0
    %930 = vmatprep.subr.mxu0 0.0
    %931 = vmatpush1.xpose.msra.mxu0 0.0
    %932 = vmatprep.subr.mxu0 0.0
    %933 = vmatpush1.xpose.msra.mxu0 0.0
    %934 = vmatprep.subr.mxu0 0.0
    %935 = vmatpush1.xpose.msra.mxu0 0.0
    %936 = vmatprep.subr.mxu0 0.0
    %937 = vmatpush1.xpose.msra.mxu0 0.0
    %938 = vmatprep.subr.mxu0 0.0
    %939 = vmatpush1.xpose.msra.mxu0 0.0
    %940 = vmatprep.subr.mxu0 0.0
    %941 = vmatpush1.xpose.msra.mxu0 0.0
    %942 = vmatprep.subr.mxu0 0.0
    %943 = vmatpush1.xpose.msra.mxu0 %v910
    %944 = vmatprep.subr.mxu0 0.0
    %945 = vmatpush2.xpose.msra.mxu0 0.0
    %946 = vmatprep.subr.mxu0 0.0
    %947 = vmatpush2.xpose.msra.mxu0 0.0
    %948 = vmatprep.subr.mxu0 0.0
    %949 = vmatpush2.xpose.msra.mxu0 0.0
    %950 = vmatprep.subr.mxu0 0.0
    %951 = vmatpush2.xpose.msra.mxu0 0.0
    %952 = vmatprep.subr.mxu0 0.0
    %953 = vmatpush2.xpose.msra.mxu0 0.0
    %954 = vmatprep.subr.mxu0 0.0
    %955 = vmatpush2.xpose.msra.mxu0 0.0
    %956 = vmatprep.subr.mxu0 0.0
    %957 = vmatpush2.xpose.msra.mxu0 0.0
    %958 = vmatprep.subr.mxu0 0.0
    %959 = vmatpush2.xpose.msra.mxu0 0.0
    %960 = vmatprep.subr.mxu0 0.0
    %961 = vmatpush2.xpose.msra.mxu0 0.0
    %962 = vmatprep.subr.mxu0 0.0
    %963 = vmatpush2.xpose.msra.mxu0 0.0
    %964 = vmatprep.subr.mxu0 0.0
    %965 = vmatpush2.xpose.msra.mxu0 0.0
    %966 = vmatprep.subr.mxu0 0.0
    %967 = vmatpush2.xpose.msra.mxu0 0.0
    %968 = vmatprep.subr.mxu0 0.0
    %969 = vmatpush2.xpose.msra.mxu0 0.0
    %970 = vmatprep.subr.mxu0 0.0
    %971 = vmatpush2.xpose.msra.mxu0 0.0
    %972 = vmatprep.subr.mxu0 0.0
    %973 = vmatpush2.xpose.msra.mxu0 0.0
    %974 = vmatprep.subr.mxu0 0.0
    %975 = vmatpush2.xpose.msra.mxu0 0.0
    %976 = vmatprep.mubr.f32.mxu0 0.0
    %977 = vmatmul.mubr.f32.gmra.mxu0 %v908
    %v978 = vpop.f32.mrf.mxu0
    %v979 = vadd.f32 0.0, %v978
    %v980 = vpop.f32.mrf.mxu0
    %981 = vdwg.mxu0
    %982 = vrot.lane.b32.xlu0 %v572, 120
    %v983 = vpop.permute.xlu0 %982
    %984 = vrot.lane.b32.xlu0 %v572, 88
    %v985 = vpop.permute.xlu0 %984
    %v986 = vsel %vm578, %v983, 0
    %v988 = vsel %vm578, %v985, 0
    %990 = vmatprep.subr.mxu0 0.0
    %991 = vmatpush1.xpose.msra.mxu0 0.0
    %992 = vmatprep.subr.mxu0 0.0
    %993 = vmatpush1.xpose.msra.mxu0 0.0
    %994 = vmatprep.subr.mxu0 0.0
    %995 = vmatpush1.xpose.msra.mxu0 0.0
    %996 = vmatprep.subr.mxu0 0.0
    %997 = vmatpush1.xpose.msra.mxu0 0.0
    %998 = vmatprep.subr.mxu0 0.0
    %999 = vmatpush1.xpose.msra.mxu0 0.0
    %1000 = vmatprep.subr.mxu0 0.0
    %1001 = vmatpush1.xpose.msra.mxu0 0.0
    %1002 = vmatprep.subr.mxu0 0.0
    %1003 = vmatpush1.xpose.msra.mxu0 0.0
    %1004 = vmatprep.subr.mxu0 0.0
    %1005 = vmatpush1.xpose.msra.mxu0 0.0
    %1006 = vmatprep.subr.mxu0 0.0
    %1007 = vmatpush1.xpose.msra.mxu0 0.0
    %1008 = vmatprep.subr.mxu0 0.0
    %1009 = vmatpush1.xpose.msra.mxu0 0.0
    %1010 = vmatprep.subr.mxu0 0.0
    %1011 = vmatpush1.xpose.msra.mxu0 0.0
    %1012 = vmatprep.subr.mxu0 0.0
    %1013 = vmatpush1.xpose.msra.mxu0 0.0
    %1014 = vmatprep.subr.mxu0 0.0
    %1015 = vmatpush1.xpose.msra.mxu0 0.0
    %1016 = vmatprep.subr.mxu0 0.0
    %1017 = vmatpush1.xpose.msra.mxu0 0.0
    %1018 = vmatprep.subr.mxu0 0.0
    %1019 = vmatpush1.xpose.msra.mxu0 0.0
    %1020 = vmatprep.subr.mxu0 0.0
    %1021 = vmatpush1.xpose.msra.mxu0 %v988
    %1022 = vmatprep.subr.mxu0 0.0
    %1023 = vmatpush2.xpose.msra.mxu0 0.0
    %1024 = vmatprep.subr.mxu0 0.0
    %1025 = vmatpush2.xpose.msra.mxu0 0.0
    %1026 = vmatprep.subr.mxu0 0.0
    %1027 = vmatpush2.xpose.msra.mxu0 0.0
    %1028 = vmatprep.subr.mxu0 0.0
    %1029 = vmatpush2.xpose.msra.mxu0 0.0
    %1030 = vmatprep.subr.mxu0 0.0
    %1031 = vmatpush2.xpose.msra.mxu0 0.0
    %1032 = vmatprep.subr.mxu0 0.0
    %1033 = vmatpush2.xpose.msra.mxu0 0.0
    %1034 = vmatprep.subr.mxu0 0.0
    %1035 = vmatpush2.xpose.msra.mxu0 0.0
    %1036 = vmatprep.subr.mxu0 0.0
    %1037 = vmatpush2.xpose.msra.mxu0 0.0
    %1038 = vmatprep.subr.mxu0 0.0
    %1039 = vmatpush2.xpose.msra.mxu0 0.0
    %1040 = vmatprep.subr.mxu0 0.0
    %1041 = vmatpush2.xpose.msra.mxu0 0.0
    %1042 = vmatprep.subr.mxu0 0.0
    %1043 = vmatpush2.xpose.msra.mxu0 0.0
    %1044 = vmatprep.subr.mxu0 0.0
    %1045 = vmatpush2.xpose.msra.mxu0 0.0
    %1046 = vmatprep.subr.mxu0 0.0
    %1047 = vmatpush2.xpose.msra.mxu0 0.0
    %1048 = vmatprep.subr.mxu0 0.0
    %1049 = vmatpush2.xpose.msra.mxu0 0.0
    %1050 = vmatprep.subr.mxu0 0.0
    %1051 = vmatpush2.xpose.msra.mxu0 0.0
    %1052 = vmatprep.subr.mxu0 0.0
    %1053 = vmatpush2.xpose.msra.mxu0 0.0
    %1054 = vmatprep.mubr.f32.mxu0 0.0
    %1055 = vmatmul.mubr.f32.gmra.mxu0 %v986
    %v1056 = vpop.f32.mrf.mxu0
    %v1057 = vadd.f32 0.0, %v1056
    %v1058 = vpop.f32.mrf.mxu0
    %1059 = vdwg.mxu0
    %v1060 = vsel %vm578, %v979, -inf
    %1061 = vmax.xlane.f32.xlu0 %v1060
    %v1062 = vpop.xlane.xlu0 %1061
    %v1063 = vsel %vm578, %v1057, -inf
    %1064 = vmax.xlane.f32.xlu0 %v1063
    %v1065 = vpop.xlane.xlu0 %1064
    %v1066 = vsub.f32 %v979, %v1062
    %v1067 = vsub.f32 %v1057, %v1065
    %v1068 = vmul.f32 %v1066, 1.442695
    %v1069 = vpow.pop %v1068
    %v1070 = vmul.f32 %v1067, 1.442695
    %v1071 = vpow.pop %v1070
    %v1072 = vsel %vm578, %v1069, 0.0
    %1073 = vadd.xlane.f32.xlu0 %v1072
    %v1074 = vpop.xlane.xlu0 %1073
    %v1075 = vsel %vm578, %v1071, 0.0
    %1076 = vadd.xlane.f32.xlu0 %v1075
    %v1077 = vpop.xlane.xlu0 %1076
    %v1078 = vrcp.pop %v1074
    %v1079 = vrcp.pop %v1077
    %v1080 = vmul.f32 %v1069, %v1078
    %v1081 = vmul.f32 %v1071, %v1079
    %1082 = vrot.lane.b32.xlu0 %v567, 56
    %v1083 = vpop.permute.xlu0 %1082
    %v1086 = vsel %vm578, %v1080, 0
    %1088 = vmatprep.subr.mxu0 0.0
    %1089 = vmatpush1.msra.mxu0 0.0
    %1090 = vmatprep.subr.mxu0 0.0
    %1091 = vmatpush1.msra.mxu0 0.0
    %1092 = vmatprep.subr.mxu0 0.0
    %1093 = vmatpush1.msra.mxu0 0.0
    %1094 = vmatprep.subr.mxu0 0.0
    %1095 = vmatpush1.msra.mxu0 0.0
    %1096 = vmatprep.subr.mxu0 0.0
    %1097 = vmatpush1.msra.mxu0 0.0
    %1098 = vmatprep.subr.mxu0 0.0
    %1099 = vmatpush1.msra.mxu0 0.0
    %1100 = vmatprep.subr.mxu0 0.0
    %1101 = vmatpush1.msra.mxu0 0.0
    %1102 = vmatprep.subr.mxu0 0.0
    %1103 = vmatpush1.msra.mxu0 0.0
    %1104 = vmatprep.subr.mxu0 0.0
    %1105 = vmatpush1.msra.mxu0 0.0
    %1106 = vmatprep.subr.mxu0 0.0
    %1107 = vmatpush1.msra.mxu0 0.0
    %1108 = vmatprep.subr.mxu0 0.0
    %1109 = vmatpush1.msra.mxu0 0.0
    %1110 = vmatprep.subr.mxu0 0.0
    %1111 = vmatpush1.msra.mxu0 0.0
    %1112 = vmatprep.subr.mxu0 0.0
    %1113 = vmatpush1.msra.mxu0 0.0
    %1114 = vmatprep.subr.mxu0 0.0
    %1115 = vmatpush1.msra.mxu0 0.0
    %1116 = vmatprep.subr.mxu0 0.0
    %1117 = vmatpush1.msra.mxu0 0.0
    %1118 = vmatprep.subr.mxu0 0.0
    %1119 = vmatpush1.msra.mxu0 %v1083
    %1120 = vmatprep.subr.mxu0 0.0
    %1121 = vmatpush2.msra.mxu0 0.0
    %1122 = vmatprep.subr.mxu0 0.0
    %1123 = vmatpush2.msra.mxu0 0.0
    %1124 = vmatprep.subr.mxu0 0.0
    %1125 = vmatpush2.msra.mxu0 0.0
    %1126 = vmatprep.subr.mxu0 0.0
    %1127 = vmatpush2.msra.mxu0 0.0
    %1128 = vmatprep.subr.mxu0 0.0
    %1129 = vmatpush2.msra.mxu0 0.0
    %1130 = vmatprep.subr.mxu0 0.0
    %1131 = vmatpush2.msra.mxu0 0.0
    %1132 = vmatprep.subr.mxu0 0.0
    %1133 = vmatpush2.msra.mxu0 0.0
    %1134 = vmatprep.subr.mxu0 0.0
    %1135 = vmatpush2.msra.mxu0 0.0
    %1136 = vmatprep.subr.mxu0 0.0
    %1137 = vmatpush2.msra.mxu0 0.0
    %1138 = vmatprep.subr.mxu0 0.0
    %1139 = vmatpush2.msra.mxu0 0.0
    %1140 = vmatprep.subr.mxu0 0.0
    %1141 = vmatpush2.msra.mxu0 0.0
    %1142 = vmatprep.subr.mxu0 0.0
    %1143 = vmatpush2.msra.mxu0 0.0
    %1144 = vmatprep.subr.mxu0 0.0
    %1145 = vmatpush2.msra.mxu0 0.0
    %1146 = vmatprep.subr.mxu0 0.0
    %1147 = vmatpush2.msra.mxu0 0.0
    %1148 = vmatprep.subr.mxu0 0.0
    %1149 = vmatpush2.msra.mxu0 0.0
    %1150 = vmatprep.subr.mxu0 0.0
    %1151 = vmatpush2.msra.mxu0 0.0
    %1152 = vmatprep.mubr.f32.mxu0 0.0
    %1153 = vmatmul.mubr.f32.gmra.mxu0 %v1086
    %v1154 = vpop.f32.mrf.mxu0
    %v1155 = vadd.f32 0.0, %v1154
    %v1156 = vpop.f32.mrf.mxu0
    %1157 = vdwg.mxu0
    %1158 = vrot.lane.b32.xlu0 %v572, 56
    %v1159 = vpop.permute.xlu0 %1158
    %v1162 = vsel %vm578, %v1081, 0
    %1164 = vmatprep.subr.mxu0 0.0
    %1165 = vmatpush1.msra.mxu0 0.0
    %1166 = vmatprep.subr.mxu0 0.0
    %1167 = vmatpush1.msra.mxu0 0.0
    %1168 = vmatprep.subr.mxu0 0.0
    %1169 = vmatpush1.msra.mxu0 0.0
    %1170 = vmatprep.subr.mxu0 0.0
    %1171 = vmatpush1.msra.mxu0 0.0
    %1172 = vmatprep.subr.mxu0 0.0
    %1173 = vmatpush1.msra.mxu0 0.0
    %1174 = vmatprep.subr.mxu0 0.0
    %1175 = vmatpush1.msra.mxu0 0.0
    %1176 = vmatprep.subr.mxu0 0.0
    %1177 = vmatpush1.msra.mxu0 0.0
    %1178 = vmatprep.subr.mxu0 0.0
    %1179 = vmatpush1.msra.mxu0 0.0
    %1180 = vmatprep.subr.mxu0 0.0
    %1181 = vmatpush1.msra.mxu0 0.0
    %1182 = vmatprep.subr.mxu0 0.0
    %1183 = vmatpush1.msra.mxu0 0.0
    %1184 = vmatprep.subr.mxu0 0.0
    %1185 = vmatpush1.msra.mxu0 0.0
    %1186 = vmatprep.subr.mxu0 0.0
    %1187 = vmatpush1.msra.mxu0 0.0
    %1188 = vmatprep.subr.mxu0 0.0
    %1189 = vmatpush1.msra.mxu0 0.0
    %1190 = vmatprep.subr.mxu0 0.0
    %1191 = vmatpush1.msra.mxu0 0.0
    %1192 = vmatprep.subr.mxu0 0.0
    %1193 = vmatpush1.msra.mxu0 0.0
    %1194 = vmatprep.subr.mxu0 0.0
    %1195 = vmatpush1.msra.mxu0 %v1159
    %1196 = vmatprep.subr.mxu0 0.0
    %1197 = vmatpush2.msra.mxu0 0.0
    %1198 = vmatprep.subr.mxu0 0.0
    %1199 = vmatpush2.msra.mxu0 0.0
    %1200 = vmatprep.subr.mxu0 0.0
    %1201 = vmatpush2.msra.mxu0 0.0
    %1202 = vmatprep.subr.mxu0 0.0
    %1203 = vmatpush2.msra.mxu0 0.0
    %1204 = vmatprep.subr.mxu0 0.0
    %1205 = vmatpush2.msra.mxu0 0.0
    %1206 = vmatprep.subr.mxu0 0.0
    %1207 = vmatpush2.msra.mxu0 0.0
    %1208 = vmatprep.subr.mxu0 0.0
    %1209 = vmatpush2.msra.mxu0 0.0
    %1210 = vmatprep.subr.mxu0 0.0
    %1211 = vmatpush2.msra.mxu0 0.0
    %1212 = vmatprep.subr.mxu0 0.0
    %1213 = vmatpush2.msra.mxu0 0.0
    %1214 = vmatprep.subr.mxu0 0.0
    %1215 = vmatpush2.msra.mxu0 0.0
    %1216 = vmatprep.subr.mxu0 0.0
    %1217 = vmatpush2.msra.mxu0 0.0
    %1218 = vmatprep.subr.mxu0 0.0
    %1219 = vmatpush2.msra.mxu0 0.0
    %1220 = vmatprep.subr.mxu0 0.0
    %1221 = vmatpush2.msra.mxu0 0.0
    %1222 = vmatprep.subr.mxu0 0.0
    %1223 = vmatpush2.msra.mxu0 0.0
    %1224 = vmatprep.subr.mxu0 0.0
    %1225 = vmatpush2.msra.mxu0 0.0
    %1226 = vmatprep.subr.mxu0 0.0
    %1227 = vmatpush2.msra.mxu0 0.0
    %1228 = vmatprep.mubr.f32.mxu0 0.0
    %1229 = vmatmul.mubr.f32.gmra.mxu0 %v1162
    %v1230 = vpop.f32.mrf.mxu0
    %v1231 = vadd.f32 0.0, %v1230
    %v1232 = vpop.f32.mrf.mxu0
    %1233 = vdwg.mxu0
    %1234 = vrot.lane.b32.xlu0 %v567, 112
    %v1235 = vpop.permute.xlu0 %1234
    %1236 = vrot.lane.b32.xlu0 %v567, 80
    %v1237 = vpop.permute.xlu0 %1236
    %v1238 = vsel %vm578, %v1235, 0
    %v1240 = vsel %vm578, %v1237, 0
    %1242 = vmatprep.subr.mxu0 0.0
    %1243 = vmatpush1.xpose.msra.mxu0 0.0
    %1244 = vmatprep.subr.mxu0 0.0
    %1245 = vmatpush1.xpose.msra.mxu0 0.0
    %1246 = vmatprep.subr.mxu0 0.0
    %1247 = vmatpush1.xpose.msra.mxu0 0.0
    %1248 = vmatprep.subr.mxu0 0.0
    %1249 = vmatpush1.xpose.msra.mxu0 0.0
    %1250 = vmatprep.subr.mxu0 0.0
    %1251 = vmatpush1.xpose.msra.mxu0 0.0
    %1252 = vmatprep.subr.mxu0 0.0
    %1253 = vmatpush1.xpose.msra.mxu0 0.0
    %1254 = vmatprep.subr.mxu0 0.0
    %1255 = vmatpush1.xpose.msra.mxu0 0.0
    %1256 = vmatprep.subr.mxu0 0.0
    %1257 = vmatpush1.xpose.msra.mxu0 0.0
    %1258 = vmatprep.subr.mxu0 0.0
    %1259 = vmatpush1.xpose.msra.mxu0 0.0
    %1260 = vmatprep.subr.mxu0 0.0
    %1261 = vmatpush1.xpose.msra.mxu0 0.0
    %1262 = vmatprep.subr.mxu0 0.0
    %1263 = vmatpush1.xpose.msra.mxu0 0.0
    %1264 = vmatprep.subr.mxu0 0.0
    %1265 = vmatpush1.xpose.msra.mxu0 0.0
    %1266 = vmatprep.subr.mxu0 0.0
    %1267 = vmatpush1.xpose.msra.mxu0 0.0
    %1268 = vmatprep.subr.mxu0 0.0
    %1269 = vmatpush1.xpose.msra.mxu0 0.0
    %1270 = vmatprep.subr.mxu0 0.0
    %1271 = vmatpush1.xpose.msra.mxu0 0.0
    %1272 = vmatprep.subr.mxu0 0.0
    %1273 = vmatpush1.xpose.msra.mxu0 %v1240
    %1274 = vmatprep.subr.mxu0 0.0
    %1275 = vmatpush2.xpose.msra.mxu0 0.0
    %1276 = vmatprep.subr.mxu0 0.0
    %1277 = vmatpush2.xpose.msra.mxu0 0.0
    %1278 = vmatprep.subr.mxu0 0.0
    %1279 = vmatpush2.xpose.msra.mxu0 0.0
    %1280 = vmatprep.subr.mxu0 0.0
    %1281 = vmatpush2.xpose.msra.mxu0 0.0
    %1282 = vmatprep.subr.mxu0 0.0
    %1283 = vmatpush2.xpose.msra.mxu0 0.0
    %1284 = vmatprep.subr.mxu0 0.0
    %1285 = vmatpush2.xpose.msra.mxu0 0.0
    %1286 = vmatprep.subr.mxu0 0.0
    %1287 = vmatpush2.xpose.msra.mxu0 0.0
    %1288 = vmatprep.subr.mxu0 0.0
    %1289 = vmatpush2.xpose.msra.mxu0 0.0
    %1290 = vmatprep.subr.mxu0 0.0
    %1291 = vmatpush2.xpose.msra.mxu0 0.0
    %1292 = vmatprep.subr.mxu0 0.0
    %1293 = vmatpush2.xpose.msra.mxu0 0.0
    %1294 = vmatprep.subr.mxu0 0.0
    %1295 = vmatpush2.xpose.msra.mxu0 0.0
    %1296 = vmatprep.subr.mxu0 0.0
    %1297 = vmatpush2.xpose.msra.mxu0 0.0
    %1298 = vmatprep.subr.mxu0 0.0
    %1299 = vmatpush2.xpose.msra.mxu0 0.0
    %1300 = vmatprep.subr.mxu0 0.0
    %1301 = vmatpush2.xpose.msra.mxu0 0.0
    %1302 = vmatprep.subr.mxu0 0.0
    %1303 = vmatpush2.xpose.msra.mxu0 0.0
    %1304 = vmatprep.subr.mxu0 0.0
    %1305 = vmatpush2.xpose.msra.mxu0 0.0
    %1306 = vmatprep.mubr.f32.mxu0 0.0
    %1307 = vmatmul.mubr.f32.gmra.mxu0 %v1238
    %v1308 = vpop.f32.mrf.mxu0
    %v1309 = vadd.f32 0.0, %v1308
    %v1310 = vpop.f32.mrf.mxu0
    %1311 = vdwg.mxu0
    %1312 = vrot.lane.b32.xlu0 %v572, 112
    %v1313 = vpop.permute.xlu0 %1312
    %1314 = vrot.lane.b32.xlu0 %v572, 80
    %v1315 = vpop.permute.xlu0 %1314
    %v1316 = vsel %vm578, %v1313, 0
    %v1318 = vsel %vm578, %v1315, 0
    %1320 = vmatprep.subr.mxu0 0.0
    %1321 = vmatpush1.xpose.msra.mxu0 0.0
    %1322 = vmatprep.subr.mxu0 0.0
    %1323 = vmatpush1.xpose.msra.mxu0 0.0
    %1324 = vmatprep.subr.mxu0 0.0
    %1325 = vmatpush1.xpose.msra.mxu0 0.0
    %1326 = vmatprep.subr.mxu0 0.0
    %1327 = vmatpush1.xpose.msra.mxu0 0.0
    %1328 = vmatprep.subr.mxu0 0.0
    %1329 = vmatpush1.xpose.msra.mxu0 0.0
    %1330 = vmatprep.subr.mxu0 0.0
    %1331 = vmatpush1.xpose.msra.mxu0 0.0
    %1332 = vmatprep.subr.mxu0 0.0
    %1333 = vmatpush1.xpose.msra.mxu0 0.0
    %1334 = vmatprep.subr.mxu0 0.0
    %1335 = vmatpush1.xpose.msra.mxu0 0.0
    %1336 = vmatprep.subr.mxu0 0.0
    %1337 = vmatpush1.xpose.msra.mxu0 0.0
    %1338 = vmatprep.subr.mxu0 0.0
    %1339 = vmatpush1.xpose.msra.mxu0 0.0
    %1340 = vmatprep.subr.mxu0 0.0
    %1341 = vmatpush1.xpose.msra.mxu0 0.0
    %1342 = vmatprep.subr.mxu0 0.0
    %1343 = vmatpush1.xpose.msra.mxu0 0.0
    %1344 = vmatprep.subr.mxu0 0.0
    %1345 = vmatpush1.xpose.msra.mxu0 0.0
    %1346 = vmatprep.subr.mxu0 0.0
    %1347 = vmatpush1.xpose.msra.mxu0 0.0
    %1348 = vmatprep.subr.mxu0 0.0
    %1349 = vmatpush1.xpose.msra.mxu0 0.0
    %1350 = vmatprep.subr.mxu0 0.0
    %1351 = vmatpush1.xpose.msra.mxu0 %v1318
    %1352 = vmatprep.subr.mxu0 0.0
    %1353 = vmatpush2.xpose.msra.mxu0 0.0
    %1354 = vmatprep.subr.mxu0 0.0
    %1355 = vmatpush2.xpose.msra.mxu0 0.0
    %1356 = vmatprep.subr.mxu0 0.0
    %1357 = vmatpush2.xpose.msra.mxu0 0.0
    %1358 = vmatprep.subr.mxu0 0.0
    %1359 = vmatpush2.xpose.msra.mxu0 0.0
    %1360 = vmatprep.subr.mxu0 0.0
    %1361 = vmatpush2.xpose.msra.mxu0 0.0
    %1362 = vmatprep.subr.mxu0 0.0
    %1363 = vmatpush2.xpose.msra.mxu0 0.0
    %1364 = vmatprep.subr.mxu0 0.0
    %1365 = vmatpush2.xpose.msra.mxu0 0.0
    %1366 = vmatprep.subr.mxu0 0.0
    %1367 = vmatpush2.xpose.msra.mxu0 0.0
    %1368 = vmatprep.subr.mxu0 0.0
    %1369 = vmatpush2.xpose.msra.mxu0 0.0
    %1370 = vmatprep.subr.mxu0 0.0
    %1371 = vmatpush2.xpose.msra.mxu0 0.0
    %1372 = vmatprep.subr.mxu0 0.0
    %1373 = vmatpush2.xpose.msra.mxu0 0.0
    %1374 = vmatprep.subr.mxu0 0.0
    %1375 = vmatpush2.xpose.msra.mxu0 0.0
    %1376 = vmatprep.subr.mxu0 0.0
    %1377 = vmatpush2.xpose.msra.mxu0 0.0
    %1378 = vmatprep.subr.mxu0 0.0
    %1379 = vmatpush2.xpose.msra.mxu0 0.0
    %1380 = vmatprep.subr.mxu0 0.0
    %1381 = vmatpush2.xpose.msra.mxu0 0.0
    %1382 = vmatprep.subr.mxu0 0.0
    %1383 = vmatpush2.xpose.msra.mxu0 0.0
    %1384 = vmatprep.mubr.f32.mxu0 0.0
    %1385 = vmatmul.mubr.f32.gmra.mxu0 %v1316
    %v1386 = vpop.f32.mrf.mxu0
    %v1387 = vadd.f32 0.0, %v1386
    %v1388 = vpop.f32.mrf.mxu0
    %1389 = vdwg.mxu0
    %v1390 = vsel %vm578, %v1309, -inf
    %1391 = vmax.xlane.f32.xlu0 %v1390
    %v1392 = vpop.xlane.xlu0 %1391
    %v1393 = vsel %vm578, %v1387, -inf
    %1394 = vmax.xlane.f32.xlu0 %v1393
    %v1395 = vpop.xlane.xlu0 %1394
    %v1396 = vsub.f32 %v1309, %v1392
    %v1397 = vsub.f32 %v1387, %v1395
    %v1398 = vmul.f32 %v1396, 1.442695
    %v1399 = vpow.pop %v1398
    %v1400 = vmul.f32 %v1397, 1.442695
    %v1401 = vpow.pop %v1400
    %v1402 = vsel %vm578, %v1399, 0.0
    %1403 = vadd.xlane.f32.xlu0 %v1402
    %v1404 = vpop.xlane.xlu0 %1403
    %v1405 = vsel %vm578, %v1401, 0.0
    %1406 = vadd.xlane.f32.xlu0 %v1405
    %v1407 = vpop.xlane.xlu0 %1406
    %v1408 = vrcp.pop %v1404
    %v1409 = vrcp.pop %v1407
    %v1410 = vmul.f32 %v1399, %v1408
    %v1411 = vmul.f32 %v1401, %v1409
    %1412 = vrot.lane.b32.xlu0 %v567, 48
    %v1413 = vpop.permute.xlu0 %1412
    %v1416 = vsel %vm578, %v1410, 0
    %1418 = vmatprep.subr.mxu0 0.0
    %1419 = vmatpush1.msra.mxu0 0.0
    %1420 = vmatprep.subr.mxu0 0.0
    %1421 = vmatpush1.msra.mxu0 0.0
    %1422 = vmatprep.subr.mxu0 0.0
    %1423 = vmatpush1.msra.mxu0 0.0
    %1424 = vmatprep.subr.mxu0 0.0
    %1425 = vmatpush1.msra.mxu0 0.0
    %1426 = vmatprep.subr.mxu0 0.0
    %1427 = vmatpush1.msra.mxu0 0.0
    %1428 = vmatprep.subr.mxu0 0.0
    %1429 = vmatpush1.msra.mxu0 0.0
    %1430 = vmatprep.subr.mxu0 0.0
    %1431 = vmatpush1.msra.mxu0 0.0
    %1432 = vmatprep.subr.mxu0 0.0
    %1433 = vmatpush1.msra.mxu0 0.0
    %1434 = vmatprep.subr.mxu0 0.0
    %1435 = vmatpush1.msra.mxu0 0.0
    %1436 = vmatprep.subr.mxu0 0.0
    %1437 = vmatpush1.msra.mxu0 0.0
    %1438 = vmatprep.subr.mxu0 0.0
    %1439 = vmatpush1.msra.mxu0 0.0
    %1440 = vmatprep.subr.mxu0 0.0
    %1441 = vmatpush1.msra.mxu0 0.0
    %1442 = vmatprep.subr.mxu0 0.0
    %1443 = vmatpush1.msra.mxu0 0.0
    %1444 = vmatprep.subr.mxu0 0.0
    %1445 = vmatpush1.msra.mxu0 0.0
    %1446 = vmatprep.subr.mxu0 0.0
    %1447 = vmatpush1.msra.mxu0 0.0
    %1448 = vmatprep.subr.mxu0 0.0
    %1449 = vmatpush1.msra.mxu0 %v1413
    %1450 = vmatprep.subr.mxu0 0.0
    %1451 = vmatpush2.msra.mxu0 0.0
    %1452 = vmatprep.subr.mxu0 0.0
    %1453 = vmatpush2.msra.mxu0 0.0
    %1454 = vmatprep.subr.mxu0 0.0
    %1455 = vmatpush2.msra.mxu0 0.0
    %1456 = vmatprep.subr.mxu0 0.0
    %1457 = vmatpush2.msra.mxu0 0.0
    %1458 = vmatprep.subr.mxu0 0.0
    %1459 = vmatpush2.msra.mxu0 0.0
    %1460 = vmatprep.subr.mxu0 0.0
    %1461 = vmatpush2.msra.mxu0 0.0
    %1462 = vmatprep.subr.mxu0 0.0
    %1463 = vmatpush2.msra.mxu0 0.0
    %1464 = vmatprep.subr.mxu0 0.0
    %1465 = vmatpush2.msra.mxu0 0.0
    %1466 = vmatprep.subr.mxu0 0.0
    %1467 = vmatpush2.msra.mxu0 0.0
    %1468 = vmatprep.subr.mxu0 0.0
    %1469 = vmatpush2.msra.mxu0 0.0
    %1470 = vmatprep.subr.mxu0 0.0
    %1471 = vmatpush2.msra.mxu0 0.0
    %1472 = vmatprep.subr.mxu0 0.0
    %1473 = vmatpush2.msra.mxu0 0.0
    %1474 = vmatprep.subr.mxu0 0.0
    %1475 = vmatpush2.msra.mxu0 0.0
    %1476 = vmatprep.subr.mxu0 0.0
    %1477 = vmatpush2.msra.mxu0 0.0
    %1478 = vmatprep.subr.mxu0 0.0
    %1479 = vmatpush2.msra.mxu0 0.0
    %1480 = vmatprep.subr.mxu0 0.0
    %1481 = vmatpush2.msra.mxu0 0.0
    %1482 = vmatprep.mubr.f32.mxu0 0.0
    %1483 = vmatmul.mubr.f32.gmra.mxu0 %v1416
    %v1484 = vpop.f32.mrf.mxu0
    %v1485 = vadd.f32 0.0, %v1484
    %v1486 = vpop.f32.mrf.mxu0
    %1487 = vdwg.mxu0
    %1488 = vrot.lane.b32.xlu0 %v572, 48
    %v1489 = vpop.permute.xlu0 %1488
    %v1492 = vsel %vm578, %v1411, 0
    %1494 = vmatprep.subr.mxu0 0.0
    %1495 = vmatpush1.msra.mxu0 0.0
    %1496 = vmatprep.subr.mxu0 0.0
    %1497 = vmatpush1.msra.mxu0 0.0
    %1498 = vmatprep.subr.mxu0 0.0
    %1499 = vmatpush1.msra.mxu0 0.0
    %1500 = vmatprep.subr.mxu0 0.0
    %1501 = vmatpush1.msra.mxu0 0.0
    %1502 = vmatprep.subr.mxu0 0.0
    %1503 = vmatpush1.msra.mxu0 0.0
    %1504 = vmatprep.subr.mxu0 0.0
    %1505 = vmatpush1.msra.mxu0 0.0
    %1506 = vmatprep.subr.mxu0 0.0
    %1507 = vmatpush1.msra.mxu0 0.0
    %1508 = vmatprep.subr.mxu0 0.0
    %1509 = vmatpush1.msra.mxu0 0.0
    %1510 = vmatprep.subr.mxu0 0.0
    %1511 = vmatpush1.msra.mxu0 0.0
    %1512 = vmatprep.subr.mxu0 0.0
    %1513 = vmatpush1.msra.mxu0 0.0
    %1514 = vmatprep.subr.mxu0 0.0
    %1515 = vmatpush1.msra.mxu0 0.0
    %1516 = vmatprep.subr.mxu0 0.0
    %1517 = vmatpush1.msra.mxu0 0.0
    %1518 = vmatprep.subr.mxu0 0.0
    %1519 = vmatpush1.msra.mxu0 0.0
    %1520 = vmatprep.subr.mxu0 0.0
    %1521 = vmatpush1.msra.mxu0 0.0
    %1522 = vmatprep.subr.mxu0 0.0
    %1523 = vmatpush1.msra.mxu0 0.0
    %1524 = vmatprep.subr.mxu0 0.0
    %1525 = vmatpush1.msra.mxu0 %v1489
    %1526 = vmatprep.subr.mxu0 0.0
    %1527 = vmatpush2.msra.mxu0 0.0
    %1528 = vmatprep.subr.mxu0 0.0
    %1529 = vmatpush2.msra.mxu0 0.0
    %1530 = vmatprep.subr.mxu0 0.0
    %1531 = vmatpush2.msra.mxu0 0.0
    %1532 = vmatprep.subr.mxu0 0.0
    %1533 = vmatpush2.msra.mxu0 0.0
    %1534 = vmatprep.subr.mxu0 0.0
    %1535 = vmatpush2.msra.mxu0 0.0
    %1536 = vmatprep.subr.mxu0 0.0
    %1537 = vmatpush2.msra.mxu0 0.0
    %1538 = vmatprep.subr.mxu0 0.0
    %1539 = vmatpush2.msra.mxu0 0.0
    %1540 = vmatprep.subr.mxu0 0.0
    %1541 = vmatpush2.msra.mxu0 0.0
    %1542 = vmatprep.subr.mxu0 0.0
    %1543 = vmatpush2.msra.mxu0 0.0
    %1544 = vmatprep.subr.mxu0 0.0
    %1545 = vmatpush2.msra.mxu0 0.0
    %1546 = vmatprep.subr.mxu0 0.0
    %1547 = vmatpush2.msra.mxu0 0.0
    %1548 = vmatprep.subr.mxu0 0.0
    %1549 = vmatpush2.msra.mxu0 0.0
    %1550 = vmatprep.subr.mxu0 0.0
    %1551 = vmatpush2.msra.mxu0 0.0
    %1552 = vmatprep.subr.mxu0 0.0
    %1553 = vmatpush2.msra.mxu0 0.0
    %1554 = vmatprep.subr.mxu0 0.0
    %1555 = vmatpush2.msra.mxu0 0.0
    %1556 = vmatprep.subr.mxu0 0.0
    %1557 = vmatpush2.msra.mxu0 0.0
    %1558 = vmatprep.mubr.f32.mxu0 0.0
    %1559 = vmatmul.mubr.f32.gmra.mxu0 %v1492
    %v1560 = vpop.f32.mrf.mxu0
    %v1561 = vadd.f32 0.0, %v1560
    %v1562 = vpop.f32.mrf.mxu0
    %1563 = vdwg.mxu0
    %1564 = vrot.lane.b32.xlu0 %v567, 104
    %v1565 = vpop.permute.xlu0 %1564
    %1566 = vrot.lane.b32.xlu0 %v567, 72
    %v1567 = vpop.permute.xlu0 %1566
    %v1568 = vsel %vm578, %v1565, 0
    %v1570 = vsel %vm578, %v1567, 0
    %1572 = vmatprep.subr.mxu0 0.0
    %1573 = vmatpush1.xpose.msra.mxu0 0.0
    %1574 = vmatprep.subr.mxu0 0.0
    %1575 = vmatpush1.xpose.msra.mxu0 0.0
    %1576 = vmatprep.subr.mxu0 0.0
    %1577 = vmatpush1.xpose.msra.mxu0 0.0
    %1578 = vmatprep.subr.mxu0 0.0
    %1579 = vmatpush1.xpose.msra.mxu0 0.0
    %1580 = vmatprep.subr.mxu0 0.0
    %1581 = vmatpush1.xpose.msra.mxu0 0.0
    %1582 = vmatprep.subr.mxu0 0.0
    %1583 = vmatpush1.xpose.msra.mxu0 0.0
    %1584 = vmatprep.subr.mxu0 0.0
    %1585 = vmatpush1.xpose.msra.mxu0 0.0
    %1586 = vmatprep.subr.mxu0 0.0
    %1587 = vmatpush1.xpose.msra.mxu0 0.0
    %1588 = vmatprep.subr.mxu0 0.0
    %1589 = vmatpush1.xpose.msra.mxu0 0.0
    %1590 = vmatprep.subr.mxu0 0.0
    %1591 = vmatpush1.xpose.msra.mxu0 0.0
    %1592 = vmatprep.subr.mxu0 0.0
    %1593 = vmatpush1.xpose.msra.mxu0 0.0
    %1594 = vmatprep.subr.mxu0 0.0
    %1595 = vmatpush1.xpose.msra.mxu0 0.0
    %1596 = vmatprep.subr.mxu0 0.0
    %1597 = vmatpush1.xpose.msra.mxu0 0.0
    %1598 = vmatprep.subr.mxu0 0.0
    %1599 = vmatpush1.xpose.msra.mxu0 0.0
    %1600 = vmatprep.subr.mxu0 0.0
    %1601 = vmatpush1.xpose.msra.mxu0 0.0
    %1602 = vmatprep.subr.mxu0 0.0
    %1603 = vmatpush1.xpose.msra.mxu0 %v1570
    %1604 = vmatprep.subr.mxu0 0.0
    %1605 = vmatpush2.xpose.msra.mxu0 0.0
    %1606 = vmatprep.subr.mxu0 0.0
    %1607 = vmatpush2.xpose.msra.mxu0 0.0
    %1608 = vmatprep.subr.mxu0 0.0
    %1609 = vmatpush2.xpose.msra.mxu0 0.0
    %1610 = vmatprep.subr.mxu0 0.0
    %1611 = vmatpush2.xpose.msra.mxu0 0.0
    %1612 = vmatprep.subr.mxu0 0.0
    %1613 = vmatpush2.xpose.msra.mxu0 0.0
    %1614 = vmatprep.subr.mxu0 0.0
    %1615 = vmatpush2.xpose.msra.mxu0 0.0
    %1616 = vmatprep.subr.mxu0 0.0
    %1617 = vmatpush2.xpose.msra.mxu0 0.0
    %1618 = vmatprep.subr.mxu0 0.0
    %1619 = vmatpush2.xpose.msra.mxu0 0.0
    %1620 = vmatprep.subr.mxu0 0.0
    %1621 = vmatpush2.xpose.msra.mxu0 0.0
    %1622 = vmatprep.subr.mxu0 0.0
    %1623 = vmatpush2.xpose.msra.mxu0 0.0
    %1624 = vmatprep.subr.mxu0 0.0
    %1625 = vmatpush2.xpose.msra.mxu0 0.0
    %1626 = vmatprep.subr.mxu0 0.0
    %1627 = vmatpush2.xpose.msra.mxu0 0.0
    %1628 = vmatprep.subr.mxu0 0.0
    %1629 = vmatpush2.xpose.msra.mxu0 0.0
    %1630 = vmatprep.subr.mxu0 0.0
    %1631 = vmatpush2.xpose.msra.mxu0 0.0
    %1632 = vmatprep.subr.mxu0 0.0
    %1633 = vmatpush2.xpose.msra.mxu0 0.0
    %1634 = vmatprep.subr.mxu0 0.0
    %1635 = vmatpush2.xpose.msra.mxu0 0.0
    %1636 = vmatprep.mubr.f32.mxu0 0.0
    %1637 = vmatmul.mubr.f32.gmra.mxu0 %v1568
    %v1638 = vpop.f32.mrf.mxu0
    %v1639 = vadd.f32 0.0, %v1638
    %v1640 = vpop.f32.mrf.mxu0
    %1641 = vdwg.mxu0
    %1642 = vrot.lane.b32.xlu0 %v572, 104
    %v1643 = vpop.permute.xlu0 %1642
    %1644 = vrot.lane.b32.xlu0 %v572, 72
    %v1645 = vpop.permute.xlu0 %1644
    %v1646 = vsel %vm578, %v1643, 0
    %v1648 = vsel %vm578, %v1645, 0
    %1650 = vmatprep.subr.mxu0 0.0
    %1651 = vmatpush1.xpose.msra.mxu0 0.0
    %1652 = vmatprep.subr.mxu0 0.0
    %1653 = vmatpush1.xpose.msra.mxu0 0.0
    %1654 = vmatprep.subr.mxu0 0.0
    %1655 = vmatpush1.xpose.msra.mxu0 0.0
    %1656 = vmatprep.subr.mxu0 0.0
    %1657 = vmatpush1.xpose.msra.mxu0 0.0
    %1658 = vmatprep.subr.mxu0 0.0
    %1659 = vmatpush1.xpose.msra.mxu0 0.0
    %1660 = vmatprep.subr.mxu0 0.0
    %1661 = vmatpush1.xpose.msra.mxu0 0.0
    %1662 = vmatprep.subr.mxu0 0.0
    %1663 = vmatpush1.xpose.msra.mxu0 0.0
    %1664 = vmatprep.subr.mxu0 0.0
    %1665 = vmatpush1.xpose.msra.mxu0 0.0
    %1666 = vmatprep.subr.mxu0 0.0
    %1667 = vmatpush1.xpose.msra.mxu0 0.0
    %1668 = vmatprep.subr.mxu0 0.0
    %1669 = vmatpush1.xpose.msra.mxu0 0.0
    %1670 = vmatprep.subr.mxu0 0.0
    %1671 = vmatpush1.xpose.msra.mxu0 0.0
    %1672 = vmatprep.subr.mxu0 0.0
    %1673 = vmatpush1.xpose.msra.mxu0 0.0
    %1674 = vmatprep.subr.mxu0 0.0
    %1675 = vmatpush1.xpose.msra.mxu0 0.0
    %1676 = vmatprep.subr.mxu0 0.0
    %1677 = vmatpush1.xpose.msra.mxu0 0.0
    %1678 = vmatprep.subr.mxu0 0.0
    %1679 = vmatpush1.xpose.msra.mxu0 0.0
    %1680 = vmatprep.subr.mxu0 0.0
    %1681 = vmatpush1.xpose.msra.mxu0 %v1648
    %1682 = vmatprep.subr.mxu0 0.0
    %1683 = vmatpush2.xpose.msra.mxu0 0.0
    %1684 = vmatprep.subr.mxu0 0.0
    %1685 = vmatpush2.xpose.msra.mxu0 0.0
    %1686 = vmatprep.subr.mxu0 0.0
    %1687 = vmatpush2.xpose.msra.mxu0 0.0
    %1688 = vmatprep.subr.mxu0 0.0
    %1689 = vmatpush2.xpose.msra.mxu0 0.0
    %1690 = vmatprep.subr.mxu0 0.0
    %1691 = vmatpush2.xpose.msra.mxu0 0.0
    %1692 = vmatprep.subr.mxu0 0.0
    %1693 = vmatpush2.xpose.msra.mxu0 0.0
    %1694 = vmatprep.subr.mxu0 0.0
    %1695 = vmatpush2.xpose.msra.mxu0 0.0
    %1696 = vmatprep.subr.mxu0 0.0
    %1697 = vmatpush2.xpose.msra.mxu0 0.0
    %1698 = vmatprep.subr.mxu0 0.0
    %1699 = vmatpush2.xpose.msra.mxu0 0.0
    %1700 = vmatprep.subr.mxu0 0.0
    %1701 = vmatpush2.xpose.msra.mxu0 0.0
    %1702 = vmatprep.subr.mxu0 0.0
    %1703 = vmatpush2.xpose.msra.mxu0 0.0
    %1704 = vmatprep.subr.mxu0 0.0
    %1705 = vmatpush2.xpose.msra.mxu0 0.0
    %1706 = vmatprep.subr.mxu0 0.0
    %1707 = vmatpush2.xpose.msra.mxu0 0.0
    %1708 = vmatprep.subr.mxu0 0.0
    %1709 = vmatpush2.xpose.msra.mxu0 0.0
    %1710 = vmatprep.subr.mxu0 0.0
    %1711 = vmatpush2.xpose.msra.mxu0 0.0
    %1712 = vmatprep.subr.mxu0 0.0
    %1713 = vmatpush2.xpose.msra.mxu0 0.0
    %1714 = vmatprep.mubr.f32.mxu0 0.0
    %1715 = vmatmul.mubr.f32.gmra.mxu0 %v1646
    %v1716 = vpop.f32.mrf.mxu0
    %v1717 = vadd.f32 0.0, %v1716
    %v1718 = vpop.f32.mrf.mxu0
    %1719 = vdwg.mxu0
    %v1720 = vsel %vm578, %v1639, -inf
    %1721 = vmax.xlane.f32.xlu0 %v1720
    %v1722 = vpop.xlane.xlu0 %1721
    %v1723 = vsel %vm578, %v1717, -inf
    %1724 = vmax.xlane.f32.xlu0 %v1723
    %v1725 = vpop.xlane.xlu0 %1724
    %v1726 = vsub.f32 %v1639, %v1722
    %v1727 = vsub.f32 %v1717, %v1725
    %v1728 = vmul.f32 %v1726, 1.442695
    %v1729 = vpow.pop %v1728
    %v1730 = vmul.f32 %v1727, 1.442695
    %v1731 = vpow.pop %v1730
    %v1732 = vsel %vm578, %v1729, 0.0
    %1733 = vadd.xlane.f32.xlu0 %v1732
    %v1734 = vpop.xlane.xlu0 %1733
    %v1735 = vsel %vm578, %v1731, 0.0
    %1736 = vadd.xlane.f32.xlu0 %v1735
    %v1737 = vpop.xlane.xlu0 %1736
    %v1738 = vrcp.pop %v1734
    %v1739 = vrcp.pop %v1737
    %v1740 = vmul.f32 %v1729, %v1738
    %v1741 = vmul.f32 %v1731, %v1739
    %1742 = vrot.lane.b32.xlu0 %v567, 40
    %v1743 = vpop.permute.xlu0 %1742
    %v1746 = vsel %vm578, %v1740, 0
    %1748 = vmatprep.subr.mxu0 0.0
    %1749 = vmatpush1.msra.mxu0 0.0
    %1750 = vmatprep.subr.mxu0 0.0
    %1751 = vmatpush1.msra.mxu0 0.0
    %1752 = vmatprep.subr.mxu0 0.0
    %1753 = vmatpush1.msra.mxu0 0.0
    %1754 = vmatprep.subr.mxu0 0.0
    %1755 = vmatpush1.msra.mxu0 0.0
    %1756 = vmatprep.subr.mxu0 0.0
    %1757 = vmatpush1.msra.mxu0 0.0
    %1758 = vmatprep.subr.mxu0 0.0
    %1759 = vmatpush1.msra.mxu0 0.0
    %1760 = vmatprep.subr.mxu0 0.0
    %1761 = vmatpush1.msra.mxu0 0.0
    %1762 = vmatprep.subr.mxu0 0.0
    %1763 = vmatpush1.msra.mxu0 0.0
    %1764 = vmatprep.subr.mxu0 0.0
    %1765 = vmatpush1.msra.mxu0 0.0
    %1766 = vmatprep.subr.mxu0 0.0
    %1767 = vmatpush1.msra.mxu0 0.0
    %1768 = vmatprep.subr.mxu0 0.0
    %1769 = vmatpush1.msra.mxu0 0.0
    %1770 = vmatprep.subr.mxu0 0.0
    %1771 = vmatpush1.msra.mxu0 0.0
    %1772 = vmatprep.subr.mxu0 0.0
    %1773 = vmatpush1.msra.mxu0 0.0
    %1774 = vmatprep.subr.mxu0 0.0
    %1775 = vmatpush1.msra.mxu0 0.0
    %1776 = vmatprep.subr.mxu0 0.0
    %1777 = vmatpush1.msra.mxu0 0.0
    %1778 = vmatprep.subr.mxu0 0.0
    %1779 = vmatpush1.msra.mxu0 %v1743
    %1780 = vmatprep.subr.mxu0 0.0
    %1781 = vmatpush2.msra.mxu0 0.0
    %1782 = vmatprep.subr.mxu0 0.0
    %1783 = vmatpush2.msra.mxu0 0.0
    %1784 = vmatprep.subr.mxu0 0.0
    %1785 = vmatpush2.msra.mxu0 0.0
    %1786 = vmatprep.subr.mxu0 0.0
    %1787 = vmatpush2.msra.mxu0 0.0
    %1788 = vmatprep.subr.mxu0 0.0
    %1789 = vmatpush2.msra.mxu0 0.0
    %1790 = vmatprep.subr.mxu0 0.0
    %1791 = vmatpush2.msra.mxu0 0.0
    %1792 = vmatprep.subr.mxu0 0.0
    %1793 = vmatpush2.msra.mxu0 0.0
    %1794 = vmatprep.subr.mxu0 0.0
    %1795 = vmatpush2.msra.mxu0 0.0
    %1796 = vmatprep.subr.mxu0 0.0
    %1797 = vmatpush2.msra.mxu0 0.0
    %1798 = vmatprep.subr.mxu0 0.0
    %1799 = vmatpush2.msra.mxu0 0.0
    %1800 = vmatprep.subr.mxu0 0.0
    %1801 = vmatpush2.msra.mxu0 0.0
    %1802 = vmatprep.subr.mxu0 0.0
    %1803 = vmatpush2.msra.mxu0 0.0
    %1804 = vmatprep.subr.mxu0 0.0
    %1805 = vmatpush2.msra.mxu0 0.0
    %1806 = vmatprep.subr.mxu0 0.0
    %1807 = vmatpush2.msra.mxu0 0.0
    %1808 = vmatprep.subr.mxu0 0.0
    %1809 = vmatpush2.msra.mxu0 0.0
    %1810 = vmatprep.subr.mxu0 0.0
    %1811 = vmatpush2.msra.mxu0 0.0
    %1812 = vmatprep.mubr.f32.mxu0 0.0
    %1813 = vmatmul.mubr.f32.gmra.mxu0 %v1746
    %v1814 = vpop.f32.mrf.mxu0
    %v1815 = vadd.f32 0.0, %v1814
    %v1816 = vpop.f32.mrf.mxu0
    %1817 = vdwg.mxu0
    %1818 = vrot.lane.b32.xlu0 %v572, 40
    %v1819 = vpop.permute.xlu0 %1818
    %v1822 = vsel %vm578, %v1741, 0
    %1824 = vmatprep.subr.mxu0 0.0
    %1825 = vmatpush1.msra.mxu0 0.0
    %1826 = vmatprep.subr.mxu0 0.0
    %1827 = vmatpush1.msra.mxu0 0.0
    %1828 = vmatprep.subr.mxu0 0.0
    %1829 = vmatpush1.msra.mxu0 0.0
    %1830 = vmatprep.subr.mxu0 0.0
    %1831 = vmatpush1.msra.mxu0 0.0
    %1832 = vmatprep.subr.mxu0 0.0
    %1833 = vmatpush1.msra.mxu0 0.0
    %1834 = vmatprep.subr.mxu0 0.0
    %1835 = vmatpush1.msra.mxu0 0.0
    %1836 = vmatprep.subr.mxu0 0.0
    %1837 = vmatpush1.msra.mxu0 0.0
    %1838 = vmatprep.subr.mxu0 0.0
    %1839 = vmatpush1.msra.mxu0 0.0
    %1840 = vmatprep.subr.mxu0 0.0
    %1841 = vmatpush1.msra.mxu0 0.0
    %1842 = vmatprep.subr.mxu0 0.0
    %1843 = vmatpush1.msra.mxu0 0.0
    %1844 = vmatprep.subr.mxu0 0.0
    %1845 = vmatpush1.msra.mxu0 0.0
    %1846 = vmatprep.subr.mxu0 0.0
    %1847 = vmatpush1.msra.mxu0 0.0
    %1848 = vmatprep.subr.mxu0 0.0
    %1849 = vmatpush1.msra.mxu0 0.0
    %1850 = vmatprep.subr.mxu0 0.0
    %1851 = vmatpush1.msra.mxu0 0.0
    %1852 = vmatprep.subr.mxu0 0.0
    %1853 = vmatpush1.msra.mxu0 0.0
    %1854 = vmatprep.subr.mxu0 0.0
    %1855 = vmatpush1.msra.mxu0 %v1819
    %1856 = vmatprep.subr.mxu0 0.0
    %1857 = vmatpush2.msra.mxu0 0.0
    %1858 = vmatprep.subr.mxu0 0.0
    %1859 = vmatpush2.msra.mxu0 0.0
    %1860 = vmatprep.subr.mxu0 0.0
    %1861 = vmatpush2.msra.mxu0 0.0
    %1862 = vmatprep.subr.mxu0 0.0
    %1863 = vmatpush2.msra.mxu0 0.0
    %1864 = vmatprep.subr.mxu0 0.0
    %1865 = vmatpush2.msra.mxu0 0.0
    %1866 = vmatprep.subr.mxu0 0.0
    %1867 = vmatpush2.msra.mxu0 0.0
    %1868 = vmatprep.subr.mxu0 0.0
    %1869 = vmatpush2.msra.mxu0 0.0
    %1870 = vmatprep.subr.mxu0 0.0
    %1871 = vmatpush2.msra.mxu0 0.0
    %1872 = vmatprep.subr.mxu0 0.0
    %1873 = vmatpush2.msra.mxu0 0.0
    %1874 = vmatprep.subr.mxu0 0.0
    %1875 = vmatpush2.msra.mxu0 0.0
    %1876 = vmatprep.subr.mxu0 0.0
    %1877 = vmatpush2.msra.mxu0 0.0
    %1878 = vmatprep.subr.mxu0 0.0
    %1879 = vmatpush2.msra.mxu0 0.0
    %1880 = vmatprep.subr.mxu0 0.0
    %1881 = vmatpush2.msra.mxu0 0.0
    %1882 = vmatprep.subr.mxu0 0.0
    %1883 = vmatpush2.msra.mxu0 0.0
    %1884 = vmatprep.subr.mxu0 0.0
    %1885 = vmatpush2.msra.mxu0 0.0
    %1886 = vmatprep.subr.mxu0 0.0
    %1887 = vmatpush2.msra.mxu0 0.0
    %1888 = vmatprep.mubr.f32.mxu0 0.0
    %1889 = vmatmul.mubr.f32.gmra.mxu0 %v1822
    %v1890 = vpop.f32.mrf.mxu0
    %v1891 = vadd.f32 0.0, %v1890
    %v1892 = vpop.f32.mrf.mxu0
    %1893 = vdwg.mxu0
    %1896 = vrot.lane.b32.xlu0 %v1155, 8
    %v1897 = vpop.permute.xlu0 %1896
    %1898 = vrot.lane.b32.xlu0 %v1231, 8
    %v1899 = vpop.permute.xlu0 %1898
    %1904 = vrot.lane.b32.xlu0 %v1485, 16
    %v1905 = vpop.permute.xlu0 %1904
    %1906 = vrot.lane.b32.xlu0 %v1561, 16
    %v1907 = vpop.permute.xlu0 %1906
    %1912 = vrot.lane.b32.xlu0 %v1815, 24
    %v1913 = vpop.permute.xlu0 %1912
    %1914 = vrot.lane.b32.xlu0 %v1891, 24
    %v1915 = vpop.permute.xlu0 %1914
    %v1918 = vsel %vm578, %v825, %v1897
    %v1919 = vsel %vm578, %v901, %v1899
    %v1920 = vsel %vm217, %v1918, %v1905
    %v1921 = vsel %vm217, %v1919, %v1907
    %vm1922 = vcmask 195584
    %v1923 = vsel %vm1922, %v1920, %v1913
    %v1924 = vsel %vm1922, %v1921, %v1915
    %v1925 = vld [vmem:[%s13] sm:$0xff]
    %v1926 = vld [vmem:[%s13 + $0x8] sm:$0xff]
    %v1927 = vld [vmem:[%s13 + $0x10] sm:$0xff]
    %v1928 = vld [vmem:[%s13 + $0x18] sm:$0xff]
    %v1930 = vsel %vm439, %v1923, 0
    %v1933 = vsel %vm439, %v1924, 0
    %1935 = vmatprep.subr.mxu0 0.0
    %1936 = vmatpush1.msra.mxu0 0.0
    %1937 = vmatprep.subr.mxu0 0.0
    %1938 = vmatpush1.msra.mxu0 0.0
    %1939 = vmatprep.subr.mxu0 0.0
    %1940 = vmatpush1.msra.mxu0 0.0
    %1941 = vmatprep.subr.mxu0 0.0
    %1942 = vmatpush1.msra.mxu0 0.0
    %1943 = vmatprep.subr.mxu0 0.0
    %1944 = vmatpush1.msra.mxu0 0.0
    %1945 = vmatprep.subr.mxu0 0.0
    %1946 = vmatpush1.msra.mxu0 0.0
    %1947 = vmatprep.subr.mxu0 0.0
    %1948 = vmatpush1.msra.mxu0 0.0
    %1949 = vmatprep.subr.mxu0 0.0
    %1950 = vmatpush1.msra.mxu0 0.0
    %1951 = vmatprep.subr.mxu0 0.0
    %1952 = vmatpush1.msra.mxu0 0.0
    %1953 = vmatprep.subr.mxu0 0.0
    %1954 = vmatpush1.msra.mxu0 0.0
    %1955 = vmatprep.subr.mxu0 0.0
    %1956 = vmatpush1.msra.mxu0 0.0
    %1957 = vmatprep.subr.mxu0 0.0
    %1958 = vmatpush1.msra.mxu0 0.0
    %1959 = vmatprep.subr.mxu0 0.0
    %1960 = vmatpush1.msra.mxu0 %v1928
    %1961 = vmatprep.subr.mxu0 0.0
    %1962 = vmatpush1.msra.mxu0 %v1927
    %1963 = vmatprep.subr.mxu0 0.0
    %1964 = vmatpush1.msra.mxu0 %v1926
    %1965 = vmatprep.subr.mxu0 0.0
    %1966 = vmatpush1.msra.mxu0 %v1925
    %1967 = vmatprep.subr.mxu0 0.0
    %1968 = vmatpush2.msra.mxu0 0.0
    %1969 = vmatprep.subr.mxu0 0.0
    %1970 = vmatpush2.msra.mxu0 0.0
    %1971 = vmatprep.subr.mxu0 0.0
    %1972 = vmatpush2.msra.mxu0 0.0
    %1973 = vmatprep.subr.mxu0 0.0
    %1974 = vmatpush2.msra.mxu0 0.0
    %1975 = vmatprep.subr.mxu0 0.0
    %1976 = vmatpush2.msra.mxu0 0.0
    %1977 = vmatprep.subr.mxu0 0.0
    %1978 = vmatpush2.msra.mxu0 0.0
    %1979 = vmatprep.subr.mxu0 0.0
    %1980 = vmatpush2.msra.mxu0 0.0
    %1981 = vmatprep.subr.mxu0 0.0
    %1982 = vmatpush2.msra.mxu0 0.0
    %1983 = vmatprep.subr.mxu0 0.0
    %1984 = vmatpush2.msra.mxu0 0.0
    %1985 = vmatprep.subr.mxu0 0.0
    %1986 = vmatpush2.msra.mxu0 0.0
    %1987 = vmatprep.subr.mxu0 0.0
    %1988 = vmatpush2.msra.mxu0 0.0
    %1989 = vmatprep.subr.mxu0 0.0
    %1990 = vmatpush2.msra.mxu0 0.0
    %1991 = vmatprep.subr.mxu0 0.0
    %1992 = vmatpush2.msra.mxu0 0.0
    %1993 = vmatprep.subr.mxu0 0.0
    %1994 = vmatpush2.msra.mxu0 0.0
    %1995 = vmatprep.subr.mxu0 0.0
    %1996 = vmatpush2.msra.mxu0 0.0
    %1997 = vmatprep.subr.mxu0 0.0
    %1998 = vmatpush2.msra.mxu0 0.0
    %1999 = vmatprep.mubr.f32.mxu0 0.0
    %2000 = vmatmul.mubr.f32.gmra.mxu0 %v1930
    %v2001 = vpop.f32.mrf.mxu0
    %v2002 = vadd.f32 0.0, %v2001
    %v2003 = vpop.f32.mrf.mxu0
    %2004 = vmatprep.mubr.f32.mxu0 0.0
    %2005 = vmatmul.mubr.f32.gmra.mxu0 %v1933
    %v2006 = vpop.f32.mrf.mxu0
    %v2007 = vadd.f32 0.0, %v2006
    %v2008 = vpop.f32.mrf.mxu0
    %2009 = vdwg.mxu0
    %v2010 = vadd.f32 %v435, %v2002
    %v2011 = vadd.f32 %v436, %v2007
    %v2012 = vld [vmem:[#allocation11] sm:$0x1]
    %v2014 = vlaneseq
    %v2015 = vshrl.u32 %v2014, 7
    %v2016 = vsub.s32 0, %v2015
    %v2017 = vrot.slane %v2012, %v2016
    %v2019 = vadd.f32 %v2010, %v2017
    %v2020 = vadd.f32 %v2011, %v2017
    %v2021 = vld [vmem:[#allocation13] sm:$0x1]
    %v2022 = vld [vmem:[#allocation14] sm:$0x1]
    %v2023 = vsel %vm439, %v2019, 0.0
    %2024 = vadd.xlane.f32.xlu0 %v2023
    %v2025 = vpop.xlane.xlu0 %2024
    %v2026 = vsel %vm439, %v2020, 0.0
    %2027 = vadd.xlane.f32.xlu0 %v2026
    %v2028 = vpop.xlane.xlu0 %2027
    %v2029 = vmul.f32 %v2025, %v446
    %v2030 = vmul.f32 %v2028, %v446
    %v2031 = vsub.f32 %v2019, %v2029
    %v2032 = vsub.f32 %v2020, %v2030
    %v2033 = vmul.f32 %v2031, %v2031
    %v2034 = vmul.f32 %v2032, %v2032
    %v2035 = vsel %vm439, %v2033, 0.0
    %2036 = vadd.xlane.f32.xlu0 %v2035
    %v2037 = vpop.xlane.xlu0 %2036
    %v2038 = vsel %vm439, %v2034, 0.0
    %2039 = vadd.xlane.f32.xlu0 %v2038
    %v2040 = vpop.xlane.xlu0 %2039
    %v2041 = vmul.f32 %v2037, %v446
    %v2042 = vmul.f32 %v2040, %v446
    %v2043 = vadd.f32 %v2041, 1e-05
    %v2044 = vadd.f32 %v2042, 1e-05
    %v2045 = vrsqrt.pop %v2043
    %v2046 = vrsqrt.pop %v2044
    %v2047 = vmul.f32 %v2031, %v2045
    %v2048 = vmul.f32 %v2032, %v2046
    %v2050 = vlaneseq
    %v2051 = vshrl.u32 %v2050, 7
    %v2052 = vsub.s32 0, %v2051
    %v2053 = vrot.slane %v2021, %v2052
    %v2055 = vmul.f32 %v2047, %v2053
    %v2056 = vmul.f32 %v2048, %v2053
    %v2058 = vlaneseq
    %v2059 = vshrl.u32 %v2058, 7
    %v2060 = vsub.s32 0, %v2059
    %v2061 = vrot.slane %v2022, %v2060
    %v2063 = vadd.f32 %v2055, %v2061
    %v2064 = vadd.f32 %v2056, %v2061
    %v2065 = vld [vmem:[%s17] sm:$0xff]
    %v2066 = vld [vmem:[%s17 + $0x8] sm:$0xff]
    %v2067 = vld [vmem:[%s17 + $0x10] sm:$0xff]
    %v2068 = vld [vmem:[%s17 + $0x18] sm:$0xff]
    %v2069 = vld [vmem:[#allocation16] sm:$0x1]
    %v2071 = vlaneseq
    %v2072 = vshrl.u32 %v2071, 7
    %v2073 = vsub.s32 0, %v2072
    %v2074 = vrot.slane %v2069, %v2073
    %v2077 = vsel %vm439, %v2063, 0
    %v2080 = vsel %vm439, %v2064, 0
    %2082 = vmatprep.subr.mxu0 0.0
    %2083 = vmatpush1.msra.mxu0 0.0
    %2084 = vmatprep.subr.mxu0 0.0
    %2085 = vmatpush1.msra.mxu0 0.0
    %2086 = vmatprep.subr.mxu0 0.0
    %2087 = vmatpush1.msra.mxu0 0.0
    %2088 = vmatprep.subr.mxu0 0.0
    %2089 = vmatpush1.msra.mxu0 0.0
    %2090 = vmatprep.subr.mxu0 0.0
    %2091 = vmatpush1.msra.mxu0 0.0
    %2092 = vmatprep.subr.mxu0 0.0
    %2093 = vmatpush1.msra.mxu0 0.0
    %2094 = vmatprep.subr.mxu0 0.0
    %2095 = vmatpush1.msra.mxu0 0.0
    %2096 = vmatprep.subr.mxu0 0.0
    %2097 = vmatpush1.msra.mxu0 0.0
    %2098 = vmatprep.subr.mxu0 0.0
    %2099 = vmatpush1.msra.mxu0 0.0
    %2100 = vmatprep.subr.mxu0 0.0
    %2101 = vmatpush1.msra.mxu0 0.0
    %2102 = vmatprep.subr.mxu0 0.0
    %2103 = vmatpush1.msra.mxu0 0.0
    %2104 = vmatprep.subr.mxu0 0.0
    %2105 = vmatpush1.msra.mxu0 0.0
    %2106 = vmatprep.subr.mxu0 0.0
    %2107 = vmatpush1.msra.mxu0 %v2068
    %2108 = vmatprep.subr.mxu0 0.0
    %2109 = vmatpush1.msra.mxu0 %v2067
    %2110 = vmatprep.subr.mxu0 0.0
    %2111 = vmatpush1.msra.mxu0 %v2066
    %2112 = vmatprep.subr.mxu0 0.0
    %2113 = vmatpush1.msra.mxu0 %v2065
    %2114 = vmatprep.subr.mxu0 0.0
    %2115 = vmatpush2.msra.mxu0 0.0
    %2116 = vmatprep.subr.mxu0 0.0
    %2117 = vmatpush2.msra.mxu0 0.0
    %2118 = vmatprep.subr.mxu0 0.0
    %2119 = vmatpush2.msra.mxu0 0.0
    %2120 = vmatprep.subr.mxu0 0.0
    %2121 = vmatpush2.msra.mxu0 0.0
    %2122 = vmatprep.subr.mxu0 0.0
    %2123 = vmatpush2.msra.mxu0 0.0
    %2124 = vmatprep.subr.mxu0 0.0
    %2125 = vmatpush2.msra.mxu0 0.0
    %2126 = vmatprep.subr.mxu0 0.0
    %2127 = vmatpush2.msra.mxu0 0.0
    %2128 = vmatprep.subr.mxu0 0.0
    %2129 = vmatpush2.msra.mxu0 0.0
    %2130 = vmatprep.subr.mxu0 0.0
    %2131 = vmatpush2.msra.mxu0 0.0
    %2132 = vmatprep.subr.mxu0 0.0
    %2133 = vmatpush2.msra.mxu0 0.0
    %2134 = vmatprep.subr.mxu0 0.0
    %2135 = vmatpush2.msra.mxu0 0.0
    %2136 = vmatprep.subr.mxu0 0.0
    %2137 = vmatpush2.msra.mxu0 0.0
    %2138 = vmatprep.subr.mxu0 0.0
    %2139 = vmatpush2.msra.mxu0 0.0
    %2140 = vmatprep.subr.mxu0 0.0
    %2141 = vmatpush2.msra.mxu0 0.0
    %2142 = vmatprep.subr.mxu0 0.0
    %2143 = vmatpush2.msra.mxu0 0.0
    %2144 = vmatprep.subr.mxu0 0.0
    %2145 = vmatpush2.msra.mxu0 0.0
    %2146 = vmatprep.mubr.f32.mxu0 0.0
    %2147 = vmatmul.mubr.f32.gmra.mxu0 %v2077
    %v2148 = vpop.f32.mrf.mxu0
    %v2149 = vadd.f32 %v2074, %v2148
    %v2150 = vpop.f32.mrf.mxu0
    %2151 = vmatprep.mubr.f32.mxu0 0.0
    %2152 = vmatmul.mubr.f32.gmra.mxu0 %v2080
    %v2153 = vpop.f32.mrf.mxu0
    %v2154 = vadd.f32 %v2074, %v2153
    %v2155 = vpop.f32.mrf.mxu0
    %2156 = vdwg.mxu0
    %v2157 = vmul.f32 %v2149, 0.5
    %v2158 = vmul.f32 %v2154, 0.5
    %v2159 = vmul.f32 %v2149, 0.70710677
    %v2160 = vmul.f32 %v2154, 0.70710677
    %v2161 = verf.f32.pop %v2159
    %v2162 = verf.f32.pop %v2160
    %v2163 = vadd.f32 %v2161, 1.0
    %v2164 = vadd.f32 %v2162, 1.0
    %v2165 = vmul.f32 %v2157, %v2163
    %v2166 = vmul.f32 %v2158, %v2164
    %v2167 = vld [vmem:[%s19] sm:$0xff]
    %v2168 = vld [vmem:[%s19 + $0x8] sm:$0xff]
    %v2169 = vld [vmem:[%s19 + $0x10] sm:$0xff]
    %v2170 = vld [vmem:[%s19 + $0x18] sm:$0xff]
    %v2171 = vld [vmem:[%s19 + $0x20] sm:$0xff]
    %v2172 = vld [vmem:[%s19 + $0x28] sm:$0xff]
    %v2173 = vld [vmem:[%s19 + $0x30] sm:$0xff]
    %v2174 = vld [vmem:[%s19 + $0x38] sm:$0xff]
    %vm2175 = vcmask 523264
    %v2177 = vsel %vm2175, %v2165, 0
    %v2180 = vsel %vm2175, %v2166, 0
    %2182 = vmatprep.subr.mxu0 0.0
    %2183 = vmatpush1.msra.mxu0 0.0
    %2184 = vmatprep.subr.mxu0 0.0
    %2185 = vmatpush1.msra.mxu0 0.0
    %2186 = vmatprep.subr.mxu0 0.0
    %2187 = vmatpush1.msra.mxu0 0.0
    %2188 = vmatprep.subr.mxu0 0.0
    %2189 = vmatpush1.msra.mxu0 0.0
    %2190 = vmatprep.subr.mxu0 0.0
    %2191 = vmatpush1.msra.mxu0 0.0
    %2192 = vmatprep.subr.mxu0 0.0
    %2193 = vmatpush1.msra.mxu0 0.0
    %2194 = vmatprep.subr.mxu0 0.0
    %2195 = vmatpush1.msra.mxu0 0.0
    %2196 = vmatprep.subr.mxu0 0.0
    %2197 = vmatpush1.msra.mxu0 0.0
    %2198 = vmatprep.subr.mxu0 0.0
    %2199 = vmatpush1.msra.mxu0 %v2174
    %2200 = vmatprep.subr.mxu0 0.0
    %2201 = vmatpush1.msra.mxu0 %v2173
    %2202 = vmatprep.subr.mxu0 0.0
    %2203 = vmatpush1.msra.mxu0 %v2172
    %2204 = vmatprep.subr.mxu0 0.0
    %2205 = vmatpush1.msra.mxu0 %v2171
    %2206 = vmatprep.subr.mxu0 0.0
    %2207 = vmatpush1.msra.mxu0 %v2170
    %2208 = vmatprep.subr.mxu0 0.0
    %2209 = vmatpush1.msra.mxu0 %v2169
    %2210 = vmatprep.subr.mxu0 0.0
    %2211 = vmatpush1.msra.mxu0 %v2168
    %2212 = vmatprep.subr.mxu0 0.0
    %2213 = vmatpush1.msra.mxu0 %v2167
    %2214 = vmatprep.subr.mxu0 0.0
    %2215 = vmatpush2.msra.mxu0 0.0
    %2216 = vmatprep.subr.mxu0 0.0
    %2217 = vmatpush2.msra.mxu0 0.0
    %2218 = vmatprep.subr.mxu0 0.0
    %2219 = vmatpush2.msra.mxu0 0.0
    %2220 = vmatprep.subr.mxu0 0.0
    %2221 = vmatpush2.msra.mxu0 0.0
    %2222 = vmatprep.subr.mxu0 0.0
    %2223 = vmatpush2.msra.mxu0 0.0
    %2224 = vmatprep.subr.mxu0 0.0
    %2225 = vmatpush2.msra.mxu0 0.0
    %2226 = vmatprep.subr.mxu0 0.0
    %2227 = vmatpush2.msra.mxu0 0.0
    %2228 = vmatprep.subr.mxu0 0.0
    %2229 = vmatpush2.msra.mxu0 0.0
    %2230 = vmatprep.subr.mxu0 0.0
    %2231 = vmatpush2.msra.mxu0 0.0
    %2232 = vmatprep.subr.mxu0 0.0
    %2233 = vmatpush2.msra.mxu0 0.0
    %2234 = vmatprep.subr.mxu0 0.0
    %2235 = vmatpush2.msra.mxu0 0.0
    %2236 = vmatprep.subr.mxu0 0.0
    %2237 = vmatpush2.msra.mxu0 0.0
    %2238 = vmatprep.subr.mxu0 0.0
    %2239 = vmatpush2.msra.mxu0 0.0
    %2240 = vmatprep.subr.mxu0 0.0
    %2241 = vmatpush2.msra.mxu0 0.0
    %2242 = vmatprep.subr.mxu0 0.0
    %2243 = vmatpush2.msra.mxu0 0.0
    %2244 = vmatprep.subr.mxu0 0.0
    %2245 = vmatpush2.msra.mxu0 0.0
    %2246 = vmatprep.mubr.f32.mxu0 0.0
    %2247 = vmatmul.mubr.f32.gmra.mxu0 %v2177
    %v2248 = vpop.f32.mrf.mxu0
    %v2249 = vadd.f32 0.0, %v2248
    %v2250 = vpop.f32.mrf.mxu0
    %2251 = vmatprep.mubr.f32.mxu0 0.0
    %2252 = vmatmul.mubr.f32.gmra.mxu0 %v2180
    %v2253 = vpop.f32.mrf.mxu0
    %v2254 = vadd.f32 0.0, %v2253
    %v2255 = vpop.f32.mrf.mxu0
    %2256 = vdwg.mxu0
    %v2257 = vadd.f32 %v2019, %v2249
    %v2258 = vadd.f32 %v2020, %v2254
    %v2259 = vld [vmem:[#allocation17] sm:$0x1]
    %v2261 = vlaneseq
    %v2262 = vshrl.u32 %v2261, 7
    %v2263 = vsub.s32 0, %v2262
    %v2264 = vrot.slane %v2259, %v2263
    %v2266 = vadd.f32 %v2257, %v2264
    %v2267 = vadd.f32 %v2258, %v2264
    %s2268 = scalar_lea.vmem %s9, 1
    %v2269 = vld [vmem:[%s2268] sm:$0x1]
    %s2270 = scalar_lea.vmem %s10, 1
    %v2271 = vld [vmem:[%s2270] sm:$0x1]
    %v2272 = vsel %vm439, %v2266, 0.0
    %2273 = vadd.xlane.f32.xlu0 %v2272
    %v2274 = vpop.xlane.xlu0 %2273
    %v2275 = vsel %vm439, %v2267, 0.0
    %2276 = vadd.xlane.f32.xlu0 %v2275
    %v2277 = vpop.xlane.xlu0 %2276
    %v2278 = vmul.f32 %v2274, %v446
    %v2279 = vmul.f32 %v2277, %v446
    %v2280 = vsub.f32 %v2266, %v2278
    %v2281 = vsub.f32 %v2267, %v2279
    %v2282 = vmul.f32 %v2280, %v2280
    %v2283 = vmul.f32 %v2281, %v2281
    %v2284 = vsel %vm439, %v2282, 0.0
    %2285 = vadd.xlane.f32.xlu0 %v2284
    %v2286 = vpop.xlane.xlu0 %2285
    %v2287 = vsel %vm439, %v2283, 0.0
    %2288 = vadd.xlane.f32.xlu0 %v2287
    %v2289 = vpop.xlane.xlu0 %2288
    %v2290 = vmul.f32 %v2286, %v446
    %v2291 = vmul.f32 %v2289, %v446
    %v2292 = vadd.f32 %v2290, 1e-05
    %v2293 = vadd.f32 %v2291, 1e-05
    %v2294 = vrsqrt.pop %v2292
    %v2295 = vrsqrt.pop %v2293
    %v2296 = vmul.f32 %v2280, %v2294
    %v2297 = vmul.f32 %v2281, %v2295
    %v2299 = vlaneseq
    %v2300 = vshrl.u32 %v2299, 7
    %v2301 = vsub.s32 0, %v2300
    %v2302 = vrot.slane %v2269, %v2301
    %v2304 = vmul.f32 %v2296, %v2302
    %v2305 = vmul.f32 %v2297, %v2302
    %v2307 = vlaneseq
    %v2308 = vshrl.u32 %v2307, 7
    %v2309 = vsub.s32 0, %v2308
    %v2310 = vrot.slane %v2271, %v2309
    %v2312 = vadd.f32 %v2304, %v2310
    %v2313 = vadd.f32 %v2305, %v2310
    %s2314 = scalar_lea.vmem %s11, 32
    %v2315 = vld [vmem:[%s2314] sm:$0xff]
    %v2316 = vld [vmem:[%s2314 + $0x8] sm:$0xff]
    %v2317 = vld [vmem:[%s2314 + $0x10] sm:$0xff]
    %v2318 = vld [vmem:[%s2314 + $0x18] sm:$0xff]
    %s2319 = scalar_lea.vmem %s12, 1
    %v2320 = vld [vmem:[%s2319] sm:$0x1]
    %v2322 = vlaneseq
    %v2323 = vshrl.u32 %v2322, 7
    %v2324 = vsub.s32 0, %v2323
    %v2325 = vrot.slane %v2320, %v2324
    %v2328 = vsel %vm439, %v2312, 0
    %v2331 = vsel %vm439, %v2313, 0
    %2333 = vmatprep.subr.mxu0 0.0
    %2334 = vmatpush1.msra.mxu0 0.0
    %2335 = vmatprep.subr.mxu0 0.0
    %2336 = vmatpush1.msra.mxu0 0.0
    %2337 = vmatprep.subr.mxu0 0.0
    %2338 = vmatpush1.msra.mxu0 0.0
    %2339 = vmatprep.subr.mxu0 0.0
    %2340 = vmatpush1.msra.mxu0 0.0
    %2341 = vmatprep.subr.mxu0 0.0
    %2342 = vmatpush1.msra.mxu0 0.0
    %2343 = vmatprep.subr.mxu0 0.0
    %2344 = vmatpush1.msra.mxu0 0.0
    %2345 = vmatprep.subr.mxu0 0.0
    %2346 = vmatpush1.msra.mxu0 0.0
    %2347 = vmatprep.subr.mxu0 0.0
    %2348 = vmatpush1.msra.mxu0 0.0
    %2349 = vmatprep.subr.mxu0 0.0
    %2350 = vmatpush1.msra.mxu0 0.0
    %2351 = vmatprep.subr.mxu0 0.0
    %2352 = vmatpush1.msra.mxu0 0.0
    %2353 = vmatprep.subr.mxu0 0.0
    %2354 = vmatpush1.msra.mxu0 0.0
    %2355 = vmatprep.subr.mxu0 0.0
    %2356 = vmatpush1.msra.mxu0 0.0
    %2357 = vmatprep.subr.mxu0 0.0
    %2358 = vmatpush1.msra.mxu0 %v2318
    %2359 = vmatprep.subr.mxu0 0.0
    %2360 = vmatpush1.msra.mxu0 %v2317
    %2361 = vmatprep.subr.mxu0 0.0
    %2362 = vmatpush1.msra.mxu0 %v2316
    %2363 = vmatprep.subr.mxu0 0.0
    %2364 = vmatpush1.msra.mxu0 %v2315
    %2365 = vmatprep.subr.mxu0 0.0
    %2366 = vmatpush2.msra.mxu0 0.0
    %2367 = vmatprep.subr.mxu0 0.0
    %2368 = vmatpush2.msra.mxu0 0.0
    %2369 = vmatprep.subr.mxu0 0.0
    %2370 = vmatpush2.msra.mxu0 0.0
    %2371 = vmatprep.subr.mxu0 0.0
    %2372 = vmatpush2.msra.mxu0 0.0
    %2373 = vmatprep.subr.mxu0 0.0
    %2374 = vmatpush2.msra.mxu0 0.0
    %2375 = vmatprep.subr.mxu0 0.0
    %2376 = vmatpush2.msra.mxu0 0.0
    %2377 = vmatprep.subr.mxu0 0.0
    %2378 = vmatpush2.msra.mxu0 0.0
    %2379 = vmatprep.subr.mxu0 0.0
    %2380 = vmatpush2.msra.mxu0 0.0
    %2381 = vmatprep.subr.mxu0 0.0
    %2382 = vmatpush2.msra.mxu0 0.0
    %2383 = vmatprep.subr.mxu0 0.0
    %2384 = vmatpush2.msra.mxu0 0.0
    %2385 = vmatprep.subr.mxu0 0.0
    %2386 = vmatpush2.msra.mxu0 0.0
    %2387 = vmatprep.subr.mxu0 0.0
    %2388 = vmatpush2.msra.mxu0 0.0
    %2389 = vmatprep.subr.mxu0 0.0
    %2390 = vmatpush2.msra.mxu0 0.0
    %2391 = vmatprep.subr.mxu0 0.0
    %2392 = vmatpush2.msra.mxu0 0.0
    %2393 = vmatprep.subr.mxu0 0.0
    %2394 = vmatpush2.msra.mxu0 0.0
    %2395 = vmatprep.subr.mxu0 0.0
    %2396 = vmatpush2.msra.mxu0 0.0
    %2397 = vmatprep.mubr.f32.mxu0 0.0
    %2398 = vmatmul.mubr.f32.gmra.mxu0 %v2328
    %v2399 = vpop.f32.mrf.mxu0
    %v2400 = vadd.f32 %v2325, %v2399
    %v2401 = vpop.f32.mrf.mxu0
    %2402 = vmatprep.mubr.f32.mxu0 0.0
    %2403 = vmatmul.mubr.f32.gmra.mxu0 %v2331
    %v2404 = vpop.f32.mrf.mxu0
    %v2405 = vadd.f32 %v2325, %v2404
    %v2406 = vpop.f32.mrf.mxu0
    %2407 = vdwg.mxu0
    %2409 = vrot.lane.b32.xlu0 %v2400, 96
    %v2410 = vpop.permute.xlu0 %2409
    %v2411 = vsel %vm578, %v2400, 0
    %v2413 = vsel %vm578, %v2410, 0
    %2415 = vmatprep.subr.mxu0 0.0
    %2416 = vmatpush1.xpose.msra.mxu0 0.0
    %2417 = vmatprep.subr.mxu0 0.0
    %2418 = vmatpush1.xpose.msra.mxu0 0.0
    %2419 = vmatprep.subr.mxu0 0.0
    %2420 = vmatpush1.xpose.msra.mxu0 0.0
    %2421 = vmatprep.subr.mxu0 0.0
    %2422 = vmatpush1.xpose.msra.mxu0 0.0
    %2423 = vmatprep.subr.mxu0 0.0
    %2424 = vmatpush1.xpose.msra.mxu0 0.0
    %2425 = vmatprep.subr.mxu0 0.0
    %2426 = vmatpush1.xpose.msra.mxu0 0.0
    %2427 = vmatprep.subr.mxu0 0.0
    %2428 = vmatpush1.xpose.msra.mxu0 0.0
    %2429 = vmatprep.subr.mxu0 0.0
    %2430 = vmatpush1.xpose.msra.mxu0 0.0
    %2431 = vmatprep.subr.mxu0 0.0
    %2432 = vmatpush1.xpose.msra.mxu0 0.0
    %2433 = vmatprep.subr.mxu0 0.0
    %2434 = vmatpush1.xpose.msra.mxu0 0.0
    %2435 = vmatprep.subr.mxu0 0.0
    %2436 = vmatpush1.xpose.msra.mxu0 0.0
    %2437 = vmatprep.subr.mxu0 0.0
    %2438 = vmatpush1.xpose.msra.mxu0 0.0
    %2439 = vmatprep.subr.mxu0 0.0
    %2440 = vmatpush1.xpose.msra.mxu0 0.0
    %2441 = vmatprep.subr.mxu0 0.0
    %2442 = vmatpush1.xpose.msra.mxu0 0.0
    %2443 = vmatprep.subr.mxu0 0.0
    %2444 = vmatpush1.xpose.msra.mxu0 0.0
    %2445 = vmatprep.subr.mxu0 0.0
    %2446 = vmatpush1.xpose.msra.mxu0 %v2413
    %2447 = vmatprep.subr.mxu0 0.0
    %2448 = vmatpush2.xpose.msra.mxu0 0.0
    %2449 = vmatprep.subr.mxu0 0.0
    %2450 = vmatpush2.xpose.msra.mxu0 0.0
    %2451 = vmatprep.subr.mxu0 0.0
    %2452 = vmatpush2.xpose.msra.mxu0 0.0
    %2453 = vmatprep.subr.mxu0 0.0
    %2454 = vmatpush2.xpose.msra.mxu0 0.0
    %2455 = vmatprep.subr.mxu0 0.0
    %2456 = vmatpush2.xpose.msra.mxu0 0.0
    %2457 = vmatprep.subr.mxu0 0.0
    %2458 = vmatpush2.xpose.msra.mxu0 0.0
    %2459 = vmatprep.subr.mxu0 0.0
    %2460 = vmatpush2.xpose.msra.mxu0 0.0
    %2461 = vmatprep.subr.mxu0 0.0
    %2462 = vmatpush2.xpose.msra.mxu0 0.0
    %2463 = vmatprep.subr.mxu0 0.0
    %2464 = vmatpush2.xpose.msra.mxu0 0.0
    %2465 = vmatprep.subr.mxu0 0.0
    %2466 = vmatpush2.xpose.msra.mxu0 0.0
    %2467 = vmatprep.subr.mxu0 0.0
    %2468 = vmatpush2.xpose.msra.mxu0 0.0
    %2469 = vmatprep.subr.mxu0 0.0
    %2470 = vmatpush2.xpose.msra.mxu0 0.0
    %2471 = vmatprep.subr.mxu0 0.0
    %2472 = vmatpush2.xpose.msra.mxu0 0.0
    %2473 = vmatprep.subr.mxu0 0.0
    %2474 = vmatpush2.xpose.msra.mxu0 0.0
    %2475 = vmatprep.subr.mxu0 0.0
    %2476 = vmatpush2.xpose.msra.mxu0 0.0
    %2477 = vmatprep.subr.mxu0 0.0
    %2478 = vmatpush2.xpose.msra.mxu0 0.0
    %2479 = vmatprep.mubr.f32.mxu0 0.0
    %2480 = vmatmul.mubr.f32.gmra.mxu0 %v2411
    %v2481 = vpop.f32.mrf.mxu0
    %v2482 = vadd.f32 0.0, %v2481
    %v2483 = vpop.f32.mrf.mxu0
    %2484 = vdwg.mxu0
    %2486 = vrot.lane.b32.xlu0 %v2405, 96
    %v2487 = vpop.permute.xlu0 %2486
    %v2488 = vsel %vm578, %v2405, 0
    %v2490 = vsel %vm578, %v2487, 0
    %2492 = vmatprep.subr.mxu0 0.0
    %2493 = vmatpush1.xpose.msra.mxu0 0.0
    %2494 = vmatprep.subr.mxu0 0.0
    %2495 = vmatpush1.xpose.msra.mxu0 0.0
    %2496 = vmatprep.subr.mxu0 0.0
    %2497 = vmatpush1.xpose.msra.mxu0 0.0
    %2498 = vmatprep.subr.mxu0 0.0
    %2499 = vmatpush1.xpose.msra.mxu0 0.0
    %2500 = vmatprep.subr.mxu0 0.0
    %2501 = vmatpush1.xpose.msra.mxu0 0.0
    %2502 = vmatprep.subr.mxu0 0.0
    %2503 = vmatpush1.xpose.msra.mxu0 0.0
    %2504 = vmatprep.subr.mxu0 0.0
    %2505 = vmatpush1.xpose.msra.mxu0 0.0
    %2506 = vmatprep.subr.mxu0 0.0
    %2507 = vmatpush1.xpose.msra.mxu0 0.0
    %2508 = vmatprep.subr.mxu0 0.0
    %2509 = vmatpush1.xpose.msra.mxu0 0.0
    %2510 = vmatprep.subr.mxu0 0.0
    %2511 = vmatpush1.xpose.msra.mxu0 0.0
    %2512 = vmatprep.subr.mxu0 0.0
    %2513 = vmatpush1.xpose.msra.mxu0 0.0
    %2514 = vmatprep.subr.mxu0 0.0
    %2515 = vmatpush1.xpose.msra.mxu0 0.0
    %2516 = vmatprep.subr.mxu0 0.0
    %2517 = vmatpush1.xpose.msra.mxu0 0.0
    %2518 = vmatprep.subr.mxu0 0.0
    %2519 = vmatpush1.xpose.msra.mxu0 0.0
    %2520 = vmatprep.subr.mxu0 0.0
    %2521 = vmatpush1.xpose.msra.mxu0 0.0
    %2522 = vmatprep.subr.mxu0 0.0
    %2523 = vmatpush1.xpose.msra.mxu0 %v2490
    %2524 = vmatprep.subr.mxu0 0.0
    %2525 = vmatpush2.xpose.msra.mxu0 0.0
    %2526 = vmatprep.subr.mxu0 0.0
    %2527 = vmatpush2.xpose.msra.mxu0 0.0
    %2528 = vmatprep.subr.mxu0 0.0
    %2529 = vmatpush2.xpose.msra.mxu0 0.0
    %2530 = vmatprep.subr.mxu0 0.0
    %2531 = vmatpush2.xpose.msra.mxu0 0.0
    %2532 = vmatprep.subr.mxu0 0.0
    %2533 = vmatpush2.xpose.msra.mxu0 0.0
    %2534 = vmatprep.subr.mxu0 0.0
    %2535 = vmatpush2.xpose.msra.mxu0 0.0
    %2536 = vmatprep.subr.mxu0 0.0
    %2537 = vmatpush2.xpose.msra.mxu0 0.0
    %2538 = vmatprep.subr.mxu0 0.0
    %2539 = vmatpush2.xpose.msra.mxu0 0.0
    %2540 = vmatprep.subr.mxu0 0.0
    %2541 = vmatpush2.xpose.msra.mxu0 0.0
    %2542 = vmatprep.subr.mxu0 0.0
    %2543 = vmatpush2.xpose.msra.mxu0 0.0
    %2544 = vmatprep.subr.mxu0 0.0
    %2545 = vmatpush2.xpose.msra.mxu0 0.0
    %2546 = vmatprep.subr.mxu0 0.0
    %2547 = vmatpush2.xpose.msra.mxu0 0.0
    %2548 = vmatprep.subr.mxu0 0.0
    %2549 = vmatpush2.xpose.msra.mxu0 0.0
    %2550 = vmatprep.subr.mxu0 0.0
    %2551 = vmatpush2.xpose.msra.mxu0 0.0
    %2552 = vmatprep.subr.mxu0 0.0
    %2553 = vmatpush2.xpose.msra.mxu0 0.0
    %2554 = vmatprep.subr.mxu0 0.0
    %2555 = vmatpush2.xpose.msra.mxu0 0.0
    %2556 = vmatprep.mubr.f32.mxu0 0.0
    %2557 = vmatmul.mubr.f32.gmra.mxu0 %v2488
    %v2558 = vpop.f32.mrf.mxu0
    %v2559 = vadd.f32 0.0, %v2558
    %v2560 = vpop.f32.mrf.mxu0
    %2561 = vdwg.mxu0
    %v2562 = vsel %vm578, %v2482, -inf
    %2563 = vmax.xlane.f32.xlu0 %v2562
    %v2564 = vpop.xlane.xlu0 %2563
    %v2565 = vsel %vm578, %v2559, -inf
    %2566 = vmax.xlane.f32.xlu0 %v2565
    %v2567 = vpop.xlane.xlu0 %2566
    %v2568 = vsub.f32 %v2482, %v2564
    %v2569 = vsub.f32 %v2559, %v2567
    %v2570 = vmul.f32 %v2568, 1.442695
    %v2571 = vpow.pop %v2570
    %v2572 = vmul.f32 %v2569, 1.442695
    %v2573 = vpow.pop %v2572
    %v2574 = vsel %vm578, %v2571, 0.0
    %2575 = vadd.xlane.f32.xlu0 %v2574
    %v2576 = vpop.xlane.xlu0 %2575
    %v2577 = vsel %vm578, %v2573, 0.0
    %2578 = vadd.xlane.f32.xlu0 %v2577
    %v2579 = vpop.xlane.xlu0 %2578
    %v2580 = vrcp.pop %v2576
    %v2581 = vrcp.pop %v2579
    %v2582 = vmul.f32 %v2571, %v2580
    %v2583 = vmul.f32 %v2573, %v2581
    %2584 = vrot.lane.b32.xlu0 %v2400, 64
    %v2585 = vpop.permute.xlu0 %2584
    %v2588 = vsel %vm578, %v2582, 0
    %2590 = vmatprep.subr.mxu0 0.0
    %2591 = vmatpush1.msra.mxu0 0.0
    %2592 = vmatprep.subr.mxu0 0.0
    %2593 = vmatpush1.msra.mxu0 0.0
    %2594 = vmatprep.subr.mxu0 0.0
    %2595 = vmatpush1.msra.mxu0 0.0
    %2596 = vmatprep.subr.mxu0 0.0
    %2597 = vmatpush1.msra.mxu0 0.0
    %2598 = vmatprep.subr.mxu0 0.0
    %2599 = vmatpush1.msra.mxu0 0.0
    %2600 = vmatprep.subr.mxu0 0.0
    %2601 = vmatpush1.msra.mxu0 0.0
    %2602 = vmatprep.subr.mxu0 0.0
    %2603 = vmatpush1.msra.mxu0 0.0
    %2604 = vmatprep.subr.mxu0 0.0
    %2605 = vmatpush1.msra.mxu0 0.0
    %2606 = vmatprep.subr.mxu0 0.0
    %2607 = vmatpush1.msra.mxu0 0.0
    %2608 = vmatprep.subr.mxu0 0.0
    %2609 = vmatpush1.msra.mxu0 0.0
    %2610 = vmatprep.subr.mxu0 0.0
    %2611 = vmatpush1.msra.mxu0 0.0
    %2612 = vmatprep.subr.mxu0 0.0
    %2613 = vmatpush1.msra.mxu0 0.0
    %2614 = vmatprep.subr.mxu0 0.0
    %2615 = vmatpush1.msra.mxu0 0.0
    %2616 = vmatprep.subr.mxu0 0.0
    %2617 = vmatpush1.msra.mxu0 0.0
    %2618 = vmatprep.subr.mxu0 0.0
    %2619 = vmatpush1.msra.mxu0 0.0
    %2620 = vmatprep.subr.mxu0 0.0
    %2621 = vmatpush1.msra.mxu0 %v2585
    %2622 = vmatprep.subr.mxu0 0.0
    %2623 = vmatpush2.msra.mxu0 0.0
    %2624 = vmatprep.subr.mxu0 0.0
    %2625 = vmatpush2.msra.mxu0 0.0
    %2626 = vmatprep.subr.mxu0 0.0
    %2627 = vmatpush2.msra.mxu0 0.0
    %2628 = vmatprep.subr.mxu0 0.0
    %2629 = vmatpush2.msra.mxu0 0.0
    %2630 = vmatprep.subr.mxu0 0.0
    %2631 = vmatpush2.msra.mxu0 0.0
    %2632 = vmatprep.subr.mxu0 0.0
    %2633 = vmatpush2.msra.mxu0 0.0
    %2634 = vmatprep.subr.mxu0 0.0
    %2635 = vmatpush2.msra.mxu0 0.0
    %2636 = vmatprep.subr.mxu0 0.0
    %2637 = vmatpush2.msra.mxu0 0.0
    %2638 = vmatprep.subr.mxu0 0.0
    %2639 = vmatpush2.msra.mxu0 0.0
    %2640 = vmatprep.subr.mxu0 0.0
    %2641 = vmatpush2.msra.mxu0 0.0
    %2642 = vmatprep.subr.mxu0 0.0
    %2643 = vmatpush2.msra.mxu0 0.0
    %2644 = vmatprep.subr.mxu0 0.0
    %2645 = vmatpush2.msra.mxu0 0.0
    %2646 = vmatprep.subr.mxu0 0.0
    %2647 = vmatpush2.msra.mxu0 0.0
    %2648 = vmatprep.subr.mxu0 0.0
    %2649 = vmatpush2.msra.mxu0 0.0
    %2650 = vmatprep.subr.mxu0 0.0
    %2651 = vmatpush2.msra.mxu0 0.0
    %2652 = vmatprep.subr.mxu0 0.0
    %2653 = vmatpush2.msra.mxu0 0.0
    %2654 = vmatprep.mubr.f32.mxu0 0.0
    %2655 = vmatmul.mubr.f32.gmra.mxu0 %v2588
    %v2656 = vpop.f32.mrf.mxu0
    %v2657 = vadd.f32 0.0, %v2656
    %v2658 = vpop.f32.mrf.mxu0
    %2659 = vdwg.mxu0
    %2660 = vrot.lane.b32.xlu0 %v2405, 64
    %v2661 = vpop.permute.xlu0 %2660
    %v2664 = vsel %vm578, %v2583, 0
    %2666 = vmatprep.subr.mxu0 0.0
    %2667 = vmatpush1.msra.mxu0 0.0
    %2668 = vmatprep.subr.mxu0 0.0
    %2669 = vmatpush1.msra.mxu0 0.0
    %2670 = vmatprep.subr.mxu0 0.0
    %2671 = vmatpush1.msra.mxu0 0.0
    %2672 = vmatprep.subr.mxu0 0.0
    %2673 = vmatpush1.msra.mxu0 0.0
    %2674 = vmatprep.subr.mxu0 0.0
    %2675 = vmatpush1.msra.mxu0 0.0
    %2676 = vmatprep.subr.mxu0 0.0
    %2677 = vmatpush1.msra.mxu0 0.0
    %2678 = vmatprep.subr.mxu0 0.0
    %2679 = vmatpush1.msra.mxu0 0.0
    %2680 = vmatprep.subr.mxu0 0.0
    %2681 = vmatpush1.msra.mxu0 0.0
    %2682 = vmatprep.subr.mxu0 0.0
    %2683 = vmatpush1.msra.mxu0 0.0
    %2684 = vmatprep.subr.mxu0 0.0
    %2685 = vmatpush1.msra.mxu0 0.0
    %2686 = vmatprep.subr.mxu0 0.0
    %2687 = vmatpush1.msra.mxu0 0.0
    %2688 = vmatprep.subr.mxu0 0.0
    %2689 = vmatpush1.msra.mxu0 0.0
    %2690 = vmatprep.subr.mxu0 0.0
    %2691 = vmatpush1.msra.mxu0 0.0
    %2692 = vmatprep.subr.mxu0 0.0
    %2693 = vmatpush1.msra.mxu0 0.0
    %2694 = vmatprep.subr.mxu0 0.0
    %2695 = vmatpush1.msra.mxu0 0.0
    %2696 = vmatprep.subr.mxu0 0.0
    %2697 = vmatpush1.msra.mxu0 %v2661
    %2698 = vmatprep.subr.mxu0 0.0
    %2699 = vmatpush2.msra.mxu0 0.0
    %2700 = vmatprep.subr.mxu0 0.0
    %2701 = vmatpush2.msra.mxu0 0.0
    %2702 = vmatprep.subr.mxu0 0.0
    %2703 = vmatpush2.msra.mxu0 0.0
    %2704 = vmatprep.subr.mxu0 0.0
    %2705 = vmatpush2.msra.mxu0 0.0
    %2706 = vmatprep.subr.mxu0 0.0
    %2707 = vmatpush2.msra.mxu0 0.0
    %2708 = vmatprep.subr.mxu0 0.0
    %2709 = vmatpush2.msra.mxu0 0.0
    %2710 = vmatprep.subr.mxu0 0.0
    %2711 = vmatpush2.msra.mxu0 0.0
    %2712 = vmatprep.subr.mxu0 0.0
    %2713 = vmatpush2.msra.mxu0 0.0
    %2714 = vmatprep.subr.mxu0 0.0
    %2715 = vmatpush2.msra.mxu0 0.0
    %2716 = vmatprep.subr.mxu0 0.0
    %2717 = vmatpush2.msra.mxu0 0.0
    %2718 = vmatprep.subr.mxu0 0.0
    %2719 = vmatpush2.msra.mxu0 0.0
    %2720 = vmatprep.subr.mxu0 0.0
    %2721 = vmatpush2.msra.mxu0 0.0
    %2722 = vmatprep.subr.mxu0 0.0
    %2723 = vmatpush2.msra.mxu0 0.0
    %2724 = vmatprep.subr.mxu0 0.0
    %2725 = vmatpush2.msra.mxu0 0.0
    %2726 = vmatprep.subr.mxu0 0.0
    %2727 = vmatpush2.msra.mxu0 0.0
    %2728 = vmatprep.subr.mxu0 0.0
    %2729 = vmatpush2.msra.mxu0 0.0
    %2730 = vmatprep.mubr.f32.mxu0 0.0
    %2731 = vmatmul.mubr.f32.gmra.mxu0 %v2664
    %v2732 = vpop.f32.mrf.mxu0
    %v2733 = vadd.f32 0.0, %v2732
    %v2734 = vpop.f32.mrf.mxu0
    %2735 = vdwg.mxu0
    %2736 = vrot.lane.b32.xlu0 %v2400, 120
    %v2737 = vpop.permute.xlu0 %2736
    %2738 = vrot.lane.b32.xlu0 %v2400, 88
    %v2739 = vpop.permute.xlu0 %2738
    %v2740 = vsel %vm578, %v2737, 0
    %v2742 = vsel %vm578, %v2739, 0
    %2744 = vmatprep.subr.mxu0 0.0
    %2745 = vmatpush1.xpose.msra.mxu0 0.0
    %2746 = vmatprep.subr.mxu0 0.0
    %2747 = vmatpush1.xpose.msra.mxu0 0.0
    %2748 = vmatprep.subr.mxu0 0.0
    %2749 = vmatpush1.xpose.msra.mxu0 0.0
    %2750 = vmatprep.subr.mxu0 0.0
    %2751 = vmatpush1.xpose.msra.mxu0 0.0
    %2752 = vmatprep.subr.mxu0 0.0
    %2753 = vmatpush1.xpose.msra.mxu0 0.0
    %2754 = vmatprep.subr.mxu0 0.0
    %2755 = vmatpush1.xpose.msra.mxu0 0.0
    %2756 = vmatprep.subr.mxu0 0.0
    %2757 = vmatpush1.xpose.msra.mxu0 0.0
    %2758 = vmatprep.subr.mxu0 0.0
    %2759 = vmatpush1.xpose.msra.mxu0 0.0
    %2760 = vmatprep.subr.mxu0 0.0
    %2761 = vmatpush1.xpose.msra.mxu0 0.0
    %2762 = vmatprep.subr.mxu0 0.0
    %2763 = vmatpush1.xpose.msra.mxu0 0.0
    %2764 = vmatprep.subr.mxu0 0.0
    %2765 = vmatpush1.xpose.msra.mxu0 0.0
    %2766 = vmatprep.subr.mxu0 0.0
    %2767 = vmatpush1.xpose.msra.mxu0 0.0
    %2768 = vmatprep.subr.mxu0 0.0
    %2769 = vmatpush1.xpose.msra.mxu0 0.0
    %2770 = vmatprep.subr.mxu0 0.0
    %2771 = vmatpush1.xpose.msra.mxu0 0.0
    %2772 = vmatprep.subr.mxu0 0.0
    %2773 = vmatpush1.xpose.msra.mxu0 0.0
    %2774 = vmatprep.subr.mxu0 0.0
    %2775 = vmatpush1.xpose.msra.mxu0 %v2742
    %2776 = vmatprep.subr.mxu0 0.0
    %2777 = vmatpush2.xpose.msra.mxu0 0.0
    %2778 = vmatprep.subr.mxu0 0.0
    %2779 = vmatpush2.xpose.msra.mxu0 0.0
    %2780 = vmatprep.subr.mxu0 0.0
    %2781 = vmatpush2.xpose.msra.mxu0 0.0
    %2782 = vmatprep.subr.mxu0 0.0
    %2783 = vmatpush2.xpose.msra.mxu0 0.0
    %2784 = vmatprep.subr.mxu0 0.0
    %2785 = vmatpush2.xpose.msra.mxu0 0.0
    %2786 = vmatprep.subr.mxu0 0.0
    %2787 = vmatpush2.xpose.msra.mxu0 0.0
    %2788 = vmatprep.subr.mxu0 0.0
    %2789 = vmatpush2.xpose.msra.mxu0 0.0
    %2790 = vmatprep.subr.mxu0 0.0
    %2791 = vmatpush2.xpose.msra.mxu0 0.0
    %2792 = vmatprep.subr.mxu0 0.0
    %2793 = vmatpush2.xpose.msra.mxu0 0.0
    %2794 = vmatprep.subr.mxu0 0.0
    %2795 = vmatpush2.xpose.msra.mxu0 0.0
    %2796 = vmatprep.subr.mxu0 0.0
    %2797 = vmatpush2.xpose.msra.mxu0 0.0
    %2798 = vmatprep.subr.mxu0 0.0
    %2799 = vmatpush2.xpose.msra.mxu0 0.0
    %2800 = vmatprep.subr.mxu0 0.0
    %2801 = vmatpush2.xpose.msra.mxu0 0.0
    %2802 = vmatprep.subr.mxu0 0.0
    %2803 = vmatpush2.xpose.msra.mxu0 0.0
    %2804 = vmatprep.subr.mxu0 0.0
    %2805 = vmatpush2.xpose.msra.mxu0 0.0
    %2806 = vmatprep.subr.mxu0 0.0
    %2807 = vmatpush2.xpose.msra.mxu0 0.0
    %2808 = vmatprep.mubr.f32.mxu0 0.0
    %2809 = vmatmul.mubr.f32.gmra.mxu0 %v2740
    %v2810 = vpop.f32.mrf.mxu0
    %v2811 = vadd.f32 0.0, %v2810
    %v2812 = vpop.f32.mrf.mxu0
    %2813 = vdwg.mxu0
    %2814 = vrot.lane.b32.xlu0 %v2405, 120
    %v2815 = vpop.permute.xlu0 %2814
    %2816 = vrot.lane.b32.xlu0 %v2405, 88
    %v2817 = vpop.permute.xlu0 %2816
    %v2818 = vsel %vm578, %v2815, 0
    %v2820 = vsel %vm578, %v2817, 0
    %2822 = vmatprep.subr.mxu0 0.0
    %2823 = vmatpush1.xpose.msra.mxu0 0.0
    %2824 = vmatprep.subr.mxu0 0.0
    %2825 = vmatpush1.xpose.msra.mxu0 0.0
    %2826 = vmatprep.subr.mxu0 0.0
    %2827 = vmatpush1.xpose.msra.mxu0 0.0
    %2828 = vmatprep.subr.mxu0 0.0
    %2829 = vmatpush1.xpose.msra.mxu0 0.0
    %2830 = vmatprep.subr.mxu0 0.0
    %2831 = vmatpush1.xpose.msra.mxu0 0.0
    %2832 = vmatprep.subr.mxu0 0.0
    %2833 = vmatpush1.xpose.msra.mxu0 0.0
    %2834 = vmatprep.subr.mxu0 0.0
    %2835 = vmatpush1.xpose.msra.mxu0 0.0
    %2836 = vmatprep.subr.mxu0 0.0
    %2837 = vmatpush1.xpose.msra.mxu0 0.0
    %2838 = vmatprep.subr.mxu0 0.0
    %2839 = vmatpush1.xpose.msra.mxu0 0.0
    %2840 = vmatprep.subr.mxu0 0.0
    %2841 = vmatpush1.xpose.msra.mxu0 0.0
    %2842 = vmatprep.subr.mxu0 0.0
    %2843 = vmatpush1.xpose.msra.mxu0 0.0
    %2844 = vmatprep.subr.mxu0 0.0
    %2845 = vmatpush1.xpose.msra.mxu0 0.0
    %2846 = vmatprep.subr.mxu0 0.0
    %2847 = vmatpush1.xpose.msra.mxu0 0.0
    %2848 = vmatprep.subr.mxu0 0.0
    %2849 = vmatpush1.xpose.msra.mxu0 0.0
    %2850 = vmatprep.subr.mxu0 0.0
    %2851 = vmatpush1.xpose.msra.mxu0 0.0
    %2852 = vmatprep.subr.mxu0 0.0
    %2853 = vmatpush1.xpose.msra.mxu0 %v2820
    %2854 = vmatprep.subr.mxu0 0.0
    %2855 = vmatpush2.xpose.msra.mxu0 0.0
    %2856 = vmatprep.subr.mxu0 0.0
    %2857 = vmatpush2.xpose.msra.mxu0 0.0
    %2858 = vmatprep.subr.mxu0 0.0
    %2859 = vmatpush2.xpose.msra.mxu0 0.0
    %2860 = vmatprep.subr.mxu0 0.0
    %2861 = vmatpush2.xpose.msra.mxu0 0.0
    %2862 = vmatprep.subr.mxu0 0.0
    %2863 = vmatpush2.xpose.msra.mxu0 0.0
    %2864 = vmatprep.subr.mxu0 0.0
    %2865 = vmatpush2.xpose.msra.mxu0 0.0
    %2866 = vmatprep.subr.mxu0 0.0
    %2867 = vmatpush2.xpose.msra.mxu0 0.0
    %2868 = vmatprep.subr.mxu0 0.0
    %2869 = vmatpush2.xpose.msra.mxu0 0.0
    %2870 = vmatprep.subr.mxu0 0.0
    %2871 = vmatpush2.xpose.msra.mxu0 0.0
    %2872 = vmatprep.subr.mxu0 0.0
    %2873 = vmatpush2.xpose.msra.mxu0 0.0
    %2874 = vmatprep.subr.mxu0 0.0
    %2875 = vmatpush2.xpose.msra.mxu0 0.0
    %2876 = vmatprep.subr.mxu0 0.0
    %2877 = vmatpush2.xpose.msra.mxu0 0.0
    %2878 = vmatprep.subr.mxu0 0.0
    %2879 = vmatpush2.xpose.msra.mxu0 0.0
    %2880 = vmatprep.subr.mxu0 0.0
    %2881 = vmatpush2.xpose.msra.mxu0 0.0
    %2882 = vmatprep.subr.mxu0 0.0
    %2883 = vmatpush2.xpose.msra.mxu0 0.0
    %2884 = vmatprep.subr.mxu0 0.0
    %2885 = vmatpush2.xpose.msra.mxu0 0.0
    %2886 = vmatprep.mubr.f32.mxu0 0.0
    %2887 = vmatmul.mubr.f32.gmra.mxu0 %v2818
    %v2888 = vpop.f32.mrf.mxu0
    %v2889 = vadd.f32 0.0, %v2888
    %v2890 = vpop.f32.mrf.mxu0
    %2891 = vdwg.mxu0
    %v2892 = vsel %vm578, %v2811, -inf
    %2893 = vmax.xlane.f32.xlu0 %v2892
    %v2894 = vpop.xlane.xlu0 %2893
    %v2895 = vsel %vm578, %v2889, -inf
    %2896 = vmax.xlane.f32.xlu0 %v2895
    %v2897 = vpop.xlane.xlu0 %2896
    %v2898 = vsub.f32 %v2811, %v2894
    %v2899 = vsub.f32 %v2889, %v2897
    %v2900 = vmul.f32 %v2898, 1.442695
    %v2901 = vpow.pop %v2900
    %v2902 = vmul.f32 %v2899, 1.442695
    %v2903 = vpow.pop %v2902
    %v2904 = vsel %vm578, %v2901, 0.0
    %2905 = vadd.xlane.f32.xlu0 %v2904
    %v2906 = vpop.xlane.xlu0 %2905
    %v2907 = vsel %vm578, %v2903, 0.0
    %2908 = vadd.xlane.f32.xlu0 %v2907
    %v2909 = vpop.xlane.xlu0 %2908
    %v2910 = vrcp.pop %v2906
    %v2911 = vrcp.pop %v2909
    %v2912 = vmul.f32 %v2901, %v2910
    %v2913 = vmul.f32 %v2903, %v2911
    %2914 = vrot.lane.b32.xlu0 %v2400, 56
    %v2915 = vpop.permute.xlu0 %2914
    %v2918 = vsel %vm578, %v2912, 0
    %2920 = vmatprep.subr.mxu0 0.0
    %2921 = vmatpush1.msra.mxu0 0.0
    %2922 = vmatprep.subr.mxu0 0.0
    %2923 = vmatpush1.msra.mxu0 0.0
    %2924 = vmatprep.subr.mxu0 0.0
    %2925 = vmatpush1.msra.mxu0 0.0
    %2926 = vmatprep.subr.mxu0 0.0
    %2927 = vmatpush1.msra.mxu0 0.0
    %2928 = vmatprep.subr.mxu0 0.0
    %2929 = vmatpush1.msra.mxu0 0.0
    %2930 = vmatprep.subr.mxu0 0.0
    %2931 = vmatpush1.msra.mxu0 0.0
    %2932 = vmatprep.subr.mxu0 0.0
    %2933 = vmatpush1.msra.mxu0 0.0
    %2934 = vmatprep.subr.mxu0 0.0
    %2935 = vmatpush1.msra.mxu0 0.0
    %2936 = vmatprep.subr.mxu0 0.0
    %2937 = vmatpush1.msra.mxu0 0.0
    %2938 = vmatprep.subr.mxu0 0.0
    %2939 = vmatpush1.msra.mxu0 0.0
    %2940 = vmatprep.subr.mxu0 0.0
    %2941 = vmatpush1.msra.mxu0 0.0
    %2942 = vmatprep.subr.mxu0 0.0
    %2943 = vmatpush1.msra.mxu0 0.0
    %2944 = vmatprep.subr.mxu0 0.0
    %2945 = vmatpush1.msra.mxu0 0.0
    %2946 = vmatprep.subr.mxu0 0.0
    %2947 = vmatpush1.msra.mxu0 0.0
    %2948 = vmatprep.subr.mxu0 0.0
    %2949 = vmatpush1.msra.mxu0 0.0
    %2950 = vmatprep.subr.mxu0 0.0
    %2951 = vmatpush1.msra.mxu0 %v2915
    %2952 = vmatprep.subr.mxu0 0.0
    %2953 = vmatpush2.msra.mxu0 0.0
    %2954 = vmatprep.subr.mxu0 0.0
    %2955 = vmatpush2.msra.mxu0 0.0
    %2956 = vmatprep.subr.mxu0 0.0
    %2957 = vmatpush2.msra.mxu0 0.0
    %2958 = vmatprep.subr.mxu0 0.0
    %2959 = vmatpush2.msra.mxu0 0.0
    %2960 = vmatprep.subr.mxu0 0.0
    %2961 = vmatpush2.msra.mxu0 0.0
    %2962 = vmatprep.subr.mxu0 0.0
    %2963 = vmatpush2.msra.mxu0 0.0
    %2964 = vmatprep.subr.mxu0 0.0
    %2965 = vmatpush2.msra.mxu0 0.0
    %2966 = vmatprep.subr.mxu0 0.0
    %2967 = vmatpush2.msra.mxu0 0.0
    %2968 = vmatprep.subr.mxu0 0.0
    %2969 = vmatpush2.msra.mxu0 0.0
    %2970 = vmatprep.subr.mxu0 0.0
    %2971 = vmatpush2.msra.mxu0 0.0
    %2972 = vmatprep.subr.mxu0 0.0
    %2973 = vmatpush2.msra.mxu0 0.0
    %2974 = vmatprep.subr.mxu0 0.0
    %2975 = vmatpush2.msra.mxu0 0.0
    %2976 = vmatprep.subr.mxu0 0.0
    %2977 = vmatpush2.msra.mxu0 0.0
    %2978 = vmatprep.subr.mxu0 0.0
    %2979 = vmatpush2.msra.mxu0 0.0
    %2980 = vmatprep.subr.mxu0 0.0
    %2981 = vmatpush2.msra.mxu0 0.0
    %2982 = vmatprep.subr.mxu0 0.0
    %2983 = vmatpush2.msra.mxu0 0.0
    %2984 = vmatprep.mubr.f32.mxu0 0.0
    %2985 = vmatmul.mubr.f32.gmra.mxu0 %v2918
    %v2986 = vpop.f32.mrf.mxu0
    %v2987 = vadd.f32 0.0, %v2986
    %v2988 = vpop.f32.mrf.mxu0
    %2989 = vdwg.mxu0
    %2990 = vrot.lane.b32.xlu0 %v2405, 56
    %v2991 = vpop.permute.xlu0 %2990
    %v2994 = vsel %vm578, %v2913, 0
    %2996 = vmatprep.subr.mxu0 0.0
    %2997 = vmatpush1.msra.mxu0 0.0
    %2998 = vmatprep.subr.mxu0 0.0
    %2999 = vmatpush1.msra.mxu0 0.0
    %3000 = vmatprep.subr.mxu0 0.0
    %3001 = vmatpush1.msra.mxu0 0.0
    %3002 = vmatprep.subr.mxu0 0.0
    %3003 = vmatpush1.msra.mxu0 0.0
    %3004 = vmatprep.subr.mxu0 0.0
    %3005 = vmatpush1.msra.mxu0 0.0
    %3006 = vmatprep.subr.mxu0 0.0
    %3007 = vmatpush1.msra.mxu0 0.0
    %3008 = vmatprep.subr.mxu0 0.0
    %3009 = vmatpush1.msra.mxu0 0.0
    %3010 = vmatprep.subr.mxu0 0.0
    %3011 = vmatpush1.msra.mxu0 0.0
    %3012 = vmatprep.subr.mxu0 0.0
    %3013 = vmatpush1.msra.mxu0 0.0
    %3014 = vmatprep.subr.mxu0 0.0
    %3015 = vmatpush1.msra.mxu0 0.0
    %3016 = vmatprep.subr.mxu0 0.0
    %3017 = vmatpush1.msra.mxu0 0.0
    %3018 = vmatprep.subr.mxu0 0.0
    %3019 = vmatpush1.msra.mxu0 0.0
    %3020 = vmatprep.subr.mxu0 0.0
    %3021 = vmatpush1.msra.mxu0 0.0
    %3022 = vmatprep.subr.mxu0 0.0
    %3023 = vmatpush1.msra.mxu0 0.0
    %3024 = vmatprep.subr.mxu0 0.0
    %3025 = vmatpush1.msra.mxu0 0.0
    %3026 = vmatprep.subr.mxu0 0.0
    %3027 = vmatpush1.msra.mxu0 %v2991
    %3028 = vmatprep.subr.mxu0 0.0
    %3029 = vmatpush2.msra.mxu0 0.0
    %3030 = vmatprep.subr.mxu0 0.0
    %3031 = vmatpush2.msra.mxu0 0.0
    %3032 = vmatprep.subr.mxu0 0.0
    %3033 = vmatpush2.msra.mxu0 0.0
    %3034 = vmatprep.subr.mxu0 0.0
    %3035 = vmatpush2.msra.mxu0 0.0
    %3036 = vmatprep.subr.mxu0 0.0
    %3037 = vmatpush2.msra.mxu0 0.0
    %3038 = vmatprep.subr.mxu0 0.0
    %3039 = vmatpush2.msra.mxu0 0.0
    %3040 = vmatprep.subr.mxu0 0.0
    %3041 = vmatpush2.msra.mxu0 0.0
    %3042 = vmatprep.subr.mxu0 0.0
    %3043 = vmatpush2.msra.mxu0 0.0
    %3044 = vmatprep.subr.mxu0 0.0
    %3045 = vmatpush2.msra.mxu0 0.0
    %3046 = vmatprep.subr.mxu0 0.0
    %3047 = vmatpush2.msra.mxu0 0.0
    %3048 = vmatprep.subr.mxu0 0.0
    %3049 = vmatpush2.msra.mxu0 0.0
    %3050 = vmatprep.subr.mxu0 0.0
    %3051 = vmatpush2.msra.mxu0 0.0
    %3052 = vmatprep.subr.mxu0 0.0
    %3053 = vmatpush2.msra.mxu0 0.0
    %3054 = vmatprep.subr.mxu0 0.0
    %3055 = vmatpush2.msra.mxu0 0.0
    %3056 = vmatprep.subr.mxu0 0.0
    %3057 = vmatpush2.msra.mxu0 0.0
    %3058 = vmatprep.subr.mxu0 0.0
    %3059 = vmatpush2.msra.mxu0 0.0
    %3060 = vmatprep.mubr.f32.mxu0 0.0
    %3061 = vmatmul.mubr.f32.gmra.mxu0 %v2994
    %v3062 = vpop.f32.mrf.mxu0
    %v3063 = vadd.f32 0.0, %v3062
    %v3064 = vpop.f32.mrf.mxu0
    %3065 = vdwg.mxu0
    %3066 = vrot.lane.b32.xlu0 %v2400, 112
    %v3067 = vpop.permute.xlu0 %3066
    %3068 = vrot.lane.b32.xlu0 %v2400, 80
    %v3069 = vpop.permute.xlu0 %3068
    %v3070 = vsel %vm578, %v3067, 0
    %v3072 = vsel %vm578, %v3069, 0
    %3074 = vmatprep.subr.mxu0 0.0
    %3075 = vmatpush1.xpose.msra.mxu0 0.0
    %3076 = vmatprep.subr.mxu0 0.0
    %3077 = vmatpush1.xpose.msra.mxu0 0.0
    %3078 = vmatprep.subr.mxu0 0.0
    %3079 = vmatpush1.xpose.msra.mxu0 0.0
    %3080 = vmatprep.subr.mxu0 0.0
    %3081 = vmatpush1.xpose.msra.mxu0 0.0
    %3082 = vmatprep.subr.mxu0 0.0
    %3083 = vmatpush1.xpose.msra.mxu0 0.0
    %3084 = vmatprep.subr.mxu0 0.0
    %3085 = vmatpush1.xpose.msra.mxu0 0.0
    %3086 = vmatprep.subr.mxu0 0.0
    %3087 = vmatpush1.xpose.msra.mxu0 0.0
    %3088 = vmatprep.subr.mxu0 0.0
    %3089 = vmatpush1.xpose.msra.mxu0 0.0
    %3090 = vmatprep.subr.mxu0 0.0
    %3091 = vmatpush1.xpose.msra.mxu0 0.0
    %3092 = vmatprep.subr.mxu0 0.0
    %3093 = vmatpush1.xpose.msra.mxu0 0.0
    %3094 = vmatprep.subr.mxu0 0.0
    %3095 = vmatpush1.xpose.msra.mxu0 0.0
    %3096 = vmatprep.subr.mxu0 0.0
    %3097 = vmatpush1.xpose.msra.mxu0 0.0
    %3098 = vmatprep.subr.mxu0 0.0
    %3099 = vmatpush1.xpose.msra.mxu0 0.0
    %3100 = vmatprep.subr.mxu0 0.0
    %3101 = vmatpush1.xpose.msra.mxu0 0.0
    %3102 = vmatprep.subr.mxu0 0.0
    %3103 = vmatpush1.xpose.msra.mxu0 0.0
    %3104 = vmatprep.subr.mxu0 0.0
    %3105 = vmatpush1.xpose.msra.mxu0 %v3072
    %3106 = vmatprep.subr.mxu0 0.0
    %3107 = vmatpush2.xpose.msra.mxu0 0.0
    %3108 = vmatprep.subr.mxu0 0.0
    %3109 = vmatpush2.xpose.msra.mxu0 0.0
    %3110 = vmatprep.subr.mxu0 0.0
    %3111 = vmatpush2.xpose.msra.mxu0 0.0
    %3112 = vmatprep.subr.mxu0 0.0
    %3113 = vmatpush2.xpose.msra.mxu0 0.0
    %3114 = vmatprep.subr.mxu0 0.0
    %3115 = vmatpush2.xpose.msra.mxu0 0.0
    %3116 = vmatprep.subr.mxu0 0.0
    %3117 = vmatpush2.xpose.msra.mxu0 0.0
    %3118 = vmatprep.subr.mxu0 0.0
    %3119 = vmatpush2.xpose.msra.mxu0 0.0
    %3120 = vmatprep.subr.mxu0 0.0
    %3121 = vmatpush2.xpose.msra.mxu0 0.0
    %3122 = vmatprep.subr.mxu0 0.0
    %3123 = vmatpush2.xpose.msra.mxu0 0.0
    %3124 = vmatprep.subr.mxu0 0.0
    %3125 = vmatpush2.xpose.msra.mxu0 0.0
    %3126 = vmatprep.subr.mxu0 0.0
    %3127 = vmatpush2.xpose.msra.mxu0 0.0
    %3128 = vmatprep.subr.mxu0 0.0
    %3129 = vmatpush2.xpose.msra.mxu0 0.0
    %3130 = vmatprep.subr.mxu0 0.0
    %3131 = vmatpush2.xpose.msra.mxu0 0.0
    %3132 = vmatprep.subr.mxu0 0.0
    %3133 = vmatpush2.xpose.msra.mxu0 0.0
    %3134 = vmatprep.subr.mxu0 0.0
    %3135 = vmatpush2.xpose.msra.mxu0 0.0
    %3136 = vmatprep.subr.mxu0 0.0
    %3137 = vmatpush2.xpose.msra.mxu0 0.0
    %3138 = vmatprep.mubr.f32.mxu0 0.0
    %3139 = vmatmul.mubr.f32.gmra.mxu0 %v3070
    %v3140 = vpop.f32.mrf.mxu0
    %v3141 = vadd.f32 0.0, %v3140
    %v3142 = vpop.f32.mrf.mxu0
    %3143 = vdwg.mxu0
    %3144 = vrot.lane.b32.xlu0 %v2405, 112
    %v3145 = vpop.permute.xlu0 %3144
    %3146 = vrot.lane.b32.xlu0 %v2405, 80
    %v3147 = vpop.permute.xlu0 %3146
    %v3148 = vsel %vm578, %v3145, 0
    %v3150 = vsel %vm578, %v3147, 0
    %3152 = vmatprep.subr.mxu0 0.0
    %3153 = vmatpush1.xpose.msra.mxu0 0.0
    %3154 = vmatprep.subr.mxu0 0.0
    %3155 = vmatpush1.xpose.msra.mxu0 0.0
    %3156 = vmatprep.subr.mxu0 0.0
    %3157 = vmatpush1.xpose.msra.mxu0 0.0
    %3158 = vmatprep.subr.mxu0 0.0
    %3159 = vmatpush1.xpose.msra.mxu0 0.0
    %3160 = vmatprep.subr.mxu0 0.0
    %3161 = vmatpush1.xpose.msra.mxu0 0.0
    %3162 = vmatprep.subr.mxu0 0.0
    %3163 = vmatpush1.xpose.msra.mxu0 0.0
    %3164 = vmatprep.subr.mxu0 0.0
    %3165 = vmatpush1.xpose.msra.mxu0 0.0
    %3166 = vmatprep.subr.mxu0 0.0
    %3167 = vmatpush1.xpose.msra.mxu0 0.0
    %3168 = vmatprep.subr.mxu0 0.0
    %3169 = vmatpush1.xpose.msra.mxu0 0.0
    %3170 = vmatprep.subr.mxu0 0.0
    %3171 = vmatpush1.xpose.msra.mxu0 0.0
    %3172 = vmatprep.subr.mxu0 0.0
    %3173 = vmatpush1.xpose.msra.mxu0 0.0
    %3174 = vmatprep.subr.mxu0 0.0
    %3175 = vmatpush1.xpose.msra.mxu0 0.0
    %3176 = vmatprep.subr.mxu0 0.0
    %3177 = vmatpush1.xpose.msra.mxu0 0.0
    %3178 = vmatprep.subr.mxu0 0.0
    %3179 = vmatpush1.xpose.msra.mxu0 0.0
    %3180 = vmatprep.subr.mxu0 0.0
    %3181 = vmatpush1.xpose.msra.mxu0 0.0
    %3182 = vmatprep.subr.mxu0 0.0
    %3183 = vmatpush1.xpose.msra.mxu0 %v3150
    %3184 = vmatprep.subr.mxu0 0.0
    %3185 = vmatpush2.xpose.msra.mxu0 0.0
    %3186 = vmatprep.subr.mxu0 0.0
    %3187 = vmatpush2.xpose.msra.mxu0 0.0
    %3188 = vmatprep.subr.mxu0 0.0
    %3189 = vmatpush2.xpose.msra.mxu0 0.0
    %3190 = vmatprep.subr.mxu0 0.0
    %3191 = vmatpush2.xpose.msra.mxu0 0.0
    %3192 = vmatprep.subr.mxu0 0.0
    %3193 = vmatpush2.xpose.msra.mxu0 0.0
    %3194 = vmatprep.subr.mxu0 0.0
    %3195 = vmatpush2.xpose.msra.mxu0 0.0
    %3196 = vmatprep.subr.mxu0 0.0
    %3197 = vmatpush2.xpose.msra.mxu0 0.0
    %3198 = vmatprep.subr.mxu0 0.0
    %3199 = vmatpush2.xpose.msra.mxu0 0.0
    %3200 = vmatprep.subr.mxu0 0.0
    %3201 = vmatpush2.xpose.msra.mxu0 0.0
    %3202 = vmatprep.subr.mxu0 0.0
    %3203 = vmatpush2.xpose.msra.mxu0 0.0
    %3204 = vmatprep.subr.mxu0 0.0
    %3205 = vmatpush2.xpose.msra.mxu0 0.0
    %3206 = vmatprep.subr.mxu0 0.0
    %3207 = vmatpush2.xpose.msra.mxu0 0.0
    %3208 = vmatprep.subr.mxu0 0.0
    %3209 = vmatpush2.xpose.msra.mxu0 0.0
    %3210 = vmatprep.subr.mxu0 0.0
    %3211 = vmatpush2.xpose.msra.mxu0 0.0
    %3212 = vmatprep.subr.mxu0 0.0
    %3213 = vmatpush2.xpose.msra.mxu0 0.0
    %3214 = vmatprep.subr.mxu0 0.0
    %3215 = vmatpush2.xpose.msra.mxu0 0.0
    %3216 = vmatprep.mubr.f32.mxu0 0.0
    %3217 = vmatmul.mubr.f32.gmra.mxu0 %v3148
    %v3218 = vpop.f32.mrf.mxu0
    %v3219 = vadd.f32 0.0, %v3218
    %v3220 = vpop.f32.mrf.mxu0
    %3221 = vdwg.mxu0
    %v3222 = vsel %vm578, %v3141, -inf
    %3223 = vmax.xlane.f32.xlu0 %v3222
    %v3224 = vpop.xlane.xlu0 %3223
    %v3225 = vsel %vm578, %v3219, -inf
    %3226 = vmax.xlane.f32.xlu0 %v3225
    %v3227 = vpop.xlane.xlu0 %3226
    %v3228 = vsub.f32 %v3141, %v3224
    %v3229 = vsub.f32 %v3219, %v3227
    %v3230 = vmul.f32 %v3228, 1.442695
    %v3231 = vpow.pop %v3230
    %v3232 = vmul.f32 %v3229, 1.442695
    %v3233 = vpow.pop %v3232
    %v3234 = vsel %vm578, %v3231, 0.0
    %3235 = vadd.xlane.f32.xlu0 %v3234
    %v3236 = vpop.xlane.xlu0 %3235
    %v3237 = vsel %vm578, %v3233, 0.0
    %3238 = vadd.xlane.f32.xlu0 %v3237
    %v3239 = vpop.xlane.xlu0 %3238
    %v3240 = vrcp.pop %v3236
    %v3241 = vrcp.pop %v3239
    %v3242 = vmul.f32 %v3231, %v3240
    %v3243 = vmul.f32 %v3233, %v3241
    %3244 = vrot.lane.b32.xlu0 %v2400, 48
    %v3245 = vpop.permute.xlu0 %3244
    %v3248 = vsel %vm578, %v3242, 0
    %3250 = vmatprep.subr.mxu0 0.0
    %3251 = vmatpush1.msra.mxu0 0.0
    %3252 = vmatprep.subr.mxu0 0.0
    %3253 = vmatpush1.msra.mxu0 0.0
    %3254 = vmatprep.subr.mxu0 0.0
    %3255 = vmatpush1.msra.mxu0 0.0
    %3256 = vmatprep.subr.mxu0 0.0
    %3257 = vmatpush1.msra.mxu0 0.0
    %3258 = vmatprep.subr.mxu0 0.0
    %3259 = vmatpush1.msra.mxu0 0.0
    %3260 = vmatprep.subr.mxu0 0.0
    %3261 = vmatpush1.msra.mxu0 0.0
    %3262 = vmatprep.subr.mxu0 0.0
    %3263 = vmatpush1.msra.mxu0 0.0
    %3264 = vmatprep.subr.mxu0 0.0
    %3265 = vmatpush1.msra.mxu0 0.0
    %3266 = vmatprep.subr.mxu0 0.0
    %3267 = vmatpush1.msra.mxu0 0.0
    %3268 = vmatprep.subr.mxu0 0.0
    %3269 = vmatpush1.msra.mxu0 0.0
    %3270 = vmatprep.subr.mxu0 0.0
    %3271 = vmatpush1.msra.mxu0 0.0
    %3272 = vmatprep.subr.mxu0 0.0
    %3273 = vmatpush1.msra.mxu0 0.0
    %3274 = vmatprep.subr.mxu0 0.0
    %3275 = vmatpush1.msra.mxu0 0.0
    %3276 = vmatprep.subr.mxu0 0.0
    %3277 = vmatpush1.msra.mxu0 0.0
    %3278 = vmatprep.subr.mxu0 0.0
    %3279 = vmatpush1.msra.mxu0 0.0
    %3280 = vmatprep.subr.mxu0 0.0
    %3281 = vmatpush1.msra.mxu0 %v3245
    %3282 = vmatprep.subr.mxu0 0.0
    %3283 = vmatpush2.msra.mxu0 0.0
    %3284 = vmatprep.subr.mxu0 0.0
    %3285 = vmatpush2.msra.mxu0 0.0
    %3286 = vmatprep.subr.mxu0 0.0
    %3287 = vmatpush2.msra.mxu0 0.0
    %3288 = vmatprep.subr.mxu0 0.0
    %3289 = vmatpush2.msra.mxu0 0.0
    %3290 = vmatprep.subr.mxu0 0.0
    %3291 = vmatpush2.msra.mxu0 0.0
    %3292 = vmatprep.subr.mxu0 0.0
    %3293 = vmatpush2.msra.mxu0 0.0
    %3294 = vmatprep.subr.mxu0 0.0
    %3295 = vmatpush2.msra.mxu0 0.0
    %3296 = vmatprep.subr.mxu0 0.0
    %3297 = vmatpush2.msra.mxu0 0.0
    %3298 = vmatprep.subr.mxu0 0.0
    %3299 = vmatpush2.msra.mxu0 0.0
    %3300 = vmatprep.subr.mxu0 0.0
    %3301 = vmatpush2.msra.mxu0 0.0
    %3302 = vmatprep.subr.mxu0 0.0
    %3303 = vmatpush2.msra.mxu0 0.0
    %3304 = vmatprep.subr.mxu0 0.0
    %3305 = vmatpush2.msra.mxu0 0.0
    %3306 = vmatprep.subr.mxu0 0.0
    %3307 = vmatpush2.msra.mxu0 0.0
    %3308 = vmatprep.subr.mxu0 0.0
    %3309 = vmatpush2.msra.mxu0 0.0
    %3310 = vmatprep.subr.mxu0 0.0
    %3311 = vmatpush2.msra.mxu0 0.0
    %3312 = vmatprep.subr.mxu0 0.0
    %3313 = vmatpush2.msra.mxu0 0.0
    %3314 = vmatprep.mubr.f32.mxu0 0.0
    %3315 = vmatmul.mubr.f32.gmra.mxu0 %v3248
    %v3316 = vpop.f32.mrf.mxu0
    %v3317 = vadd.f32 0.0, %v3316
    %v3318 = vpop.f32.mrf.mxu0
    %3319 = vdwg.mxu0
    %3320 = vrot.lane.b32.xlu0 %v2405, 48
    %v3321 = vpop.permute.xlu0 %3320
    %v3324 = vsel %vm578, %v3243, 0
    %3326 = vmatprep.subr.mxu0 0.0
    %3327 = vmatpush1.msra.mxu0 0.0
    %3328 = vmatprep.subr.mxu0 0.0
    %3329 = vmatpush1.msra.mxu0 0.0
    %3330 = vmatprep.subr.mxu0 0.0
    %3331 = vmatpush1.msra.mxu0 0.0
    %3332 = vmatprep.subr.mxu0 0.0
    %3333 = vmatpush1.msra.mxu0 0.0
    %3334 = vmatprep.subr.mxu0 0.0
    %3335 = vmatpush1.msra.mxu0 0.0
    %3336 = vmatprep.subr.mxu0 0.0
    %3337 = vmatpush1.msra.mxu0 0.0
    %3338 = vmatprep.subr.mxu0 0.0
    %3339 = vmatpush1.msra.mxu0 0.0
    %3340 = vmatprep.subr.mxu0 0.0
    %3341 = vmatpush1.msra.mxu0 0.0
    %3342 = vmatprep.subr.mxu0 0.0
    %3343 = vmatpush1.msra.mxu0 0.0
    %3344 = vmatprep.subr.mxu0 0.0
    %3345 = vmatpush1.msra.mxu0 0.0
    %3346 = vmatprep.subr.mxu0 0.0
    %3347 = vmatpush1.msra.mxu0 0.0
    %3348 = vmatprep.subr.mxu0 0.0
    %3349 = vmatpush1.msra.mxu0 0.0
    %3350 = vmatprep.subr.mxu0 0.0
    %3351 = vmatpush1.msra.mxu0 0.0
    %3352 = vmatprep.subr.mxu0 0.0
    %3353 = vmatpush1.msra.mxu0 0.0
    %3354 = vmatprep.subr.mxu0 0.0
    %3355 = vmatpush1.msra.mxu0 0.0
    %3356 = vmatprep.subr.mxu0 0.0
    %3357 = vmatpush1.msra.mxu0 %v3321
    %3358 = vmatprep.subr.mxu0 0.0
    %3359 = vmatpush2.msra.mxu0 0.0
    %3360 = vmatprep.subr.mxu0 0.0
    %3361 = vmatpush2.msra.mxu0 0.0
    %3362 = vmatprep.subr.mxu0 0.0
    %3363 = vmatpush2.msra.mxu0 0.0
    %3364 = vmatprep.subr.mxu0 0.0
    %3365 = vmatpush2.msra.mxu0 0.0
    %3366 = vmatprep.subr.mxu0 0.0
    %3367 = vmatpush2.msra.mxu0 0.0
    %3368 = vmatprep.subr.mxu0 0.0
    %3369 = vmatpush2.msra.mxu0 0.0
    %3370 = vmatprep.subr.mxu0 0.0
    %3371 = vmatpush2.msra.mxu0 0.0
    %3372 = vmatprep.subr.mxu0 0.0
    %3373 = vmatpush2.msra.mxu0 0.0
    %3374 = vmatprep.subr.mxu0 0.0
    %3375 = vmatpush2.msra.mxu0 0.0
    %3376 = vmatprep.subr.mxu0 0.0
    %3377 = vmatpush2.msra.mxu0 0.0
    %3378 = vmatprep.subr.mxu0 0.0
    %3379 = vmatpush2.msra.mxu0 0.0
    %3380 = vmatprep.subr.mxu0 0.0
    %3381 = vmatpush2.msra.mxu0 0.0
    %3382 = vmatprep.subr.mxu0 0.0
    %3383 = vmatpush2.msra.mxu0 0.0
    %3384 = vmatprep.subr.mxu0 0.0
    %3385 = vmatpush2.msra.mxu0 0.0
    %3386 = vmatprep.subr.mxu0 0.0
    %3387 = vmatpush2.msra.mxu0 0.0
    %3388 = vmatprep.subr.mxu0 0.0
    %3389 = vmatpush2.msra.mxu0 0.0
    %3390 = vmatprep.mubr.f32.mxu0 0.0
    %3391 = vmatmul.mubr.f32.gmra.mxu0 %v3324
    %v3392 = vpop.f32.mrf.mxu0
    %v3393 = vadd.f32 0.0, %v3392
    %v3394 = vpop.f32.mrf.mxu0
    %3395 = vdwg.mxu0
    %3396 = vrot.lane.b32.xlu0 %v2400, 104
    %v3397 = vpop.permute.xlu0 %3396
    %3398 = vrot.lane.b32.xlu0 %v2400, 72
    %v3399 = vpop.permute.xlu0 %3398
    %v3400 = vsel %vm578, %v3397, 0
    %v3402 = vsel %vm578, %v3399, 0
    %3404 = vmatprep.subr.mxu0 0.0
    %3405 = vmatpush1.xpose.msra.mxu0 0.0
    %3406 = vmatprep.subr.mxu0 0.0
    %3407 = vmatpush1.xpose.msra.mxu0 0.0
    %3408 = vmatprep.subr.mxu0 0.0
    %3409 = vmatpush1.xpose.msra.mxu0 0.0
    %3410 = vmatprep.subr.mxu0 0.0
    %3411 = vmatpush1.xpose.msra.mxu0 0.0
    %3412 = vmatprep.subr.mxu0 0.0
    %3413 = vmatpush1.xpose.msra.mxu0 0.0
    %3414 = vmatprep.subr.mxu0 0.0
    %3415 = vmatpush1.xpose.msra.mxu0 0.0
    %3416 = vmatprep.subr.mxu0 0.0
    %3417 = vmatpush1.xpose.msra.mxu0 0.0
    %3418 = vmatprep.subr.mxu0 0.0
    %3419 = vmatpush1.xpose.msra.mxu0 0.0
    %3420 = vmatprep.subr.mxu0 0.0
    %3421 = vmatpush1.xpose.msra.mxu0 0.0
    %3422 = vmatprep.subr.mxu0 0.0
    %3423 = vmatpush1.xpose.msra.mxu0 0.0
    %3424 = vmatprep.subr.mxu0 0.0
    %3425 = vmatpush1.xpose.msra.mxu0 0.0
    %3426 = vmatprep.subr.mxu0 0.0
    %3427 = vmatpush1.xpose.msra.mxu0 0.0
    %3428 = vmatprep.subr.mxu0 0.0
    %3429 = vmatpush1.xpose.msra.mxu0 0.0
    %3430 = vmatprep.subr.mxu0 0.0
    %3431 = vmatpush1.xpose.msra.mxu0 0.0
    %3432 = vmatprep.subr.mxu0 0.0
    %3433 = vmatpush1.xpose.msra.mxu0 0.0
    %3434 = vmatprep.subr.mxu0 0.0
    %3435 = vmatpush1.xpose.msra.mxu0 %v3402
    %3436 = vmatprep.subr.mxu0 0.0
    %3437 = vmatpush2.xpose.msra.mxu0 0.0
    %3438 = vmatprep.subr.mxu0 0.0
    %3439 = vmatpush2.xpose.msra.mxu0 0.0
    %3440 = vmatprep.subr.mxu0 0.0
    %3441 = vmatpush2.xpose.msra.mxu0 0.0
    %3442 = vmatprep.subr.mxu0 0.0
    %3443 = vmatpush2.xpose.msra.mxu0 0.0
    %3444 = vmatprep.subr.mxu0 0.0
    %3445 = vmatpush2.xpose.msra.mxu0 0.0
    %3446 = vmatprep.subr.mxu0 0.0
    %3447 = vmatpush2.xpose.msra.mxu0 0.0
    %3448 = vmatprep.subr.mxu0 0.0
    %3449 = vmatpush2.xpose.msra.mxu0 0.0
    %3450 = vmatprep.subr.mxu0 0.0
    %3451 = vmatpush2.xpose.msra.mxu0 0.0
    %3452 = vmatprep.subr.mxu0 0.0
    %3453 = vmatpush2.xpose.msra.mxu0 0.0
    %3454 = vmatprep.subr.mxu0 0.0
    %3455 = vmatpush2.xpose.msra.mxu0 0.0
    %3456 = vmatprep.subr.mxu0 0.0
    %3457 = vmatpush2.xpose.msra.mxu0 0.0
    %3458 = vmatprep.subr.mxu0 0.0
    %3459 = vmatpush2.xpose.msra.mxu0 0.0
    %3460 = vmatprep.subr.mxu0 0.0
    %3461 = vmatpush2.xpose.msra.mxu0 0.0
    %3462 = vmatprep.subr.mxu0 0.0
    %3463 = vmatpush2.xpose.msra.mxu0 0.0
    %3464 = vmatprep.subr.mxu0 0.0
    %3465 = vmatpush2.xpose.msra.mxu0 0.0
    %3466 = vmatprep.subr.mxu0 0.0
    %3467 = vmatpush2.xpose.msra.mxu0 0.0
    %3468 = vmatprep.mubr.f32.mxu0 0.0
    %3469 = vmatmul.mubr.f32.gmra.mxu0 %v3400
    %v3470 = vpop.f32.mrf.mxu0
    %v3471 = vadd.f32 0.0, %v3470
    %v3472 = vpop.f32.mrf.mxu0
    %3473 = vdwg.mxu0
    %3474 = vrot.lane.b32.xlu0 %v2405, 104
    %v3475 = vpop.permute.xlu0 %3474
    %3476 = vrot.lane.b32.xlu0 %v2405, 72
    %v3477 = vpop.permute.xlu0 %3476
    %v3478 = vsel %vm578, %v3475, 0
    %v3480 = vsel %vm578, %v3477, 0
    %3482 = vmatprep.subr.mxu0 0.0
    %3483 = vmatpush1.xpose.msra.mxu0 0.0
    %3484 = vmatprep.subr.mxu0 0.0
    %3485 = vmatpush1.xpose.msra.mxu0 0.0
    %3486 = vmatprep.subr.mxu0 0.0
    %3487 = vmatpush1.xpose.msra.mxu0 0.0
    %3488 = vmatprep.subr.mxu0 0.0
    %3489 = vmatpush1.xpose.msra.mxu0 0.0
    %3490 = vmatprep.subr.mxu0 0.0
    %3491 = vmatpush1.xpose.msra.mxu0 0.0
    %3492 = vmatprep.subr.mxu0 0.0
    %3493 = vmatpush1.xpose.msra.mxu0 0.0
    %3494 = vmatprep.subr.mxu0 0.0
    %3495 = vmatpush1.xpose.msra.mxu0 0.0
    %3496 = vmatprep.subr.mxu0 0.0
    %3497 = vmatpush1.xpose.msra.mxu0 0.0
    %3498 = vmatprep.subr.mxu0 0.0
    %3499 = vmatpush1.xpose.msra.mxu0 0.0
    %3500 = vmatprep.subr.mxu0 0.0
    %3501 = vmatpush1.xpose.msra.mxu0 0.0
    %3502 = vmatprep.subr.mxu0 0.0
    %3503 = vmatpush1.xpose.msra.mxu0 0.0
    %3504 = vmatprep.subr.mxu0 0.0
    %3505 = vmatpush1.xpose.msra.mxu0 0.0
    %3506 = vmatprep.subr.mxu0 0.0
    %3507 = vmatpush1.xpose.msra.mxu0 0.0
    %3508 = vmatprep.subr.mxu0 0.0
    %3509 = vmatpush1.xpose.msra.mxu0 0.0
    %3510 = vmatprep.subr.mxu0 0.0
    %3511 = vmatpush1.xpose.msra.mxu0 0.0
    %3512 = vmatprep.subr.mxu0 0.0
    %3513 = vmatpush1.xpose.msra.mxu0 %v3480
    %3514 = vmatprep.subr.mxu0 0.0
    %3515 = vmatpush2.xpose.msra.mxu0 0.0
    %3516 = vmatprep.subr.mxu0 0.0
    %3517 = vmatpush2.xpose.msra.mxu0 0.0
    %3518 = vmatprep.subr.mxu0 0.0
    %3519 = vmatpush2.xpose.msra.mxu0 0.0
    %3520 = vmatprep.subr.mxu0 0.0
    %3521 = vmatpush2.xpose.msra.mxu0 0.0
    %3522 = vmatprep.subr.mxu0 0.0
    %3523 = vmatpush2.xpose.msra.mxu0 0.0
    %3524 = vmatprep.subr.mxu0 0.0
    %3525 = vmatpush2.xpose.msra.mxu0 0.0
    %3526 = vmatprep.subr.mxu0 0.0
    %3527 = vmatpush2.xpose.msra.mxu0 0.0
    %3528 = vmatprep.subr.mxu0 0.0
    %3529 = vmatpush2.xpose.msra.mxu0 0.0
    %3530 = vmatprep.subr.mxu0 0.0
    %3531 = vmatpush2.xpose.msra.mxu0 0.0
    %3532 = vmatprep.subr.mxu0 0.0
    %3533 = vmatpush2.xpose.msra.mxu0 0.0
    %3534 = vmatprep.subr.mxu0 0.0
    %3535 = vmatpush2.xpose.msra.mxu0 0.0
    %3536 = vmatprep.subr.mxu0 0.0
    %3537 = vmatpush2.xpose.msra.mxu0 0.0
    %3538 = vmatprep.subr.mxu0 0.0
    %3539 = vmatpush2.xpose.msra.mxu0 0.0
    %3540 = vmatprep.subr.mxu0 0.0
    %3541 = vmatpush2.xpose.msra.mxu0 0.0
    %3542 = vmatprep.subr.mxu0 0.0
    %3543 = vmatpush2.xpose.msra.mxu0 0.0
    %3544 = vmatprep.subr.mxu0 0.0
    %3545 = vmatpush2.xpose.msra.mxu0 0.0
    %3546 = vmatprep.mubr.f32.mxu0 0.0
    %3547 = vmatmul.mubr.f32.gmra.mxu0 %v3478
    %v3548 = vpop.f32.mrf.mxu0
    %v3549 = vadd.f32 0.0, %v3548
    %v3550 = vpop.f32.mrf.mxu0
    %3551 = vdwg.mxu0
    %v3552 = vsel %vm578, %v3471, -inf
    %3553 = vmax.xlane.f32.xlu0 %v3552
    %v3554 = vpop.xlane.xlu0 %3553
    %v3555 = vsel %vm578, %v3549, -inf
    %3556 = vmax.xlane.f32.xlu0 %v3555
    %v3557 = vpop.xlane.xlu0 %3556
    %v3558 = vsub.f32 %v3471, %v3554
    %v3559 = vsub.f32 %v3549, %v3557
    %v3560 = vmul.f32 %v3558, 1.442695
    %v3561 = vpow.pop %v3560
    %v3562 = vmul.f32 %v3559, 1.442695
    %v3563 = vpow.pop %v3562
    %v3564 = vsel %vm578, %v3561, 0.0
    %3565 = vadd.xlane.f32.xlu0 %v3564
    %v3566 = vpop.xlane.xlu0 %3565
    %v3567 = vsel %vm578, %v3563, 0.0
    %3568 = vadd.xlane.f32.xlu0 %v3567
    %v3569 = vpop.xlane.xlu0 %3568
    %v3570 = vrcp.pop %v3566
    %v3571 = vrcp.pop %v3569
    %v3572 = vmul.f32 %v3561, %v3570
    %v3573 = vmul.f32 %v3563, %v3571
    %3574 = vrot.lane.b32.xlu0 %v2400, 40
    %v3575 = vpop.permute.xlu0 %3574
    %v3578 = vsel %vm578, %v3572, 0
    %3580 = vmatprep.subr.mxu0 0.0
    %3581 = vmatpush1.msra.mxu0 0.0
    %3582 = vmatprep.subr.mxu0 0.0
    %3583 = vmatpush1.msra.mxu0 0.0
    %3584 = vmatprep.subr.mxu0 0.0
    %3585 = vmatpush1.msra.mxu0 0.0
    %3586 = vmatprep.subr.mxu0 0.0
    %3587 = vmatpush1.msra.mxu0 0.0
    %3588 = vmatprep.subr.mxu0 0.0
    %3589 = vmatpush1.msra.mxu0 0.0
    %3590 = vmatprep.subr.mxu0 0.0
    %3591 = vmatpush1.msra.mxu0 0.0
    %3592 = vmatprep.subr.mxu0 0.0
    %3593 = vmatpush1.msra.mxu0 0.0
    %3594 = vmatprep.subr.mxu0 0.0
    %3595 = vmatpush1.msra.mxu0 0.0
    %3596 = vmatprep.subr.mxu0 0.0
    %3597 = vmatpush1.msra.mxu0 0.0
    %3598 = vmatprep.subr.mxu0 0.0
    %3599 = vmatpush1.msra.mxu0 0.0
    %3600 = vmatprep.subr.mxu0 0.0
    %3601 = vmatpush1.msra.mxu0 0.0
    %3602 = vmatprep.subr.mxu0 0.0
    %3603 = vmatpush1.msra.mxu0 0.0
    %3604 = vmatprep.subr.mxu0 0.0
    %3605 = vmatpush1.msra.mxu0 0.0
    %3606 = vmatprep.subr.mxu0 0.0
    %3607 = vmatpush1.msra.mxu0 0.0
    %3608 = vmatprep.subr.mxu0 0.0
    %3609 = vmatpush1.msra.mxu0 0.0
    %3610 = vmatprep.subr.mxu0 0.0
    %3611 = vmatpush1.msra.mxu0 %v3575
    %3612 = vmatprep.subr.mxu0 0.0
    %3613 = vmatpush2.msra.mxu0 0.0
    %3614 = vmatprep.subr.mxu0 0.0
    %3615 = vmatpush2.msra.mxu0 0.0
    %3616 = vmatprep.subr.mxu0 0.0
    %3617 = vmatpush2.msra.mxu0 0.0
    %3618 = vmatprep.subr.mxu0 0.0
    %3619 = vmatpush2.msra.mxu0 0.0
    %3620 = vmatprep.subr.mxu0 0.0
    %3621 = vmatpush2.msra.mxu0 0.0
    %3622 = vmatprep.subr.mxu0 0.0
    %3623 = vmatpush2.msra.mxu0 0.0
    %3624 = vmatprep.subr.mxu0 0.0
    %3625 = vmatpush2.msra.mxu0 0.0
    %3626 = vmatprep.subr.mxu0 0.0
    %3627 = vmatpush2.msra.mxu0 0.0
    %3628 = vmatprep.subr.mxu0 0.0
    %3629 = vmatpush2.msra.mxu0 0.0
    %3630 = vmatprep.subr.mxu0 0.0
    %3631 = vmatpush2.msra.mxu0 0.0
    %3632 = vmatprep.subr.mxu0 0.0
    %3633 = vmatpush2.msra.mxu0 0.0
    %3634 = vmatprep.subr.mxu0 0.0
    %3635 = vmatpush2.msra.mxu0 0.0
    %3636 = vmatprep.subr.mxu0 0.0
    %3637 = vmatpush2.msra.mxu0 0.0
    %3638 = vmatprep.subr.mxu0 0.0
    %3639 = vmatpush2.msra.mxu0 0.0
    %3640 = vmatprep.subr.mxu0 0.0
    %3641 = vmatpush2.msra.mxu0 0.0
    %3642 = vmatprep.subr.mxu0 0.0
    %3643 = vmatpush2.msra.mxu0 0.0
    %3644 = vmatprep.mubr.f32.mxu0 0.0
    %3645 = vmatmul.mubr.f32.gmra.mxu0 %v3578
    %v3646 = vpop.f32.mrf.mxu0
    %v3647 = vadd.f32 0.0, %v3646
    %v3648 = vpop.f32.mrf.mxu0
    %3649 = vdwg.mxu0
    %3650 = vrot.lane.b32.xlu0 %v2405, 40
    %v3651 = vpop.permute.xlu0 %3650
    %v3654 = vsel %vm578, %v3573, 0
    %3656 = vmatprep.subr.mxu0 0.0
    %3657 = vmatpush1.msra.mxu0 0.0
    %3658 = vmatprep.subr.mxu0 0.0
    %3659 = vmatpush1.msra.mxu0 0.0
    %3660 = vmatprep.subr.mxu0 0.0
    %3661 = vmatpush1.msra.mxu0 0.0
    %3662 = vmatprep.subr.mxu0 0.0
    %3663 = vmatpush1.msra.mxu0 0.0
    %3664 = vmatprep.subr.mxu0 0.0
    %3665 = vmatpush1.msra.mxu0 0.0
    %3666 = vmatprep.subr.mxu0 0.0
    %3667 = vmatpush1.msra.mxu0 0.0
    %3668 = vmatprep.subr.mxu0 0.0
    %3669 = vmatpush1.msra.mxu0 0.0
    %3670 = vmatprep.subr.mxu0 0.0
    %3671 = vmatpush1.msra.mxu0 0.0
    %3672 = vmatprep.subr.mxu0 0.0
    %3673 = vmatpush1.msra.mxu0 0.0
    %3674 = vmatprep.subr.mxu0 0.0
    %3675 = vmatpush1.msra.mxu0 0.0
    %3676 = vmatprep.subr.mxu0 0.0
    %3677 = vmatpush1.msra.mxu0 0.0
    %3678 = vmatprep.subr.mxu0 0.0
    %3679 = vmatpush1.msra.mxu0 0.0
    %3680 = vmatprep.subr.mxu0 0.0
    %3681 = vmatpush1.msra.mxu0 0.0
    %3682 = vmatprep.subr.mxu0 0.0
    %3683 = vmatpush1.msra.mxu0 0.0
    %3684 = vmatprep.subr.mxu0 0.0
    %3685 = vmatpush1.msra.mxu0 0.0
    %3686 = vmatprep.subr.mxu0 0.0
    %3687 = vmatpush1.msra.mxu0 %v3651
    %3688 = vmatprep.subr.mxu0 0.0
    %3689 = vmatpush2.msra.mxu0 0.0
    %3690 = vmatprep.subr.mxu0 0.0
    %3691 = vmatpush2.msra.mxu0 0.0
    %3692 = vmatprep.subr.mxu0 0.0
    %3693 = vmatpush2.msra.mxu0 0.0
    %3694 = vmatprep.subr.mxu0 0.0
    %3695 = vmatpush2.msra.mxu0 0.0
    %3696 = vmatprep.subr.mxu0 0.0
    %3697 = vmatpush2.msra.mxu0 0.0
    %3698 = vmatprep.subr.mxu0 0.0
    %3699 = vmatpush2.msra.mxu0 0.0
    %3700 = vmatprep.subr.mxu0 0.0
    %3701 = vmatpush2.msra.mxu0 0.0
    %3702 = vmatprep.subr.mxu0 0.0
    %3703 = vmatpush2.msra.mxu0 0.0
    %3704 = vmatprep.subr.mxu0 0.0
    %3705 = vmatpush2.msra.mxu0 0.0
    %3706 = vmatprep.subr.mxu0 0.0
    %3707 = vmatpush2.msra.mxu0 0.0
    %3708 = vmatprep.subr.mxu0 0.0
    %3709 = vmatpush2.msra.mxu0 0.0
    %3710 = vmatprep.subr.mxu0 0.0
    %3711 = vmatpush2.msra.mxu0 0.0
    %3712 = vmatprep.subr.mxu0 0.0
    %3713 = vmatpush2.msra.mxu0 0.0
    %3714 = vmatprep.subr.mxu0 0.0
    %3715 = vmatpush2.msra.mxu0 0.0
    %3716 = vmatprep.subr.mxu0 0.0
    %3717 = vmatpush2.msra.mxu0 0.0
    %3718 = vmatprep.subr.mxu0 0.0
    %3719 = vmatpush2.msra.mxu0 0.0
    %3720 = vmatprep.mubr.f32.mxu0 0.0
    %3721 = vmatmul.mubr.f32.gmra.mxu0 %v3654
    %v3722 = vpop.f32.mrf.mxu0
    %v3723 = vadd.f32 0.0, %v3722
    %v3724 = vpop.f32.mrf.mxu0
    %3725 = vdwg.mxu0
    %3728 = vrot.lane.b32.xlu0 %v2987, 8
    %v3729 = vpop.permute.xlu0 %3728
    %3730 = vrot.lane.b32.xlu0 %v3063, 8
    %v3731 = vpop.permute.xlu0 %3730
    %3736 = vrot.lane.b32.xlu0 %v3317, 16
    %v3737 = vpop.permute.xlu0 %3736
    %3738 = vrot.lane.b32.xlu0 %v3393, 16
    %v3739 = vpop.permute.xlu0 %3738
    %3744 = vrot.lane.b32.xlu0 %v3647, 24
    %v3745 = vpop.permute.xlu0 %3744
    %3746 = vrot.lane.b32.xlu0 %v3723, 24
    %v3747 = vpop.permute.xlu0 %3746
    %v3750 = vsel %vm578, %v2657, %v3729
    %v3751 = vsel %vm578, %v2733, %v3731
    %v3752 = vsel %vm217, %v3750, %v3737
    %v3753 = vsel %vm217, %v3751, %v3739
    %v3754 = vsel %vm1922, %v3752, %v3745
    %v3755 = vsel %vm1922, %v3753, %v3747
    %s3756 = scalar_lea.vmem %s13, 32
    %v3757 = vld [vmem:[%s3756] sm:$0xff]
    %v3758 = vld [vmem:[%s3756 + $0x8] sm:$0xff]
    %v3759 = vld [vmem:[%s3756 + $0x10] sm:$0xff]
    %v3760 = vld [vmem:[%s3756 + $0x18] sm:$0xff]
    %v3762 = vsel %vm439, %v3754, 0
    %v3765 = vsel %vm439, %v3755, 0
    %3767 = vmatprep.subr.mxu0 0.0
    %3768 = vmatpush1.msra.mxu0 0.0
    %3769 = vmatprep.subr.mxu0 0.0
    %3770 = vmatpush1.msra.mxu0 0.0
    %3771 = vmatprep.subr.mxu0 0.0
    %3772 = vmatpush1.msra.mxu0 0.0
    %3773 = vmatprep.subr.mxu0 0.0
    %3774 = vmatpush1.msra.mxu0 0.0
    %3775 = vmatprep.subr.mxu0 0.0
    %3776 = vmatpush1.msra.mxu0 0.0
    %3777 = vmatprep.subr.mxu0 0.0
    %3778 = vmatpush1.msra.mxu0 0.0
    %3779 = vmatprep.subr.mxu0 0.0
    %3780 = vmatpush1.msra.mxu0 0.0
    %3781 = vmatprep.subr.mxu0 0.0
    %3782 = vmatpush1.msra.mxu0 0.0
    %3783 = vmatprep.subr.mxu0 0.0
    %3784 = vmatpush1.msra.mxu0 0.0
    %3785 = vmatprep.subr.mxu0 0.0
    %3786 = vmatpush1.msra.mxu0 0.0
    %3787 = vmatprep.subr.mxu0 0.0
    %3788 = vmatpush1.msra.mxu0 0.0
    %3789 = vmatprep.subr.mxu0 0.0
    %3790 = vmatpush1.msra.mxu0 0.0
    %3791 = vmatprep.subr.mxu0 0.0
    %3792 = vmatpush1.msra.mxu0 %v3760
    %3793 = vmatprep.subr.mxu0 0.0
    %3794 = vmatpush1.msra.mxu0 %v3759
    %3795 = vmatprep.subr.mxu0 0.0
    %3796 = vmatpush1.msra.mxu0 %v3758
    %3797 = vmatprep.subr.mxu0 0.0
    %3798 = vmatpush1.msra.mxu0 %v3757
    %3799 = vmatprep.subr.mxu0 0.0
    %3800 = vmatpush2.msra.mxu0 0.0
    %3801 = vmatprep.subr.mxu0 0.0
    %3802 = vmatpush2.msra.mxu0 0.0
    %3803 = vmatprep.subr.mxu0 0.0
    %3804 = vmatpush2.msra.mxu0 0.0
    %3805 = vmatprep.subr.mxu0 0.0
    %3806 = vmatpush2.msra.mxu0 0.0
    %3807 = vmatprep.subr.mxu0 0.0
    %3808 = vmatpush2.msra.mxu0 0.0
    %3809 = vmatprep.subr.mxu0 0.0
    %3810 = vmatpush2.msra.mxu0 0.0
    %3811 = vmatprep.subr.mxu0 0.0
    %3812 = vmatpush2.msra.mxu0 0.0
    %3813 = vmatprep.subr.mxu0 0.0
    %3814 = vmatpush2.msra.mxu0 0.0
    %3815 = vmatprep.subr.mxu0 0.0
    %3816 = vmatpush2.msra.mxu0 0.0
    %3817 = vmatprep.subr.mxu0 0.0
    %3818 = vmatpush2.msra.mxu0 0.0
    %3819 = vmatprep.subr.mxu0 0.0
    %3820 = vmatpush2.msra.mxu0 0.0
    %3821 = vmatprep.subr.mxu0 0.0
    %3822 = vmatpush2.msra.mxu0 0.0
    %3823 = vmatprep.subr.mxu0 0.0
    %3824 = vmatpush2.msra.mxu0 0.0
    %3825 = vmatprep.subr.mxu0 0.0
    %3826 = vmatpush2.msra.mxu0 0.0
    %3827 = vmatprep.subr.mxu0 0.0
    %3828 = vmatpush2.msra.mxu0 0.0
    %3829 = vmatprep.subr.mxu0 0.0
    %3830 = vmatpush2.msra.mxu0 0.0
    %3831 = vmatprep.mubr.f32.mxu0 0.0
    %3832 = vmatmul.mubr.f32.gmra.mxu0 %v3762
    %v3833 = vpop.f32.mrf.mxu0
    %v3834 = vadd.f32 0.0, %v3833
    %v3835 = vpop.f32.mrf.mxu0
    %3836 = vmatprep.mubr.f32.mxu0 0.0
    %3837 = vmatmul.mubr.f32.gmra.mxu0 %v3765
    %v3838 = vpop.f32.mrf.mxu0
    %v3839 = vadd.f32 0.0, %v3838
    %v3840 = vpop.f32.mrf.mxu0
    %3841 = vdwg.mxu0
    %v3842 = vadd.f32 %v2266, %v3834
    %v3843 = vadd.f32 %v2267, %v3839
    %s3844 = scalar_lea.vmem [#allocation11], 1
    %v3845 = vld [vmem:[%s3844] sm:$0x1]
    %v3847 = vlaneseq
    %v3848 = vshrl.u32 %v3847, 7
    %v3849 = vsub.s32 0, %v3848
    %v3850 = vrot.slane %v3845, %v3849
    %v3852 = vadd.f32 %v3842, %v3850
    %v3853 = vadd.f32 %v3843, %v3850
    %s3854 = scalar_lea.vmem [#allocation13], 1
    %v3855 = vld [vmem:[%s3854] sm:$0x1]
    %s3856 = scalar_lea.vmem [#allocation14], 1
    %v3857 = vld [vmem:[%s3856] sm:$0x1]
    %v3858 = vsel %vm439, %v3852, 0.0
    %3859 = vadd.xlane.f32.xlu0 %v3858
    %v3860 = vpop.xlane.xlu0 %3859
    %v3861 = vsel %vm439, %v3853, 0.0
    %3862 = vadd.xlane.f32.xlu0 %v3861
    %v3863 = vpop.xlane.xlu0 %3862
    %v3864 = vmul.f32 %v3860, %v446
    %v3865 = vmul.f32 %v3863, %v446
    %v3866 = vsub.f32 %v3852, %v3864
    %v3867 = vsub.f32 %v3853, %v3865
    %v3868 = vmul.f32 %v3866, %v3866
    %v3869 = vmul.f32 %v3867, %v3867
    %v3870 = vsel %vm439, %v3868, 0.0
    %3871 = vadd.xlane.f32.xlu0 %v3870
    %v3872 = vpop.xlane.xlu0 %3871
    %v3873 = vsel %vm439, %v3869, 0.0
    %3874 = vadd.xlane.f32.xlu0 %v3873
    %v3875 = vpop.xlane.xlu0 %3874
    %v3876 = vmul.f32 %v3872, %v446
    %v3877 = vmul.f32 %v3875, %v446
    %v3878 = vadd.f32 %v3876, 1e-05
    %v3879 = vadd.f32 %v3877, 1e-05
    %v3880 = vrsqrt.pop %v3878
    %v3881 = vrsqrt.pop %v3879
    %v3882 = vmul.f32 %v3866, %v3880
    %v3883 = vmul.f32 %v3867, %v3881
    %v3885 = vlaneseq
    %v3886 = vshrl.u32 %v3885, 7
    %v3887 = vsub.s32 0, %v3886
    %v3888 = vrot.slane %v3855, %v3887
    %v3890 = vmul.f32 %v3882, %v3888
    %v3891 = vmul.f32 %v3883, %v3888
    %v3893 = vlaneseq
    %v3894 = vshrl.u32 %v3893, 7
    %v3895 = vsub.s32 0, %v3894
    %v3896 = vrot.slane %v3857, %v3895
    %v3898 = vadd.f32 %v3890, %v3896
    %v3899 = vadd.f32 %v3891, %v3896
    %s3900 = scalar_lea.vmem %s17, 32
    %v3901 = vld [vmem:[%s3900] sm:$0xff]
    %v3902 = vld [vmem:[%s3900 + $0x8] sm:$0xff]
    %v3903 = vld [vmem:[%s3900 + $0x10] sm:$0xff]
    %v3904 = vld [vmem:[%s3900 + $0x18] sm:$0xff]
    %s3905 = scalar_lea.vmem [#allocation16], 1
    %v3906 = vld [vmem:[%s3905] sm:$0x1]
    %v3908 = vlaneseq
    %v3909 = vshrl.u32 %v3908, 7
    %v3910 = vsub.s32 0, %v3909
    %v3911 = vrot.slane %v3906, %v3910
    %v3914 = vsel %vm439, %v3898, 0
    %v3917 = vsel %vm439, %v3899, 0
    %3919 = vmatprep.subr.mxu0 0.0
    %3920 = vmatpush1.msra.mxu0 0.0
    %3921 = vmatprep.subr.mxu0 0.0
    %3922 = vmatpush1.msra.mxu0 0.0
    %3923 = vmatprep.subr.mxu0 0.0
    %3924 = vmatpush1.msra.mxu0 0.0
    %3925 = vmatprep.subr.mxu0 0.0
    %3926 = vmatpush1.msra.mxu0 0.0
    %3927 = vmatprep.subr.mxu0 0.0
    %3928 = vmatpush1.msra.mxu0 0.0
    %3929 = vmatprep.subr.mxu0 0.0
    %3930 = vmatpush1.msra.mxu0 0.0
    %3931 = vmatprep.subr.mxu0 0.0
    %3932 = vmatpush1.msra.mxu0 0.0
    %3933 = vmatprep.subr.mxu0 0.0
    %3934 = vmatpush1.msra.mxu0 0.0
    %3935 = vmatprep.subr.mxu0 0.0
    %3936 = vmatpush1.msra.mxu0 0.0
    %3937 = vmatprep.subr.mxu0 0.0
    %3938 = vmatpush1.msra.mxu0 0.0
    %3939 = vmatprep.subr.mxu0 0.0
    %3940 = vmatpush1.msra.mxu0 0.0
    %3941 = vmatprep.subr.mxu0 0.0
    %3942 = vmatpush1.msra.mxu0 0.0
    %3943 = vmatprep.subr.mxu0 0.0
    %3944 = vmatpush1.msra.mxu0 %v3904
    %3945 = vmatprep.subr.mxu0 0.0
    %3946 = vmatpush1.msra.mxu0 %v3903
    %3947 = vmatprep.subr.mxu0 0.0
    %3948 = vmatpush1.msra.mxu0 %v3902
    %3949 = vmatprep.subr.mxu0 0.0
    %3950 = vmatpush1.msra.mxu0 %v3901
    %3951 = vmatprep.subr.mxu0 0.0
    %3952 = vmatpush2.msra.mxu0 0.0
    %3953 = vmatprep.subr.mxu0 0.0
    %3954 = vmatpush2.msra.mxu0 0.0
    %3955 = vmatprep.subr.mxu0 0.0
    %3956 = vmatpush2.msra.mxu0 0.0
    %3957 = vmatprep.subr.mxu0 0.0
    %3958 = vmatpush2.msra.mxu0 0.0
    %3959 = vmatprep.subr.mxu0 0.0
    %3960 = vmatpush2.msra.mxu0 0.0
    %3961 = vmatprep.subr.mxu0 0.0
    %3962 = vmatpush2.msra.mxu0 0.0
    %3963 = vmatprep.subr.mxu0 0.0
    %3964 = vmatpush2.msra.mxu0 0.0
    %3965 = vmatprep.subr.mxu0 0.0
    %3966 = vmatpush2.msra.mxu0 0.0
    %3967 = vmatprep.subr.mxu0 0.0
    %3968 = vmatpush2.msra.mxu0 0.0
    %3969 = vmatprep.subr.mxu0 0.0
    %3970 = vmatpush2.msra.mxu0 0.0
    %3971 = vmatprep.subr.mxu0 0.0
    %3972 = vmatpush2.msra.mxu0 0.0
    %3973 = vmatprep.subr.mxu0 0.0
    %3974 = vmatpush2.msra.mxu0 0.0
    %3975 = vmatprep.subr.mxu0 0.0
    %3976 = vmatpush2.msra.mxu0 0.0
    %3977 = vmatprep.subr.mxu0 0.0
    %3978 = vmatpush2.msra.mxu0 0.0
    %3979 = vmatprep.subr.mxu0 0.0
    %3980 = vmatpush2.msra.mxu0 0.0
    %3981 = vmatprep.subr.mxu0 0.0
    %3982 = vmatpush2.msra.mxu0 0.0
    %3983 = vmatprep.mubr.f32.mxu0 0.0
    %3984 = vmatmul.mubr.f32.gmra.mxu0 %v3914
    %v3985 = vpop.f32.mrf.mxu0
    %v3986 = vadd.f32 %v3911, %v3985
    %v3987 = vpop.f32.mrf.mxu0
    %3988 = vmatprep.mubr.f32.mxu0 0.0
    %3989 = vmatmul.mubr.f32.gmra.mxu0 %v3917
    %v3990 = vpop.f32.mrf.mxu0
    %v3991 = vadd.f32 %v3911, %v3990
    %v3992 = vpop.f32.mrf.mxu0
    %3993 = vdwg.mxu0
    %v3994 = vmul.f32 %v3986, 0.5
    %v3995 = vmul.f32 %v3991, 0.5
    %v3996 = vmul.f32 %v3986, 0.70710677
    %v3997 = vmul.f32 %v3991, 0.70710677
    %v3998 = verf.f32.pop %v3996
    %v3999 = verf.f32.pop %v3997
    %v4000 = vadd.f32 %v3998, 1.0
    %v4001 = vadd.f32 %v3999, 1.0
    %v4002 = vmul.f32 %v3994, %v4000
    %v4003 = vmul.f32 %v3995, %v4001
    %s4004 = scalar_lea.vmem %s19, 64
    %v4005 = vld [vmem:[%s4004] sm:$0xff]
    %v4006 = vld [vmem:[%s4004 + $0x8] sm:$0xff]
    %v4007 = vld [vmem:[%s4004 + $0x10] sm:$0xff]
    %v4008 = vld [vmem:[%s4004 + $0x18] sm:$0xff]
    %v4009 = vld [vmem:[%s4004 + $0x20] sm:$0xff]
    %v4010 = vld [vmem:[%s4004 + $0x28] sm:$0xff]
    %v4011 = vld [vmem:[%s4004 + $0x30] sm:$0xff]
    %v4012 = vld [vmem:[%s4004 + $0x38] sm:$0xff]
    %v4014 = vsel %vm2175, %v4002, 0
    %v4017 = vsel %vm2175, %v4003, 0
    %4019 = vmatprep.subr.mxu0 0.0
    %4020 = vmatpush1.msra.mxu0 0.0
    %4021 = vmatprep.subr.mxu0 0.0
    %4022 = vmatpush1.msra.mxu0 0.0
    %4023 = vmatprep.subr.mxu0 0.0
    %4024 = vmatpush1.msra.mxu0 0.0
    %4025 = vmatprep.subr.mxu0 0.0
    %4026 = vmatpush1.msra.mxu0 0.0
    %4027 = vmatprep.subr.mxu0 0.0
    %4028 = vmatpush1.msra.mxu0 0.0
    %4029 = vmatprep.subr.mxu0 0.0
    %4030 = vmatpush1.msra.mxu0 0.0
    %4031 = vmatprep.subr.mxu0 0.0
    %4032 = vmatpush1.msra.mxu0 0.0
    %4033 = vmatprep.subr.mxu0 0.0
    %4034 = vmatpush1.msra.mxu0 0.0
    %4035 = vmatprep.subr.mxu0 0.0
    %4036 = vmatpush1.msra.mxu0 %v4012
    %4037 = vmatprep.subr.mxu0 0.0
    %4038 = vmatpush1.msra.mxu0 %v4011
    %4039 = vmatprep.subr.mxu0 0.0
    %4040 = vmatpush1.msra.mxu0 %v4010
    %4041 = vmatprep.subr.mxu0 0.0
    %4042 = vmatpush1.msra.mxu0 %v4009
    %4043 = vmatprep.subr.mxu0 0.0
    %4044 = vmatpush1.msra.mxu0 %v4008
    %4045 = vmatprep.subr.mxu0 0.0
    %4046 = vmatpush1.msra.mxu0 %v4007
    %4047 = vmatprep.subr.mxu0 0.0
    %4048 = vmatpush1.msra.mxu0 %v4006
    %4049 = vmatprep.subr.mxu0 0.0
    %4050 = vmatpush1.msra.mxu0 %v4005
    %4051 = vmatprep.subr.mxu0 0.0
    %4052 = vmatpush2.msra.mxu0 0.0
    %4053 = vmatprep.subr.mxu0 0.0
    %4054 = vmatpush2.msra.mxu0 0.0
    %4055 = vmatprep.subr.mxu0 0.0
    %4056 = vmatpush2.msra.mxu0 0.0
    %4057 = vmatprep.subr.mxu0 0.0
    %4058 = vmatpush2.msra.mxu0 0.0
    %4059 = vmatprep.subr.mxu0 0.0
    %4060 = vmatpush2.msra.mxu0 0.0
    %4061 = vmatprep.subr.mxu0 0.0
    %4062 = vmatpush2.msra.mxu0 0.0
    %4063 = vmatprep.subr.mxu0 0.0
    %4064 = vmatpush2.msra.mxu0 0.0
    %4065 = vmatprep.subr.mxu0 0.0
    %4066 = vmatpush2.msra.mxu0 0.0
    %4067 = vmatprep.subr.mxu0 0.0
    %4068 = vmatpush2.msra.mxu0 0.0
    %4069 = vmatprep.subr.mxu0 0.0
    %4070 = vmatpush2.msra.mxu0 0.0
    %4071 = vmatprep.subr.mxu0 0.0
    %4072 = vmatpush2.msra.mxu0 0.0
    %4073 = vmatprep.subr.mxu0 0.0
    %4074 = vmatpush2.msra.mxu0 0.0
    %4075 = vmatprep.subr.mxu0 0.0
    %4076 = vmatpush2.msra.mxu0 0.0
    %4077 = vmatprep.subr.mxu0 0.0
    %4078 = vmatpush2.msra.mxu0 0.0
    %4079 = vmatprep.subr.mxu0 0.0
    %4080 = vmatpush2.msra.mxu0 0.0
    %4081 = vmatprep.subr.mxu0 0.0
    %4082 = vmatpush2.msra.mxu0 0.0
    %4083 = vmatprep.mubr.f32.mxu0 0.0
    %4084 = vmatmul.mubr.f32.gmra.mxu0 %v4014
    %v4085 = vpop.f32.mrf.mxu0
    %v4086 = vadd.f32 0.0, %v4085
    %v4087 = vpop.f32.mrf.mxu0
    %4088 = vmatprep.mubr.f32.mxu0 0.0
    %4089 = vmatmul.mubr.f32.gmra.mxu0 %v4017
    %v4090 = vpop.f32.mrf.mxu0
    %v4091 = vadd.f32 0.0, %v4090
    %v4092 = vpop.f32.mrf.mxu0
    %4093 = vdwg.mxu0
    %v4094 = vadd.f32 %v3852, %v4086
    %v4095 = vadd.f32 %v3853, %v4091
    %s4096 = scalar_lea.vmem [#allocation17], 1
    %v4097 = vld [vmem:[%s4096] sm:$0x1]
    %v4099 = vlaneseq
    %v4100 = vshrl.u32 %v4099, 7
    %v4101 = vsub.s32 0, %v4100
    %v4102 = vrot.slane %v4097, %v4101
    %v4104 = vadd.f32 %v4094, %v4102
    %v4105 = vadd.f32 %v4095, %v4102
    %4106 = vst.msk [vmem:[#allocation20] sm:$0xff] %vm439, %v4104
    %4107 = vst.msk [vmem:[#allocation20 + $0x8] sm:$0xff] %vm439, %v4105
    %v4108 = vld [vmem:[%s21] sm:$0xff]
    %v4109 = vld [vmem:[%s21 + $0x8] sm:$0xff]
    %v4110 = vld [vmem:[%s21 + $0x10] sm:$0xff]
    %v4111 = vld [vmem:[%s21 + $0x18] sm:$0xff]
    %v4112 = vld [vmem:[%s22] sm:$0x1]
    %v4114 = vlaneseq
    %v4115 = vshrl.u32 %v4114, 7
    %v4116 = vsub.s32 0, %v4115
    %v4117 = vrot.slane %v4112, %v4116
    %v4120 = vsel %vm439, %v4104, 0
    %v4123 = vsel %vm439, %v4105, 0
    %4125 = vmatprep.subr.mxu0 0.0
    %4126 = vmatpush1.msra.mxu0 0.0
    %4127 = vmatprep.subr.mxu0 0.0
    %4128 = vmatpush1.msra.mxu0 0.0
    %4129 = vmatprep.subr.mxu0 0.0
    %4130 = vmatpush1.msra.mxu0 0.0
    %4131 = vmatprep.subr.mxu0 0.0
    %4132 = vmatpush1.msra.mxu0 0.0
    %4133 = vmatprep.subr.mxu0 0.0
    %4134 = vmatpush1.msra.mxu0 0.0
    %4135 = vmatprep.subr.mxu0 0.0
    %4136 = vmatpush1.msra.mxu0 0.0
    %4137 = vmatprep.subr.mxu0 0.0
    %4138 = vmatpush1.msra.mxu0 0.0
    %4139 = vmatprep.subr.mxu0 0.0
    %4140 = vmatpush1.msra.mxu0 0.0
    %4141 = vmatprep.subr.mxu0 0.0
    %4142 = vmatpush1.msra.mxu0 0.0
    %4143 = vmatprep.subr.mxu0 0.0
    %4144 = vmatpush1.msra.mxu0 0.0
    %4145 = vmatprep.subr.mxu0 0.0
    %4146 = vmatpush1.msra.mxu0 0.0
    %4147 = vmatprep.subr.mxu0 0.0
    %4148 = vmatpush1.msra.mxu0 0.0
    %4149 = vmatprep.subr.mxu0 0.0
    %4150 = vmatpush1.msra.mxu0 %v4111
    %4151 = vmatprep.subr.mxu0 0.0
    %4152 = vmatpush1.msra.mxu0 %v4110
    %4153 = vmatprep.subr.mxu0 0.0
    %4154 = vmatpush1.msra.mxu0 %v4109
    %4155 = vmatprep.subr.mxu0 0.0
    %4156 = vmatpush1.msra.mxu0 %v4108
    %4157 = vmatprep.subr.mxu0 0.0
    %4158 = vmatpush2.msra.mxu0 0.0
    %4159 = vmatprep.subr.mxu0 0.0
    %4160 = vmatpush2.msra.mxu0 0.0
    %4161 = vmatprep.subr.mxu0 0.0
    %4162 = vmatpush2.msra.mxu0 0.0
    %4163 = vmatprep.subr.mxu0 0.0
    %4164 = vmatpush2.msra.mxu0 0.0
    %4165 = vmatprep.subr.mxu0 0.0
    %4166 = vmatpush2.msra.mxu0 0.0
    %4167 = vmatprep.subr.mxu0 0.0
    %4168 = vmatpush2.msra.mxu0 0.0
    %4169 = vmatprep.subr.mxu0 0.0
    %4170 = vmatpush2.msra.mxu0 0.0
    %4171 = vmatprep.subr.mxu0 0.0
    %4172 = vmatpush2.msra.mxu0 0.0
    %4173 = vmatprep.subr.mxu0 0.0
    %4174 = vmatpush2.msra.mxu0 0.0
    %4175 = vmatprep.subr.mxu0 0.0
    %4176 = vmatpush2.msra.mxu0 0.0
    %4177 = vmatprep.subr.mxu0 0.0
    %4178 = vmatpush2.msra.mxu0 0.0
    %4179 = vmatprep.subr.mxu0 0.0
    %4180 = vmatpush2.msra.mxu0 0.0
    %4181 = vmatprep.subr.mxu0 0.0
    %4182 = vmatpush2.msra.mxu0 0.0
    %4183 = vmatprep.subr.mxu0 0.0
    %4184 = vmatpush2.msra.mxu0 0.0
    %4185 = vmatprep.subr.mxu0 0.0
    %4186 = vmatpush2.msra.mxu0 0.0
    %4187 = vmatprep.subr.mxu0 0.0
    %4188 = vmatpush2.msra.mxu0 0.0
    %4189 = vmatprep.mubr.f32.mxu0 0.0
    %4190 = vmatmul.mubr.f32.gmra.mxu0 %v4120
    %v4191 = vpop.f32.mrf.mxu0
    %v4192 = vadd.f32 %v4117, %v4191
    %v4193 = vpop.f32.mrf.mxu0
    %4194 = vmatprep.mubr.f32.mxu0 0.0
    %4195 = vmatmul.mubr.f32.gmra.mxu0 %v4123
    %v4196 = vpop.f32.mrf.mxu0
    %v4197 = vadd.f32 %v4117, %v4196
    %v4198 = vpop.f32.mrf.mxu0
    %4199 = vdwg.mxu0
    %4200 = vst.msk [vmem:[#allocation19] sm:$0xff] %vm217, %v4192
    %4201 = vst.msk [vmem:[#allocation19 + $0x8] sm:$0xff] %vm217, %v4197
    // Predicated region
    $region134: #{tpu_custom_call.1} parent=1 // pred_check
      _
    $region135: #{tpu_custom_call.1} parent=1 // pred_check_branch
      %4203 = sbr.rel (0) target = $region137
    $region136: #{tpu_custom_call.1} parent=1 // pred_region
      %s4205 = ssub.s32 256, 256
      %4206 = vsyncadd [#allocation4], %s4205
      %s4207 = sshll.u32 [#allocation19], 4
      %s4208 = int_to_ptr.vmem [resolvable:$true] %s4207
      %4213 = dma.vmem_to_hbm [thread:$0]  %s4208, 256, %s23, [#allocation4], 128, 128, 8
    $region137: #{tpu_custom_call.1} parent=1 // pred_fallthru
      _
    // Predicated region
    $region138: #{tpu_custom_call.1} parent=1 // pred_check
      _
    $region139: #{tpu_custom_call.1} parent=1 // pred_check_branch
      %4215 = sbr.rel (0) target = $region141
    $region140: #{tpu_custom_call.1} parent=1 // pred_region
      %s4217 = ssub.s32 256, 256
      %4218 = vsyncadd [#allocation21], %s4217
      %s4219 = sshll.u32 [#allocation20], 4
      %s4220 = int_to_ptr.vmem [resolvable:$true] %s4219
      %4225 = dma.vmem_to_hbm [thread:$0]  %s4220, 256, %s24, [#allocation21], 128, 128, 8
    $region141: #{tpu_custom_call.1} parent=1 // pred_fallthru
      _
    // Predicated region
    $region142: #{tpu_custom_call.1} parent=1 // pred_check
      _
    $region143: #{tpu_custom_call.1} parent=1 // pred_check_branch
      %4227 = sbr.rel (0) target = $region145
    $region144: #{tpu_custom_call.1} parent=1 // pred_region
      %4228 = dma.done [#allocation4], 256
    $region145: #{tpu_custom_call.1} parent=1 // pred_fallthru
      _
    // Predicated region
    $region146: #{tpu_custom_call.1} parent=1 // pred_check
      _
    $region147: #{tpu_custom_call.1} parent=1 // pred_check_branch
      %4230 = sbr.rel (0) target = $region149
    $region148: #{tpu_custom_call.1} parent=1 // pred_region
      %4231 = dma.done [#allocation21], 256
    $region149: #{tpu_custom_call.1} parent=1 // pred_fallthru
      _
    %4232 = vsyncpa [#allocation3], 1
    %4233 = vsyncpa [#allocation6], 1
    %4234 = vsyncpa [#allocation9], 1
    %4235 = vsyncpa [#allocation12], 1
    %4236 = vsyncpa [#allocation15], 1
    %4237 = vsyncpa [#allocation18], 1
    %4238 = vsyncpa [#allocation4], 1
    %4239 = vsyncpa [#allocation21], 1

</llo_original>
